<compile_context>
chip_gen: v5e
topology: v5e:2x2
jax: 0.10.0
libtpu: 0.0.40
codegen_flags: <defaults>
</compile_context>

<pallas_src>
import functools
import inspect

import jax
import jax.numpy as jnp
from jax import lax
from jax.experimental import pallas as pl
from jax.experimental.pallas import tpu as pltpu

HEAD_DIM = 64  # fixed by the PyTorch module (Attention(dim, head_dim=64))

try:
    _HAS_BUFFERED = (hasattr(pl, "Buffered")
                     and "pipeline_mode" in inspect.signature(pl.BlockSpec).parameters)
except (TypeError, ValueError):  # pragma: no cover - very old / unusual JAX
    _HAS_BUFFERED = False


def _vmem_capacity_bytes():
    """Physical VMEM of the local TPU; conservative 64 MiB (v7x) fallback."""
    try:
        return int(pltpu.get_tpu_info().vmem_capacity_bytes)
    except Exception:
        return 64 << 20


def _gelu_erf(x, recip):
    """Exact-erf GELU via Abramowitz & Stegun 7.1.26 (|abs err| <= 1.5e-7)."""
    z = jnp.abs(x) * 0.7071067811865476
    t = recip(1.0 + 0.3275911 * z)
    poly = ((((1.061405429 * t - 1.453152027) * t + 1.421413741) * t
             - 0.284496736) * t + 0.254829592) * t
    erf_abs = 1.0 - poly * jnp.exp(-z * z)
    return 0.5 * x * (1.0 + jnp.where(x >= 0.0, erf_abs, -erf_abs))


def _block_kernel(x_ref, wq_ref, wkv_ref, wo_ref, bo_ref, w1_ref, b1_ref,
                  w2_ref, b2_ref, o_ref, kv_ref, *,
                  num_heads, q_tile, compute_dtype, approx):
    """One (batch, query-row-tile) grid step: attention + proj + MLP, channel-major."""
    f32 = jnp.float32
    C = wq_ref.shape[0]

    def recip(v):
        return pl.reciprocal(v, approx=True) if approx else 1.0 / v

    # --- K/V for all heads: computed once per batch, cached in VMEM scratch ----
    @pl.when(pl.program_id(1) == 0)
    def _():
        # (2C, C) @ (C, N) -> (2C, N): one full-width GEMM for [K; V], all heads.
        kv_ref[...] = jnp.dot(wkv_ref[...], x_ref[0],
                              preferred_element_type=compute_dtype)

    # --- Q projection for this query-row tile (scale pre-folded into Wq) -------
    q_start = pl.multiple_of(pl.program_id(1) * q_tile, q_tile)
    x_q = x_ref[0, :, pl.ds(q_start, q_tile)]                    # (C, TQ) channel-major
    q_cm = jnp.dot(wq_ref[...], x_q,
                   preferred_element_type=compute_dtype)         # (C, TQ), all heads

    # --- per-head attention: only QK^T and PV remain head-sized ----------------
    head_outs = []
    for h in range(num_heads):                                   # tiny static loop
        lo = h * HEAD_DIM
        q_h = q_cm[lo:lo + HEAD_DIM, :]                          # (64, TQ)
        k_h = kv_ref[lo:lo + HEAD_DIM, :]                        # (64, N)
        v_h = kv_ref[C + lo:C + lo + HEAD_DIM, :]                # (64, N)

        # scores = q^T k: contract the 64-wide head dim of both operands.
        s = lax.dot_general(q_h, k_h, (((0,), (0,)), ((), ())),
                            preferred_element_type=f32)          # (TQ, N)
        m = jnp.max(s, axis=-1, keepdims=True)
        p = jnp.exp(s - m)                                       # unnormalized probs
        l = jnp.sum(p, axis=-1, keepdims=True)

        # PV = p @ v^T form (contract N); output is token-major (TQ, 64).
        o_h = lax.dot_general(p.astype(compute_dtype), v_h,
                              (((1,), (1,)), ((), ())),
                              preferred_element_type=f32)
        head_outs.append(o_h * recip(l))                         # fold softmax denom here

    head_out = (head_outs[0] if num_heads == 1
                else jnp.concatenate(head_outs, axis=-1))        # (TQ, C)

    # --- output projection + MLP: full-C, channel-major GEMMs ------------------
    y = lax.dot_general(wo_ref[...], head_out.astype(compute_dtype),
                        (((1,), (1,)), ((), ())),
                        preferred_element_type=f32)              # (C, TQ)
    y = y + bo_ref[...]                                          # (C, 1) bias column

    h1 = jnp.dot(w1_ref[...], y.astype(compute_dtype),
                 preferred_element_type=f32) + b1_ref[...]
    h1 = _gelu_erf(h1, recip)
    h2 = jnp.dot(w2_ref[...], h1.astype(compute_dtype),
                 preferred_element_type=f32) + b2_ref[...]
    o_ref[0] = h2.astype(o_ref.dtype)                            # (C, TQ) lane-dense store


def attention_mlp_block(x_nchw, params, *, compute_dtype=jnp.bfloat16,
                        out_dtype=jnp.float32):
    """Pallas implementation of AttentionMlpBlock.forward for NCHW input."""
    B, C, H, W = x_nchw.shape
    N = H * W
    assert C % HEAD_DIM == 0
    num_heads = C // HEAD_DIM
    scale = float(HEAD_DIM) ** -0.5                              # Python float constant
    approx = jnp.dtype(compute_dtype) != jnp.dtype(jnp.float32)

    # ---- query-row tile: largest 128-multiple tile whose activations fit ------
    candidates = [c for c in (N, 512, 256, 128) if c <= N and N % c == 0]
    q_tile = candidates[-1]
    for cand in candidates:                                      # largest first
        act_bytes = (2 * cand * N + 6 * C * cand) * 4            # f32 scores/probs/temps
        if act_bytes <= (10 << 20):
            q_tile = cand
            break
    n_q_tiles = N // q_tile

    # ---- host-side weight prep: natural (C_out, C_in) layouts, no transposes --
    wqkv = jnp.asarray(params["wqkv"], jnp.float32)              # (3C, C)
    wq_scaled = (wqkv[:C] * scale).astype(compute_dtype)         # scale folded into Wq
    wkv = wqkv[C:].astype(compute_dtype)                         # (2C, C) = [Wk; Wv]
    wproj = jnp.asarray(params["wproj"], compute_dtype)          # (C, C), used as A @ B^T
    bproj = jnp.asarray(params["bproj"], jnp.float32).reshape(C, 1)
    w1 = jnp.asarray(params["w1"], compute_dtype)                # (C, C)
    b1 = jnp.asarray(params["b1"], jnp.float32).reshape(C, 1)
    w2 = jnp.asarray(params["w2"], compute_dtype)                # (C, C)
    b2 = jnp.asarray(params["b2"], jnp.float32).reshape(C, 1)

    # NCHW -> channel-major tokens: pure reshape, no HBM transpose pass.
    x_cn = x_nchw.reshape(B, C, N).astype(compute_dtype)

    kernel = functools.partial(
        _block_kernel, num_heads=num_heads, q_tile=q_tile,
        compute_dtype=compute_dtype, approx=approx)

    def const_spec(shape):
        idx = lambda b, j: (0,) * len(shape)
        if _HAS_BUFFERED:
            # Weights/biases are fetched once: single-buffer to halve residency.
            return pl.BlockSpec(shape, idx, pipeline_mode=pl.Buffered(1))
        return pl.BlockSpec(shape, idx)

    # ---- generation-aware VMEM limit, sized from the real intermediates -------
    dsz = jnp.dtype(compute_dtype).itemsize
    osz = jnp.dtype(out_dtype).itemsize
    vmem_est = (
        2 * C * N * dsz                                  # x block (double-buffered)
        + 2 * C * q_tile * osz                           # output block (double-buffered)
        + 2 * C * N * dsz                                # K/V scratch
        + 6 * C * C * dsz * (1 if _HAS_BUFFERED else 2)  # weights
        + 4 * 128 * C * 4                                # lane-padded bias columns
        + 2 * q_tile * N * 4                             # f32 scores + probs
        + 6 * C * q_tile * 4                             # q/y/h1/h2/head_out temps
        + (4 << 20))                                     # Mosaic internal scratch headroom
    budget = max(min(_vmem_capacity_bytes() - (12 << 20), 100 << 20), 16 << 20)
    vmem_limit = int(min(max(vmem_est, 24 << 20), budget))

    out_cn = pl.pallas_call(
        kernel,
        out_shape=jax.ShapeDtypeStruct((B, C, N), out_dtype),
        grid=(B, n_q_tiles),
        in_specs=[
            pl.BlockSpec((1, C, N), lambda b, j: (b, 0, 0)),     # x, channel-major
            const_spec((C, C)),                                  # Wq * scale
            const_spec((2 * C, C)),                              # [Wk; Wv]
            const_spec((C, C)),                                  # Wproj
            const_spec((C, 1)),                                  # proj bias
            const_spec((C, C)),                                  # fc1 weight
            const_spec((C, 1)),                                  # fc1 bias
            const_spec((C, C)),                                  # fc2 weight
            const_spec((C, 1)),                                  # fc2 bias
        ],
        out_specs=pl.BlockSpec((1, C, q_tile), lambda b, j: (b, 0, j)),
        scratch_shapes=[pltpu.VMEM((2 * C, N), compute_dtype)],  # cached K/V (all heads)
        compiler_params=pltpu.CompilerParams(
            dimension_semantics=("parallel", "arbitrary"),
            vmem_limit_bytes=vmem_limit),
    )(x_cn, wq_scaled, wkv, wproj, bproj, w1, b1, w2, b2)

    # Channel-major (B, C, N) output -> NCHW is a free reshape.
    return out_cn.reshape(B, C, H, W)


def reference_jax(x_nchw, params):
    """Plain-JAX reference matching the PyTorch forward (f32, highest precision)."""
    B, C, H, W = x_nchw.shape
    N = H * W
    nh = C // HEAD_DIM
    scale = HEAD_DIM ** (-0.5)
    hp = jax.lax.Precision.HIGHEST
    x = x_nchw.reshape(B, C, N).transpose(0, 2, 1)                       # (B, N, C)
    qkv = jnp.einsum("bnc,dc->bnd", x, params["wqkv"], precision=hp)     # (B, N, 3C)
    qkv = qkv.reshape(B, N, 3, nh, HEAD_DIM).transpose(2, 0, 3, 1, 4)
    q, k, v = qkv[0], qkv[1], qkv[2]                                     # (B, nh, N, hd)
    attn = jnp.einsum("bhnd,bhmd->bhnm", q * scale, k, precision=hp)
    attn = jax.nn.softmax(attn, axis=-1)
    y = jnp.einsum("bhnm,bhmd->bhnd", attn, v, precision=hp)
    y = y.transpose(0, 2, 1, 3).reshape(B, N, C)
    y = jnp.einsum("bnc,dc->bnd", y, params["wproj"], precision=hp) + params["bproj"]
    h1 = jnp.einsum("bnc,dc->bnd", y, params["w1"], precision=hp) + params["b1"]
    h1 = jax.nn.gelu(h1, approximate=False)
    h2 = jnp.einsum("bnc,dc->bnd", h1, params["w2"], precision=hp) + params["b2"]
    return h2.transpose(0, 2, 1).reshape(B, C, H, W)


def make_params(key, dim):
    """Deterministic synthetic parameters with the shapes from __init__."""
    ks = jax.random.split(key, 7)
    tn = lambda k, shape, s=0.02: s * jax.random.truncated_normal(
        k, -2.0, 2.0, shape, jnp.float32)
    return {
        "wqkv": tn(ks[0], (3 * dim, dim)),        # Attention.qkv (bias=False)
        "wproj": tn(ks[1], (dim, dim)),           # Attention.proj
        "bproj": tn(ks[4], (dim,), 0.01),
        "w1": tn(ks[2], (dim, dim)),              # Mlp.fc1 (1x1 conv, kernel squeezed)
        "b1": tn(ks[5], (dim,), 0.01),
        "w2": tn(ks[3], (dim, dim)),              # Mlp.fc2 (1x1 conv, kernel squeezed)
        "b2": tn(ks[6], (dim,), 0.01),
    }


if __name__ == "__main__":
    key = jax.random.PRNGKey(0)
    k_x, k_p = jax.random.split(key)

    # dim must be divisible by head_dim=64 -> C=128 gives 2 heads; N=256 tokens.
    B, C, H, W = 2, 128, 16, 16
    x = jax.random.normal(k_x, (B, C, H, W), jnp.float32)
    params = make_params(k_p, C)

    ref = reference_jax(x, params)

    def rel_err(a, b):
        a = a.astype(jnp.float32)
        b = b.astype(jnp.float32)
        return float(jnp.linalg.norm(a - b) / (jnp.linalg.norm(b) + 1e-12))

    # Strict check: f32 compute path (exact divides, no approx reciprocal).
    out_f32 = jax.block_until_ready(
        attention_mlp_block(x, params, compute_dtype=jnp.float32))
    assert out_f32.shape == (B, C, H, W)
    e32 = rel_err(out_f32, ref)
    assert e32 < 5e-3, f"f32 Pallas output mismatch vs reference (rel_err={e32})"

    # Performance path: bf16 matmul operands, f32 accumulation, approx recips.
    out_bf16 = jax.block_until_ready(attention_mlp_block(x, params))
    assert out_bf16.shape == (B, C, H, W)
    e16 = rel_err(out_bf16, ref)
    assert e16 < 5e-2, f"bf16 Pallas output mismatch vs reference (rel_err={e16})"

    print("KERNEL_OK")
</pallas_src>

<mosaic_0001>
module attributes {stable_mosaic.version = 11 : i64} {
  func.func @_block_kernel(%arg0: i32, %arg1: i32, %arg2: memref<1x128x256xf32, #tpu.memory_space<vmem>>, %arg3: memref<128x128xf32, #tpu.memory_space<vmem>>, %arg4: memref<256x128xf32, #tpu.memory_space<vmem>>, %arg5: memref<128x128xf32, #tpu.memory_space<vmem>>, %arg6: memref<128x1xf32, #tpu.memory_space<vmem>>, %arg7: memref<128x128xf32, #tpu.memory_space<vmem>>, %arg8: memref<128x1xf32, #tpu.memory_space<vmem>>, %arg9: memref<128x128xf32, #tpu.memory_space<vmem>>, %arg10: memref<128x1xf32, #tpu.memory_space<vmem>>, %arg11: memref<1x128x256xf32, #tpu.memory_space<vmem>>, %arg12: memref<256x256xf32, #tpu.memory_space<vmem>>) attributes {dimension_semantics = [#tpu.dimension_semantics<parallel>, #tpu.dimension_semantics<arbitrary>], iteration_bounds = array<i64: 2, 1>, scalar_prefetch = 0 : i64, scratch_operands = 1 : i64, tpu.core_type = #tpu.core_type<tc>, window_params = [{transform_indices = @transform_0, window_bounds = array<i64: 1, 128, 256>}, {pipeline_mode = #tpu.pipeline_mode<synchronous>, transform_indices = @transform_1, window_bounds = array<i64: 128, 128>}, {pipeline_mode = #tpu.pipeline_mode<synchronous>, transform_indices = @transform_2, window_bounds = array<i64: 256, 128>}, {pipeline_mode = #tpu.pipeline_mode<synchronous>, transform_indices = @transform_3, window_bounds = array<i64: 128, 128>}, {pipeline_mode = #tpu.pipeline_mode<synchronous>, transform_indices = @transform_4, window_bounds = array<i64: 128, 1>}, {pipeline_mode = #tpu.pipeline_mode<synchronous>, transform_indices = @transform_5, window_bounds = array<i64: 128, 128>}, {pipeline_mode = #tpu.pipeline_mode<synchronous>, transform_indices = @transform_6, window_bounds = array<i64: 128, 1>}, {pipeline_mode = #tpu.pipeline_mode<synchronous>, transform_indices = @transform_7, window_bounds = array<i64: 128, 128>}, {pipeline_mode = #tpu.pipeline_mode<synchronous>, transform_indices = @transform_8, window_bounds = array<i64: 128, 1>}, {transform_indices = @transform_9, window_bounds = array<i64: 1, 128, 256>}]} {
    %c0_i32 = arith.constant 0 : i32
    %0 = arith.cmpi eq, %arg1, %c0_i32 : i32
    %1 = arith.extui %0 : i1 to i32
    %c0_i32_0 = arith.constant 0 : i32
    %2 = arith.cmpi ne, %1, %c0_i32_0 : i32
    scf.if %2 {
      %c0_52 = arith.constant 0 : index
      %c0_53 = arith.constant 0 : index
      %101 = vector.load %arg4[%c0_52, %c0_53] : memref<256x128xf32, #tpu.memory_space<vmem>>, vector<256x128xf32>
      %c0_54 = arith.constant 0 : index
      %c0_55 = arith.constant 0 : index
      %c0_56 = arith.constant 0 : index
      %102 = vector.load %arg2[%c0_54, %c0_55, %c0_56] : memref<1x128x256xf32, #tpu.memory_space<vmem>>, vector<1x128x256xf32>
      %103 = vector.shape_cast %102 : vector<1x128x256xf32> to vector<128x256xf32>
      %cst_57 = arith.constant dense<0.000000e+00> : vector<256x256xf32>
      %104 = tpu.matmul %101, %103, %cst_57 {dimension_numbers = #tpu.dot_dimension_numbers<[1], [0], [0], [1], [0, 0, 1, 1], [], []>} : vector<256x128xf32>, vector<128x256xf32>, vector<256x256xf32> -> vector<256x256xf32>
      %c0_58 = arith.constant 0 : index
      %c0_59 = arith.constant 0 : index
      %105 = vector.load %arg12[%c0_58, %c0_59] : memref<256x256xf32, #tpu.memory_space<vmem>>, vector<256x256xf32>
      tpu.vector_store %arg12[%c0_58, %c0_59], %104 {strides = array<i32>} : memref<256x256xf32, #tpu.memory_space<vmem>>, vector<256x256xf32>,
    } else {
    }
    %c256_i32 = arith.constant 256 : i32
    %3 = arith.muli %arg1, %c256_i32 : i32
    %4 = tpu.assume_multiple %3, 256 : i32
    %c0 = arith.constant 0 : index
    %c0_1 = arith.constant 0 : index
    %5 = arith.index_cast %4 : i32 to index
    %6 = vector.load %arg2[%c0, %c0_1, %5] : memref<1x128x256xf32, #tpu.memory_space<vmem>>, vector<1x128x256xf32>
    %7 = vector.shape_cast %6 : vector<1x128x256xf32> to vector<128x256xf32>
    %c0_2 = arith.constant 0 : index
    %c0_3 = arith.constant 0 : index
    %8 = vector.load %arg3[%c0_2, %c0_3] : memref<128x128xf32, #tpu.memory_space<vmem>>, vector<128x128xf32>
    %cst = arith.constant dense<0.000000e+00> : vector<128x256xf32>
    %9 = tpu.matmul %8, %7, %cst {dimension_numbers = #tpu.dot_dimension_numbers<[1], [0], [0], [1], [0, 0, 1, 1], [], []>} : vector<128x128xf32>, vector<128x256xf32>, vector<128x256xf32> -> vector<128x256xf32>
    %10 = vector.extract_strided_slice %9 {offsets = [0, 0], sizes = [64, 256], strides = [1, 1]} : vector<128x256xf32> to vector<64x256xf32>
    %c0_4 = arith.constant 0 : index
    %c0_5 = arith.constant 0 : index
    %11 = vector.load %arg12[%c0_4, %c0_5] : memref<256x256xf32, #tpu.memory_space<vmem>>, vector<64x256xf32>
    %c128 = arith.constant 128 : index
    %c0_6 = arith.constant 0 : index
    %12 = vector.load %arg12[%c128, %c0_6] : memref<256x256xf32, #tpu.memory_space<vmem>>, vector<64x256xf32>
    %cst_7 = arith.constant dense<0.000000e+00> : vector<256x256xf32>
    %13 = tpu.matmul %10, %11, %cst_7 {dimension_numbers = #tpu.dot_dimension_numbers<[0], [0], [1], [1], [0, 1, 1, 1], [], []>} : vector<64x256xf32>, vector<64x256xf32>, vector<256x256xf32> -> vector<256x256xf32>
    %cst_8 = arith.constant dense<0xFF800000> : vector<256xf32>
    %14 = vector.multi_reduction <maximumf>, %13, %cst_8 [1] : vector<256x256xf32> to vector<256xf32>
    %15 = vector.shape_cast %14 : vector<256xf32> to vector<256x1xf32>
    %16 = vector.broadcast %15 : vector<256x1xf32> to vector<256x256xf32>
    %17 = arith.subf %13, %16 : vector<256x256xf32>
    %18 = math.exp %17 : vector<256x256xf32>
    %cst_9 = arith.constant dense<0.000000e+00> : vector<256xf32>
    %19 = vector.multi_reduction <add>, %18, %cst_9 [1] : vector<256x256xf32> to vector<256xf32>
    %20 = vector.shape_cast %19 : vector<256xf32> to vector<256x1xf32>
    %cst_10 = arith.constant dense<0.000000e+00> : vector<256x64xf32>
    %21 = tpu.matmul %18, %12, %cst_10 {dimension_numbers = #tpu.dot_dimension_numbers<[1], [1], [0], [0], [0, 0, 1, 0], [], []>} : vector<256x256xf32>, vector<64x256xf32>, vector<256x64xf32> -> vector<256x64xf32>
    %cst_11 = arith.constant 1.000000e+00 : f32
    %22 = vector.broadcast %cst_11 : f32 to vector<256x1xf32>
    %23 = arith.divf %22, %20 : vector<256x1xf32>
    %24 = vector.broadcast %23 : vector<256x1xf32> to vector<256x64xf32>
    %25 = arith.mulf %21, %24 : vector<256x64xf32>
    %26 = vector.extract_strided_slice %9 {offsets = [64, 0], sizes = [64, 256], strides = [1, 1]} : vector<128x256xf32> to vector<64x256xf32>
    %c64 = arith.constant 64 : index
    %c0_12 = arith.constant 0 : index
    %27 = vector.load %arg12[%c64, %c0_12] : memref<256x256xf32, #tpu.memory_space<vmem>>, vector<64x256xf32>
    %c192 = arith.constant 192 : index
    %c0_13 = arith.constant 0 : index
    %28 = vector.load %arg12[%c192, %c0_13] : memref<256x256xf32, #tpu.memory_space<vmem>>, vector<64x256xf32>
    %cst_14 = arith.constant dense<0.000000e+00> : vector<256x256xf32>
    %29 = tpu.matmul %26, %27, %cst_14 {dimension_numbers = #tpu.dot_dimension_numbers<[0], [0], [1], [1], [0, 1, 1, 1], [], []>} : vector<64x256xf32>, vector<64x256xf32>, vector<256x256xf32> -> vector<256x256xf32>
    %cst_15 = arith.constant dense<0xFF800000> : vector<256xf32>
    %30 = vector.multi_reduction <maximumf>, %29, %cst_15 [1] : vector<256x256xf32> to vector<256xf32>
    %31 = vector.shape_cast %30 : vector<256xf32> to vector<256x1xf32>
    %32 = vector.broadcast %31 : vector<256x1xf32> to vector<256x256xf32>
    %33 = arith.subf %29, %32 : vector<256x256xf32>
    %34 = math.exp %33 : vector<256x256xf32>
    %cst_16 = arith.constant dense<0.000000e+00> : vector<256xf32>
    %35 = vector.multi_reduction <add>, %34, %cst_16 [1] : vector<256x256xf32> to vector<256xf32>
    %36 = vector.shape_cast %35 : vector<256xf32> to vector<256x1xf32>
    %cst_17 = arith.constant dense<0.000000e+00> : vector<256x64xf32>
    %37 = tpu.matmul %34, %28, %cst_17 {dimension_numbers = #tpu.dot_dimension_numbers<[1], [1], [0], [0], [0, 0, 1, 0], [], []>} : vector<256x256xf32>, vector<64x256xf32>, vector<256x64xf32> -> vector<256x64xf32>
    %cst_18 = arith.constant 1.000000e+00 : f32
    %38 = vector.broadcast %cst_18 : f32 to vector<256x1xf32>
    %39 = arith.divf %38, %36 : vector<256x1xf32>
    %40 = vector.broadcast %39 : vector<256x1xf32> to vector<256x64xf32>
    %41 = arith.mulf %37, %40 : vector<256x64xf32>
    %42 = tpu.concatenate %25, %41 in 1 : vector<256x64xf32>, vector<256x64xf32> -> vector<256x128xf32>
    %c0_19 = arith.constant 0 : index
    %c0_20 = arith.constant 0 : index
    %43 = vector.load %arg5[%c0_19, %c0_20] : memref<128x128xf32, #tpu.memory_space<vmem>>, vector<128x128xf32>
    %cst_21 = arith.constant dense<0.000000e+00> : vector<128x256xf32>
    %44 = tpu.matmul %43, %42, %cst_21 {dimension_numbers = #tpu.dot_dimension_numbers<[1], [1], [0], [0], [0, 0, 1, 0], [], []>} : vector<128x128xf32>, vector<256x128xf32>, vector<128x256xf32> -> vector<128x256xf32>
    %c0_22 = arith.constant 0 : index
    %c0_23 = arith.constant 0 : index
    %45 = vector.load %arg6[%c0_22, %c0_23] : memref<128x1xf32, #tpu.memory_space<vmem>>, vector<128x1xf32>
    %46 = vector.broadcast %45 : vector<128x1xf32> to vector<128x256xf32>
    %47 = arith.addf %44, %46 : vector<128x256xf32>
    %c0_24 = arith.constant 0 : index
    %c0_25 = arith.constant 0 : index
    %48 = vector.load %arg7[%c0_24, %c0_25] : memref<128x128xf32, #tpu.memory_space<vmem>>, vector<128x128xf32>
    %cst_26 = arith.constant dense<0.000000e+00> : vector<128x256xf32>
    %49 = tpu.matmul %48, %47, %cst_26 {dimension_numbers = #tpu.dot_dimension_numbers<[1], [0], [0], [1], [0, 0, 1, 1], [], []>} : vector<128x128xf32>, vector<128x256xf32>, vector<128x256xf32> -> vector<128x256xf32>
    %c0_27 = arith.constant 0 : index
    %c0_28 = arith.constant 0 : index
    %50 = vector.load %arg8[%c0_27, %c0_28] : memref<128x1xf32, #tpu.memory_space<vmem>>, vector<128x1xf32>
    %51 = vector.broadcast %50 : vector<128x1xf32> to vector<128x256xf32>
    %52 = arith.addf %49, %51 : vector<128x256xf32>
    %53 = math.absf %52 : vector<128x256xf32>
    %cst_29 = arith.constant 0.707106769 : f32
    %54 = vector.broadcast %cst_29 : f32 to vector<128x256xf32>
    %55 = arith.mulf %53, %54 : vector<128x256xf32>
    %cst_30 = arith.constant 0.327591091 : f32
    %56 = vector.broadcast %cst_30 : f32 to vector<128x256xf32>
    %57 = arith.mulf %56, %55 : vector<128x256xf32>
    %cst_31 = arith.constant 1.000000e+00 : f32
    %58 = vector.broadcast %cst_31 : f32 to vector<128x256xf32>
    %59 = arith.addf %58, %57 : vector<128x256xf32>
    %cst_32 = arith.constant 1.000000e+00 : f32
    %60 = vector.broadcast %cst_32 : f32 to vector<128x256xf32>
    %61 = arith.divf %60, %59 : vector<128x256xf32>
    %cst_33 = arith.constant 1.06140542 : f32
    %62 = vector.broadcast %cst_33 : f32 to vector<128x256xf32>
    %63 = arith.mulf %62, %61 : vector<128x256xf32>
    %cst_34 = arith.constant 1.45315206 : f32
    %64 = vector.broadcast %cst_34 : f32 to vector<128x256xf32>
    %65 = arith.subf %63, %64 : vector<128x256xf32>
    %66 = arith.mulf %65, %61 : vector<128x256xf32>
    %cst_35 = arith.constant 1.42141378 : f32
    %67 = vector.broadcast %cst_35 : f32 to vector<128x256xf32>
    %68 = arith.addf %66, %67 : vector<128x256xf32>
    %69 = arith.mulf %68, %61 : vector<128x256xf32>
    %cst_36 = arith.constant 0.284496725 : f32
    %70 = vector.broadcast %cst_36 : f32 to vector<128x256xf32>
    %71 = arith.subf %69, %70 : vector<128x256xf32>
    %72 = arith.mulf %71, %61 : vector<128x256xf32>
    %cst_37 = arith.constant 0.254829586 : f32
    %73 = vector.broadcast %cst_37 : f32 to vector<128x256xf32>
    %74 = arith.addf %72, %73 : vector<128x256xf32>
    %75 = arith.mulf %74, %61 : vector<128x256xf32>
    %cst_38 = arith.constant 0.000000e+00 : f32
    %76 = vector.broadcast %cst_38 : f32 to vector<128x256xf32>
    %77 = arith.subf %76, %55 : vector<128x256xf32>
    %78 = arith.mulf %77, %55 : vector<128x256xf32>
    %79 = math.exp %78 : vector<128x256xf32>
    %80 = arith.mulf %75, %79 : vector<128x256xf32>
    %cst_39 = arith.constant 1.000000e+00 : f32
    %81 = vector.broadcast %cst_39 : f32 to vector<128x256xf32>
    %82 = arith.subf %81, %80 : vector<128x256xf32>
    %cst_40 = arith.constant 5.000000e-01 : f32
    %83 = vector.broadcast %cst_40 : f32 to vector<128x256xf32>
    %84 = arith.mulf %83, %52 : vector<128x256xf32>
    %cst_41 = arith.constant 0.000000e+00 : f32
    %85 = vector.broadcast %cst_41 : f32 to vector<128x256xf32>
    %86 = arith.cmpf oge, %52, %85 : vector<128x256xf32>
    %cst_42 = arith.constant 0.000000e+00 : f32
    %87 = vector.broadcast %cst_42 : f32 to vector<128x256xf32>
    %88 = arith.subf %87, %82 : vector<128x256xf32>
    %89 = arith.select %86, %82, %88 : vector<128x256xi1>, vector<128x256xf32>
    %cst_43 = arith.constant 1.000000e+00 : f32
    %90 = vector.broadcast %cst_43 : f32 to vector<128x256xf32>
    %91 = arith.addf %90, %89 : vector<128x256xf32>
    %92 = arith.mulf %84, %91 : vector<128x256xf32>
    %c0_44 = arith.constant 0 : index
    %c0_45 = arith.constant 0 : index
    %93 = vector.load %arg9[%c0_44, %c0_45] : memref<128x128xf32, #tpu.memory_space<vmem>>, vector<128x128xf32>
    %cst_46 = arith.constant dense<0.000000e+00> : vector<128x256xf32>
    %94 = tpu.matmul %93, %92, %cst_46 {dimension_numbers = #tpu.dot_dimension_numbers<[1], [0], [0], [1], [0, 0, 1, 1], [], []>} : vector<128x128xf32>, vector<128x256xf32>, vector<128x256xf32> -> vector<128x256xf32>
    %c0_47 = arith.constant 0 : index
    %c0_48 = arith.constant 0 : index
    %95 = vector.load %arg10[%c0_47, %c0_48] : memref<128x1xf32, #tpu.memory_space<vmem>>, vector<128x1xf32>
    %96 = vector.broadcast %95 : vector<128x1xf32> to vector<128x256xf32>
    %97 = arith.addf %94, %96 : vector<128x256xf32>
    %c0_49 = arith.constant 0 : index
    %c0_50 = arith.constant 0 : index
    %c0_51 = arith.constant 0 : index
    %98 = vector.load %arg11[%c0_49, %c0_50, %c0_51] : memref<1x128x256xf32, #tpu.memory_space<vmem>>, vector<1x128x256xf32>
    %99 = vector.shape_cast %98 : vector<1x128x256xf32> to vector<128x256xf32>
    %100 = vector.shape_cast %97 : vector<128x256xf32> to vector<1x128x256xf32>
    tpu.vector_store %arg11[%c0_49, %c0_50, %c0_51], %100 {strides = array<i32>} : memref<1x128x256xf32, #tpu.memory_space<vmem>>, vector<1x128x256xf32>,
    return
  }
  func.func @transform_0(%arg0: i32, %arg1: i32) -> (i32, i32, i32) {
    %c0_i32 = arith.constant 0 : i32
    %c0_i32_0 = arith.constant 0 : i32
    %c0_i32_1 = arith.constant 0 : i32
    return %arg0, %c0_i32, %c0_i32_0 : i32, i32, i32
  }
  func.func @transform_1(%arg0: i32, %arg1: i32) -> (i32, i32) {
    %c0_i32 = arith.constant 0 : i32
    %c0_i32_0 = arith.constant 0 : i32
    %c0_i32_1 = arith.constant 0 : i32
    return %c0_i32, %c0_i32_0 : i32, i32
  }
  func.func @transform_2(%arg0: i32, %arg1: i32) -> (i32, i32) {
    %c0_i32 = arith.constant 0 : i32
    %c0_i32_0 = arith.constant 0 : i32
    %c0_i32_1 = arith.constant 0 : i32
    return %c0_i32, %c0_i32_0 : i32, i32
  }
  func.func @transform_3(%arg0: i32, %arg1: i32) -> (i32, i32) {
    %c0_i32 = arith.constant 0 : i32
    %c0_i32_0 = arith.constant 0 : i32
    %c0_i32_1 = arith.constant 0 : i32
    return %c0_i32, %c0_i32_0 : i32, i32
  }
  func.func @transform_4(%arg0: i32, %arg1: i32) -> (i32, i32) {
    %c0_i32 = arith.constant 0 : i32
    %c0_i32_0 = arith.constant 0 : i32
    %c0_i32_1 = arith.constant 0 : i32
    return %c0_i32, %c0_i32_0 : i32, i32
  }
  func.func @transform_5(%arg0: i32, %arg1: i32) -> (i32, i32) {
    %c0_i32 = arith.constant 0 : i32
    %c0_i32_0 = arith.constant 0 : i32
    %c0_i32_1 = arith.constant 0 : i32
    return %c0_i32, %c0_i32_0 : i32, i32
  }
  func.func @transform_6(%arg0: i32, %arg1: i32) -> (i32, i32) {
    %c0_i32 = arith.constant 0 : i32
    %c0_i32_0 = arith.constant 0 : i32
    %c0_i32_1 = arith.constant 0 : i32
    return %c0_i32, %c0_i32_0 : i32, i32
  }
  func.func @transform_7(%arg0: i32, %arg1: i32) -> (i32, i32) {
    %c0_i32 = arith.constant 0 : i32
    %c0_i32_0 = arith.constant 0 : i32
    %c0_i32_1 = arith.constant 0 : i32
    return %c0_i32, %c0_i32_0 : i32, i32
  }
  func.func @transform_8(%arg0: i32, %arg1: i32) -> (i32, i32) {
    %c0_i32 = arith.constant 0 : i32
    %c0_i32_0 = arith.constant 0 : i32
    %c0_i32_1 = arith.constant 0 : i32
    return %c0_i32, %c0_i32_0 : i32, i32
  }
  func.func @transform_9(%arg0: i32, %arg1: i32) -> (i32, i32, i32) {
    %c0_i32 = arith.constant 0 : i32
    %c0_i32_0 = arith.constant 0 : i32
    return %arg0, %c0_i32, %arg1 : i32, i32, i32
  }
}

</mosaic_0001>

<llo_original>
// kernel: tpu_custom_call.1
$region0: #{tpu_custom_call.1}
  #allocation0 [shape = 'u32[]', space=smem, size = 0x4, offset = 0x4, fixed_abs, tag = 'smem constant byte address 0x4 - core index']
  #allocation1 [shape = 'u32[72,128]{1,0:T(1,128)}', space=vmem, size = 0x9000, scoped, tag = 'internal scratch']
  #allocation2 [shape = 'f32[256,256]{1,0:T(8,128)}', space=vmem, size = 0x40000, scoped, tag = 'scratch operand']
  %s0 = inlined_call_operand.hbm [shape: f32[2,128,256], index: 0, kind: input, shape index: {}]
  %s1 = inlined_call_operand.vmem [shape: f32[128,128], index: 1, kind: input, shape index: {}]
  %s2 = inlined_call_operand.vmem [shape: f32[256,128], index: 2, kind: input, shape index: {}]
  %s3 = inlined_call_operand.hbm [shape: f32[128,128], index: 3, kind: input, shape index: {}]
  %s4 = inlined_call_operand.vmem [shape: f32[128,1], index: 4, kind: input, shape index: {}]
  %s5 = inlined_call_operand.hbm [shape: f32[128,128], index: 5, kind: input, shape index: {}]
  %s6 = inlined_call_operand.vmem [shape: f32[128,1], index: 6, kind: input, shape index: {}]
  %s7 = inlined_call_operand.hbm [shape: f32[128,128], index: 7, kind: input, shape index: {}]
  %s8 = inlined_call_operand.vmem [shape: f32[128,1], index: 8, kind: input, shape index: {}]
  %s9 = inlined_call_operand.hbm [shape: f32[2,128,256], index: 9, kind: output, shape index: {}]
  %s10 = sld [smem:[#allocation0]]
  $region89: #{tpu_custom_call.1} parent=0
    _
  %s12 = ssub.s32 1, %s10
  %s13 = scalar_select 0, %s12, %s10
  $region1: #{tpu_custom_call.1} parent=0
    #allocation3 [shape = 'u8[262144]{0}', space=vmem, size = 0x40000, scoped, tag = 'input window, operand 0']
    #allocation4 [shape = 's32[2]{0}', space=sflag, size = 0x8, scoped, tag = 'scoped memory for tpu_custom_call.1']
    #allocation5 [shape = 's32[2]{0}', space=sflag, size = 0x8, scoped, tag = 'scoped memory for tpu_custom_call.1']
    #allocation6 [shape = 'u8[65536]{0}', space=vmem, size = 0x10000, scoped, tag = 'input window, operand 3, single buffered']
    #allocation7 [shape = 's32[1]{0}', space=sflag, size = 0x4, scoped, tag = 'scoped memory for tpu_custom_call.1']
    #allocation8 [shape = 'u8[65536]{0}', space=vmem, size = 0x10000, scoped, tag = 'input window, operand 5, single buffered']
    #allocation9 [shape = 'u8[65536]{0}', space=vmem, size = 0x10000, scoped, tag = 'input window, operand 7, single buffered']
    #allocation10 [shape = 's32[1]{0}', space=sflag, size = 0x4, scoped, tag = 'scoped memory for tpu_custom_call.1']
    #allocation11 [shape = 'u8[262144]{0}', space=vmem, size = 0x40000, scoped, tag = 'output window, operand 0']
    %14 = vsyncpa [#allocation4], 0
    %s15 = scalar_lea.sflag [#allocation4], 1
    %16 = vsyncpa %s15, 0
    %17 = vsyncpa [#allocation7], 0
    %18 = vsyncpa [#allocation10], 0
    %19 = vsyncpa [#allocation5], 0
    %s20 = scalar_lea.sflag [#allocation5], 1
    %21 = vsyncpa %s20, 0
    loop: start=0, step=1, limit=4
    $region2: #{tpu_custom_call.1} parent=1 // loop_pre_header
      _
    $region3: #{tpu_custom_call.1} parent=1 // loop_header
      %s23 = sphi 0, %s27
      %p24 = scmp.ge.s32.totalorder %s23, 4
      %s30 = sphi 0, %s42
      %s31 = sphi 0, %s38
      %s32 = sphi 0, %s30
      %s33 = sphi 0, %s31
      %s34 = sphi 0, %s32
      %s35 = sphi 0, %s33
      %s45 = sphi 0, %s47
      %s48 = sphi 0, %s45
      %s49 = sphi 0, %s48
      %s65 = sphi 0, %s49
      %s69 = sphi 0, %s69
      %s71 = sphi 0, %s69
      %s72 = sphi 0, %s71
      %s86 = sphi 0, %s72
      %s90 = sphi 0, %s90
      %s92 = sphi 0, %s90
      %s93 = sphi 0, %s92
      %s107 = sphi 0, %s93
      %s111 = sphi 0, %s111
      %s113 = sphi 0, %s111
      %s114 = sphi 0, %s113
      %s128 = sphi 0, %s114
      %s132 = sphi 0, %s132
      %s134 = sphi 0, %s132
      %s135 = sphi 0, %s134
      %s149 = sphi 0, %s135
      %s153 = sphi 0, %s153
      %s155 = sphi 0, %s153
      %s156 = sphi 0, %s155
      %s170 = sphi 0, %s156
      %s174 = sphi 0, %s174
      %s176 = sphi 0, %s174
      %s177 = sphi 0, %s176
      %s191 = sphi 0, %s177
      %s195 = sphi 0, %s195
      %s197 = sphi 0, %s195
      %s198 = sphi 0, %s197
      %s212 = sphi 0, %s198
      %s216 = sphi 0, %s216
      %s218 = sphi 0, %s216
      %s219 = sphi 0, %s218
      %s233 = sphi 0, %s219
      %s241 = sphi 0, %s243
      %s244 = sphi 0, %s241
      %s245 = sphi 0, %s244
      %s261 = sphi 0, %s245
    $region4: #{tpu_custom_call.1} parent=1 // loop_header_branch
      %26 = sbr.rel (%p24) target = $region8
    $region5: #{tpu_custom_call.1} parent=1 // loop_body
      %s28 = ssub.s32 %s23, 1
      %s29 = ssub.s32 %s23, 2
      %s36 = sadd.s32 1, %s31
      %p37 = scmp.ge.s32.totalorder %s36, 1
      %s38 = scalar_select %p37, 0, %s36
      %s39 = sadd.s32 1, %s30
      %s40 = scalar_select %p37, %s39, %s30
      %p41 = scmp.ge.s32.totalorder %s40, 2
      %s42 = scalar_select %p41, 0, %s40
      %s43 = ssub.s32 %s30, %s42
      %p44 = scmp.eq.s32.totalorder %s43, 0
      %s46 = sadd.s32 %s45, 1
      %s47 = scalar_select %p44, %s45, %s46
      %p50 = pneg %p44
      %p51 = scmp.eq.s32.totalorder %s23, 1
      %p52 = por %p50, %p51
      %p53 = scmp.ne.s32.totalorder %s45, %s48
      %p54 = scmp.eq.s32.totalorder %s23, 0
      %p55 = por %p53, %p54
      %p56 = scmp.ne.s32.totalorder %s45, %s48
      %p57 = scmp.eq.s32.totalorder %s28, 1
      %p58 = por %p56, %p57
      %p59 = scmp.ne.s32.totalorder %s48, %s49
      %p60 = scmp.eq.s32.totalorder %s28, 0
      %p61 = por %p59, %p60
      %p62 = scmp.ne.s32.totalorder %s48, %s49
      %p63 = scmp.eq.s32.totalorder %s29, 1
      %p64 = por %p62, %p63
      %p66 = scmp.ne.s32.totalorder %s49, %s65
      %p67 = scmp.eq.s32.totalorder %s29, 0
      %p68 = por %p66, %p67
      %s70 = sadd.s32 %s69, 1
      %p73 = scmp.eq.s32.totalorder %s23, 1
      %p74 = scmp.ne.s32.totalorder %s69, %s71
      %p75 = scmp.eq.s32.totalorder %s23, 0
      %p76 = por %p74, %p75
      %p77 = scmp.ne.s32.totalorder %s69, %s71
      %p78 = scmp.eq.s32.totalorder %s28, 1
      %p79 = por %p77, %p78
      %p80 = scmp.ne.s32.totalorder %s71, %s72
      %p81 = scmp.eq.s32.totalorder %s28, 0
      %p82 = por %p80, %p81
      %p83 = scmp.ne.s32.totalorder %s71, %s72
      %p84 = scmp.eq.s32.totalorder %s29, 1
      %p85 = por %p83, %p84
      %p87 = scmp.ne.s32.totalorder %s72, %s86
      %p88 = scmp.eq.s32.totalorder %s29, 0
      %p89 = por %p87, %p88
      %s91 = sadd.s32 %s90, 1
      %p94 = scmp.eq.s32.totalorder %s23, 1
      %p95 = scmp.ne.s32.totalorder %s90, %s92
      %p96 = scmp.eq.s32.totalorder %s23, 0
      %p97 = por %p95, %p96
      %p98 = scmp.ne.s32.totalorder %s90, %s92
      %p99 = scmp.eq.s32.totalorder %s28, 1
      %p100 = por %p98, %p99
      %p101 = scmp.ne.s32.totalorder %s92, %s93
      %p102 = scmp.eq.s32.totalorder %s28, 0
      %p103 = por %p101, %p102
      %p104 = scmp.ne.s32.totalorder %s92, %s93
      %p105 = scmp.eq.s32.totalorder %s29, 1
      %p106 = por %p104, %p105
      %p108 = scmp.ne.s32.totalorder %s93, %s107
      %p109 = scmp.eq.s32.totalorder %s29, 0
      %p110 = por %p108, %p109
      %s112 = sadd.s32 %s111, 1
      %p115 = scmp.eq.s32.totalorder %s23, 1
      %p116 = scmp.ne.s32.totalorder %s111, %s113
      %p117 = scmp.eq.s32.totalorder %s23, 0
      %p118 = por %p116, %p117
      %p119 = scmp.ne.s32.totalorder %s111, %s113
      %p120 = scmp.eq.s32.totalorder %s28, 1
      %p121 = por %p119, %p120
      %p122 = scmp.ne.s32.totalorder %s113, %s114
      %p123 = scmp.eq.s32.totalorder %s28, 0
      %p124 = por %p122, %p123
      %p125 = scmp.ne.s32.totalorder %s113, %s114
      %p126 = scmp.eq.s32.totalorder %s29, 1
      %p127 = por %p125, %p126
      %p129 = scmp.ne.s32.totalorder %s114, %s128
      %p130 = scmp.eq.s32.totalorder %s29, 0
      %p131 = por %p129, %p130
      %s133 = sadd.s32 %s132, 1
      %p136 = scmp.eq.s32.totalorder %s23, 1
      %p137 = scmp.ne.s32.totalorder %s132, %s134
      %p138 = scmp.eq.s32.totalorder %s23, 0
      %p139 = por %p137, %p138
      %p140 = scmp.ne.s32.totalorder %s132, %s134
      %p141 = scmp.eq.s32.totalorder %s28, 1
      %p142 = por %p140, %p141
      %p143 = scmp.ne.s32.totalorder %s134, %s135
      %p144 = scmp.eq.s32.totalorder %s28, 0
      %p145 = por %p143, %p144
      %p146 = scmp.ne.s32.totalorder %s134, %s135
      %p147 = scmp.eq.s32.totalorder %s29, 1
      %p148 = por %p146, %p147
      %p150 = scmp.ne.s32.totalorder %s135, %s149
      %p151 = scmp.eq.s32.totalorder %s29, 0
      %p152 = por %p150, %p151
      %s154 = sadd.s32 %s153, 1
      %p157 = scmp.eq.s32.totalorder %s23, 1
      %p158 = scmp.ne.s32.totalorder %s153, %s155
      %p159 = scmp.eq.s32.totalorder %s23, 0
      %p160 = por %p158, %p159
      %p161 = scmp.ne.s32.totalorder %s153, %s155
      %p162 = scmp.eq.s32.totalorder %s28, 1
      %p163 = por %p161, %p162
      %p164 = scmp.ne.s32.totalorder %s155, %s156
      %p165 = scmp.eq.s32.totalorder %s28, 0
      %p166 = por %p164, %p165
      %p167 = scmp.ne.s32.totalorder %s155, %s156
      %p168 = scmp.eq.s32.totalorder %s29, 1
      %p169 = por %p167, %p168
      %p171 = scmp.ne.s32.totalorder %s156, %s170
      %p172 = scmp.eq.s32.totalorder %s29, 0
      %p173 = por %p171, %p172
      %s175 = sadd.s32 %s174, 1
      %p178 = scmp.eq.s32.totalorder %s23, 1
      %p179 = scmp.ne.s32.totalorder %s174, %s176
      %p180 = scmp.eq.s32.totalorder %s23, 0
      %p181 = por %p179, %p180
      %p182 = scmp.ne.s32.totalorder %s174, %s176
      %p183 = scmp.eq.s32.totalorder %s28, 1
      %p184 = por %p182, %p183
      %p185 = scmp.ne.s32.totalorder %s176, %s177
      %p186 = scmp.eq.s32.totalorder %s28, 0
      %p187 = por %p185, %p186
      %p188 = scmp.ne.s32.totalorder %s176, %s177
      %p189 = scmp.eq.s32.totalorder %s29, 1
      %p190 = por %p188, %p189
      %p192 = scmp.ne.s32.totalorder %s177, %s191
      %p193 = scmp.eq.s32.totalorder %s29, 0
      %p194 = por %p192, %p193
      %s196 = sadd.s32 %s195, 1
      %p199 = scmp.eq.s32.totalorder %s23, 1
      %p200 = scmp.ne.s32.totalorder %s195, %s197
      %p201 = scmp.eq.s32.totalorder %s23, 0
      %p202 = por %p200, %p201
      %p203 = scmp.ne.s32.totalorder %s195, %s197
      %p204 = scmp.eq.s32.totalorder %s28, 1
      %p205 = por %p203, %p204
      %p206 = scmp.ne.s32.totalorder %s197, %s198
      %p207 = scmp.eq.s32.totalorder %s28, 0
      %p208 = por %p206, %p207
      %p209 = scmp.ne.s32.totalorder %s197, %s198
      %p210 = scmp.eq.s32.totalorder %s29, 1
      %p211 = por %p209, %p210
      %p213 = scmp.ne.s32.totalorder %s198, %s212
      %p214 = scmp.eq.s32.totalorder %s29, 0
      %p215 = por %p213, %p214
      %s217 = sadd.s32 %s216, 1
      %p220 = scmp.eq.s32.totalorder %s23, 1
      %p221 = scmp.ne.s32.totalorder %s216, %s218
      %p222 = scmp.eq.s32.totalorder %s23, 0
      %p223 = por %p221, %p222
      %p224 = scmp.ne.s32.totalorder %s216, %s218
      %p225 = scmp.eq.s32.totalorder %s28, 1
      %p226 = por %p224, %p225
      %p227 = scmp.ne.s32.totalorder %s218, %s219
      %p228 = scmp.eq.s32.totalorder %s28, 0
      %p229 = por %p227, %p228
      %p230 = scmp.ne.s32.totalorder %s218, %s219
      %p231 = scmp.eq.s32.totalorder %s29, 1
      %p232 = por %p230, %p231
      %p234 = scmp.ne.s32.totalorder %s219, %s233
      %p235 = scmp.eq.s32.totalorder %s29, 0
      %p236 = por %p234, %p235
      %s237 = ssub.s32 %s30, %s42
      %s238 = ssub.s32 %s31, %s38
      %s239 = sor.u32 %s237, %s238
      %p240 = scmp.eq.s32.totalorder %s239, 0
      %s242 = sadd.s32 %s241, 1
      %s243 = scalar_select %p240, %s241, %s242
      %p246 = pneg %p240
      %p247 = scmp.eq.s32.totalorder %s23, 1
      %p248 = por %p246, %p247
      %p249 = scmp.ne.s32.totalorder %s241, %s244
      %p250 = scmp.eq.s32.totalorder %s23, 0
      %p251 = por %p249, %p250
      %p252 = scmp.ne.s32.totalorder %s241, %s244
      %p253 = scmp.eq.s32.totalorder %s28, 1
      %p254 = por %p252, %p253
      %p255 = scmp.ne.s32.totalorder %s244, %s245
      %p256 = scmp.eq.s32.totalorder %s28, 0
      %p257 = por %p255, %p256
      %p258 = scmp.ne.s32.totalorder %s244, %s245
      %p259 = scmp.eq.s32.totalorder %s29, 1
      %p260 = por %p258, %p259
      %p262 = scmp.ne.s32.totalorder %s245, %s261
      %p263 = scmp.eq.s32.totalorder %s29, 0
      %p264 = por %p262, %p263
      %p265 = scmp.le.s32.totalorder 1, %s23
      %p266 = scmp.lt.s32.totalorder %s23, 3
      %p267 = pnand %p265, %p266
      %p268 = pneg %p267
      // Predicated region
      $region9: #{tpu_custom_call.1} parent=5 // pred_check
        _
      $region10: #{tpu_custom_call.1} parent=5 // pred_check_branch
        %270 = sbr.rel (%p267) target = $region12
      $region11: #{tpu_custom_call.1} parent=5 // pred_region
        %s271 = ssub.s32 %s23, 1
        // Predicated region
        $region13: #{tpu_custom_call.1} parent=11 // pred_check
          %p272 = pneg %p82
        $region14: #{tpu_custom_call.1} parent=11 // pred_check_branch
          %274 = sbr.rel (%p272) target = $region16
        $region15: #{tpu_custom_call.1} parent=11 // pred_region
          _
        $region16: #{tpu_custom_call.1} parent=11 // pred_fallthru
          _
        // Predicated region
        $region17: #{tpu_custom_call.1} parent=11 // pred_check
          %p275 = pneg %p103
        $region18: #{tpu_custom_call.1} parent=11 // pred_check_branch
          %277 = sbr.rel (%p275) target = $region20
        $region19: #{tpu_custom_call.1} parent=11 // pred_region
          _
        $region20: #{tpu_custom_call.1} parent=11 // pred_fallthru
          _
        // Predicated region
        $region21: #{tpu_custom_call.1} parent=11 // pred_check
          %p278 = pneg %p124
        $region22: #{tpu_custom_call.1} parent=11 // pred_check_branch
          %280 = sbr.rel (%p278) target = $region24
        $region23: #{tpu_custom_call.1} parent=11 // pred_region
          %282 = vsyncadd [#allocation7], 0
          %s283 = sshll.u32 %s3, 4
          %s284 = int_to_ptr.hbm [resolvable:$true] %s283
          %s285 = sshll.u32 [#allocation6], 4
          %s286 = int_to_ptr.vmem [resolvable:$true] %s285
          %291 = dma.hbm_to_vmem [thread:$0]  %s284, 2048, %s286, [#allocation7], 128, 128, 8
        $region24: #{tpu_custom_call.1} parent=11 // pred_fallthru
          _
        // Predicated region
        $region25: #{tpu_custom_call.1} parent=11 // pred_check
          %p292 = pneg %p145
        $region26: #{tpu_custom_call.1} parent=11 // pred_check_branch
          %294 = sbr.rel (%p292) target = $region28
        $region27: #{tpu_custom_call.1} parent=11 // pred_region
          _
        $region28: #{tpu_custom_call.1} parent=11 // pred_fallthru
          _
        // Predicated region
        $region29: #{tpu_custom_call.1} parent=11 // pred_check
          %p295 = pneg %p166
        $region30: #{tpu_custom_call.1} parent=11 // pred_check_branch
          %297 = sbr.rel (%p295) target = $region32
        $region31: #{tpu_custom_call.1} parent=11 // pred_region
          %299 = vsyncadd [#allocation7], 0
          %s300 = sshll.u32 %s5, 4
          %s301 = int_to_ptr.hbm [resolvable:$true] %s300
          %s302 = sshll.u32 [#allocation8], 4
          %s303 = int_to_ptr.vmem [resolvable:$true] %s302
          %308 = dma.hbm_to_vmem [thread:$0]  %s301, 2048, %s303, [#allocation7], 128, 128, 8
        $region32: #{tpu_custom_call.1} parent=11 // pred_fallthru
          _
        // Predicated region
        $region33: #{tpu_custom_call.1} parent=11 // pred_check
          %p309 = pneg %p187
        $region34: #{tpu_custom_call.1} parent=11 // pred_check_branch
          %311 = sbr.rel (%p309) target = $region36
        $region35: #{tpu_custom_call.1} parent=11 // pred_region
          _
        $region36: #{tpu_custom_call.1} parent=11 // pred_fallthru
          _
        // Predicated region
        $region37: #{tpu_custom_call.1} parent=11 // pred_check
          %p312 = pneg %p208
        $region38: #{tpu_custom_call.1} parent=11 // pred_check_branch
          %314 = sbr.rel (%p312) target = $region40
        $region39: #{tpu_custom_call.1} parent=11 // pred_region
          %316 = vsyncadd [#allocation10], 0
          %s317 = sshll.u32 %s7, 4
          %s318 = int_to_ptr.hbm [resolvable:$true] %s317
          %s319 = sshll.u32 [#allocation9], 4
          %s320 = int_to_ptr.vmem [resolvable:$true] %s319
          %325 = dma.hbm_to_vmem [thread:$0]  %s318, 2048, %s320, [#allocation10], 128, 128, 8
        $region40: #{tpu_custom_call.1} parent=11 // pred_fallthru
          _
        // Predicated region
        $region41: #{tpu_custom_call.1} parent=11 // pred_check
          %p326 = pneg %p229
        $region42: #{tpu_custom_call.1} parent=11 // pred_check_branch
          %328 = sbr.rel (%p326) target = $region44
        $region43: #{tpu_custom_call.1} parent=11 // pred_region
          _
        $region44: #{tpu_custom_call.1} parent=11 // pred_fallthru
          _
      $region12: #{tpu_custom_call.1} parent=5 // pred_fallthru
        _
      %p329 = scmp.lt.s32.totalorder %s23, 2
      // Predicated region
      $region45: #{tpu_custom_call.1} parent=5 // pred_check
        %p330 = pneg %p329
      $region46: #{tpu_custom_call.1} parent=5 // pred_check_branch
        %332 = sbr.rel (%p330) target = $region48
      $region47: #{tpu_custom_call.1} parent=5 // pred_region
        // Predicated region
        $region49: #{tpu_custom_call.1} parent=47 // pred_check
          %p333 = pneg %p55
        $region50: #{tpu_custom_call.1} parent=47 // pred_check_branch
          %335 = sbr.rel (%p333) target = $region52
        $region51: #{tpu_custom_call.1} parent=47 // pred_region
          %s336 = sand.u32 %s45, 1
          %s337 = scalar_lea.sflag [#allocation4], %s336
          %s338 = sand.u32 %s45, 1
          %s339 = smul.addr %s338, 256
          %s340 = scalar_lea.vmem [#allocation3], %s339
          %342 = vsyncadd %s337, 0
          %s343 = smul.addr %s30, 32
          %s344 = smul.addr %s343, 8
          %s345 = scalar_lea.hbm %s0, %s344
          %s346 = sshll.u32 %s345, 4
          %s347 = int_to_ptr.hbm [resolvable:$true] %s346
          %s348 = sshll.u32 %s340, 4
          %s349 = int_to_ptr.vmem [resolvable:$true] %s348
          %354 = dma.hbm_to_vmem [thread:$0]  %s347, 4096, %s349, %s337, 256, 256, 16
        $region52: #{tpu_custom_call.1} parent=47 // pred_fallthru
          _
      $region48: #{tpu_custom_call.1} parent=5 // pred_fallthru
        _
      %p355 = scmp.le.s32.totalorder 1, %s23
      %p356 = scmp.lt.s32.totalorder %s23, 3
      %p357 = pnand %p355, %p356
      %p358 = pneg %p357
      // Predicated region
      $region53: #{tpu_custom_call.1} parent=5 // pred_check
        _
      $region54: #{tpu_custom_call.1} parent=5 // pred_check_branch
        %360 = sbr.rel (%p357) target = $region56
      $region55: #{tpu_custom_call.1} parent=5 // pred_region
        %s361 = ssub.s32 %s23, 1
        %s362 = sand.u32 %s48, 1
        %s363 = scalar_lea.sflag [#allocation4], %s362
        %s364 = sand.u32 %s48, 1
        %s365 = smul.addr %s364, 256
        %s366 = scalar_lea.vmem [#allocation3], %s365
        // Predicated region
        $region57: #{tpu_custom_call.1} parent=55 // pred_check
          %p367 = pneg %p61
        $region58: #{tpu_custom_call.1} parent=55 // pred_check_branch
          %369 = sbr.rel (%p367) target = $region60
        $region59: #{tpu_custom_call.1} parent=55 // pred_region
          %371 = dma.done %s363, 4096
        $region60: #{tpu_custom_call.1} parent=55 // pred_fallthru
          _
        // Predicated region
        $region61: #{tpu_custom_call.1} parent=55 // pred_check
          %p372 = pneg %p124
        $region62: #{tpu_custom_call.1} parent=55 // pred_check_branch
          %374 = sbr.rel (%p372) target = $region64
        $region63: #{tpu_custom_call.1} parent=55 // pred_region
          %376 = dma.done [#allocation7], 2048
        $region64: #{tpu_custom_call.1} parent=55 // pred_fallthru
          _
        // Predicated region
        $region65: #{tpu_custom_call.1} parent=55 // pred_check
          %p377 = pneg %p166
        $region66: #{tpu_custom_call.1} parent=55 // pred_check_branch
          %379 = sbr.rel (%p377) target = $region68
        $region67: #{tpu_custom_call.1} parent=55 // pred_region
          %381 = dma.done [#allocation7], 2048
        $region68: #{tpu_custom_call.1} parent=55 // pred_fallthru
          _
        // Predicated region
        $region69: #{tpu_custom_call.1} parent=55 // pred_check
          %p382 = pneg %p208
        $region70: #{tpu_custom_call.1} parent=55 // pred_check_branch
          %384 = sbr.rel (%p382) target = $region72
        $region71: #{tpu_custom_call.1} parent=55 // pred_region
          %386 = dma.done [#allocation10], 2048
        $region72: #{tpu_custom_call.1} parent=55 // pred_fallthru
          _
        %s387 = sand.u32 %s48, 1
        %s388 = scalar_lea.sflag [#allocation4], %s387
        %s389 = sand.u32 %s48, 1
        %s390 = smul.addr %s389, 256
        %s391 = scalar_lea.vmem [#allocation3], %s390
        %p392 = pneg %p61
        %p393 = pneg %p58
        %p394 = pneg %p82
        %p395 = pneg %p79
        %p396 = pneg %p103
        %p397 = pneg %p100
        %p398 = pneg %p124
        %p399 = pneg %p121
        %p400 = pneg %p145
        %p401 = pneg %p142
        %p402 = pneg %p166
        %p403 = pneg %p163
        %p404 = pneg %p187
        %p405 = pneg %p184
        %p406 = pneg %p208
        %p407 = pneg %p205
        %p408 = pneg %p229
        %p409 = pneg %p226
        %p410 = pneg %p257
        %p411 = pneg %p254
        %s412 = sand.u32 %s244, 1
        %s413 = scalar_lea.sflag [#allocation5], %s412
        %s414 = sand.u32 %s244, 1
        %s415 = smul.addr %s414, 256
        %s416 = scalar_lea.vmem [#allocation11], %s415
        %s417 = smul.u32 2, %s33
        %p418 = scmp.eq.s32.totalorder %s33, 0
        // Predicated region
        $region73: #{tpu_custom_call.1} parent=55 // pred_check
          %p419 = pneg %p418
        $region74: #{tpu_custom_call.1} parent=55 // pred_check_branch
          %421 = sbr.rel (%p419) target = $region76
        $region75: #{tpu_custom_call.1} parent=55 // pred_region
          %v422 = vld [vmem:[%s2] sm:$0xff]
          %v423 = vld [vmem:[%s2 + $0x8] sm:$0xff]
          %v424 = vld [vmem:[%s2 + $0x10] sm:$0xff]
          %v425 = vld [vmem:[%s2 + $0x18] sm:$0xff]
          %v426 = vld [vmem:[%s2 + $0x20] sm:$0xff]
          %v427 = vld [vmem:[%s2 + $0x28] sm:$0xff]
          %v428 = vld [vmem:[%s2 + $0x30] sm:$0xff]
          %v429 = vld [vmem:[%s2 + $0x38] sm:$0xff]
          %v430 = vld [vmem:[%s2 + $0x40] sm:$0xff]
          %v431 = vld [vmem:[%s2 + $0x48] sm:$0xff]
          %v432 = vld [vmem:[%s2 + $0x50] sm:$0xff]
          %v433 = vld [vmem:[%s2 + $0x58] sm:$0xff]
          %v434 = vld [vmem:[%s2 + $0x60] sm:$0xff]
          %v435 = vld [vmem:[%s2 + $0x68] sm:$0xff]
          %v436 = vld [vmem:[%s2 + $0x70] sm:$0xff]
          %v437 = vld [vmem:[%s2 + $0x78] sm:$0xff]
          %v438 = vld [vmem:[%s2 + $0x80] sm:$0xff]
          %v439 = vld [vmem:[%s2 + $0x88] sm:$0xff]
          %v440 = vld [vmem:[%s2 + $0x90] sm:$0xff]
          %v441 = vld [vmem:[%s2 + $0x98] sm:$0xff]
          %v442 = vld [vmem:[%s2 + $0xa0] sm:$0xff]
          %v443 = vld [vmem:[%s2 + $0xa8] sm:$0xff]
          %v444 = vld [vmem:[%s2 + $0xb0] sm:$0xff]
          %v445 = vld [vmem:[%s2 + $0xb8] sm:$0xff]
          %v446 = vld [vmem:[%s2 + $0xc0] sm:$0xff]
          %v447 = vld [vmem:[%s2 + $0xc8] sm:$0xff]
          %v448 = vld [vmem:[%s2 + $0xd0] sm:$0xff]
          %v449 = vld [vmem:[%s2 + $0xd8] sm:$0xff]
          %v450 = vld [vmem:[%s2 + $0xe0] sm:$0xff]
          %v451 = vld [vmem:[%s2 + $0xe8] sm:$0xff]
          %v452 = vld [vmem:[%s2 + $0xf0] sm:$0xff]
          %v453 = vld [vmem:[%s2 + $0xf8] sm:$0xff]
          %v454 = vld [vmem:[%s366] sm:$0xff]
          %v455 = vld [vmem:[%s366 + $0x8] sm:$0xff]
          %v456 = vld [vmem:[%s366 + $0x10] sm:$0xff]
          %v457 = vld [vmem:[%s366 + $0x18] sm:$0xff]
          %v458 = vld [vmem:[%s366 + $0x20] sm:$0xff]
          %v459 = vld [vmem:[%s366 + $0x28] sm:$0xff]
          %v460 = vld [vmem:[%s366 + $0x30] sm:$0xff]
          %v461 = vld [vmem:[%s366 + $0x38] sm:$0xff]
          %v462 = vld [vmem:[%s366 + $0x40] sm:$0xff]
          %v463 = vld [vmem:[%s366 + $0x48] sm:$0xff]
          %v464 = vld [vmem:[%s366 + $0x50] sm:$0xff]
          %v465 = vld [vmem:[%s366 + $0x58] sm:$0xff]
          %v466 = vld [vmem:[%s366 + $0x60] sm:$0xff]
          %v467 = vld [vmem:[%s366 + $0x68] sm:$0xff]
          %v468 = vld [vmem:[%s366 + $0x70] sm:$0xff]
          %v469 = vld [vmem:[%s366 + $0x78] sm:$0xff]
          %v470 = vld [vmem:[%s366 + $0x80] sm:$0xff]
          %v471 = vld [vmem:[%s366 + $0x88] sm:$0xff]
          %v472 = vld [vmem:[%s366 + $0x90] sm:$0xff]
          %v473 = vld [vmem:[%s366 + $0x98] sm:$0xff]
          %v474 = vld [vmem:[%s366 + $0xa0] sm:$0xff]
          %v475 = vld [vmem:[%s366 + $0xa8] sm:$0xff]
          %v476 = vld [vmem:[%s366 + $0xb0] sm:$0xff]
          %v477 = vld [vmem:[%s366 + $0xb8] sm:$0xff]
          %v478 = vld [vmem:[%s366 + $0xc0] sm:$0xff]
          %v479 = vld [vmem:[%s366 + $0xc8] sm:$0xff]
          %v480 = vld [vmem:[%s366 + $0xd0] sm:$0xff]
          %v481 = vld [vmem:[%s366 + $0xd8] sm:$0xff]
          %v482 = vld [vmem:[%s366 + $0xe0] sm:$0xff]
          %v483 = vld [vmem:[%s366 + $0xe8] sm:$0xff]
          %v484 = vld [vmem:[%s366 + $0xf0] sm:$0xff]
          %v485 = vld [vmem:[%s366 + $0xf8] sm:$0xff]
          %486 = vmatpush.msra.mxu0 %v484
          %487 = vmatpush.msra.mxu0 %v482
          %488 = vmatpush.msra.mxu0 %v480
          %489 = vmatpush.msra.mxu0 %v478
          %490 = vmatpush.msra.mxu0 %v476
          %491 = vmatpush.msra.mxu0 %v474
          %492 = vmatpush.msra.mxu0 %v472
          %493 = vmatpush.msra.mxu0 %v470
          %494 = vmatpush.msra.mxu0 %v468
          %495 = vmatpush.msra.mxu0 %v466
          %496 = vmatpush.msra.mxu0 %v464
          %497 = vmatpush.msra.mxu0 %v462
          %498 = vmatpush.msra.mxu0 %v460
          %499 = vmatpush.msra.mxu0 %v458
          %500 = vmatpush.msra.mxu0 %v456
          %501 = vmatpush.msra.mxu0 %v454
          %502 = vmatmul.f32.gmra.mxu0 %v422
          %v503 = vpop.f32.mrf.mxu0
          %v504 = vadd.f32 0.0, %v503
          %505 = vmatmul.f32.gmra.mxu0 %v423
          %v506 = vpop.f32.mrf.mxu0
          %v507 = vadd.f32 0.0, %v506
          %508 = vmatmul.f32.gmra.mxu0 %v424
          %v509 = vpop.f32.mrf.mxu0
          %v510 = vadd.f32 0.0, %v509
          %511 = vmatmul.f32.gmra.mxu0 %v425
          %v512 = vpop.f32.mrf.mxu0
          %v513 = vadd.f32 0.0, %v512
          %514 = vmatmul.f32.gmra.mxu0 %v426
          %v515 = vpop.f32.mrf.mxu0
          %v516 = vadd.f32 0.0, %v515
          %517 = vmatmul.f32.gmra.mxu0 %v427
          %v518 = vpop.f32.mrf.mxu0
          %v519 = vadd.f32 0.0, %v518
          %520 = vmatmul.f32.gmra.mxu0 %v428
          %v521 = vpop.f32.mrf.mxu0
          %v522 = vadd.f32 0.0, %v521
          %523 = vmatmul.f32.gmra.mxu0 %v429
          %v524 = vpop.f32.mrf.mxu0
          %v525 = vadd.f32 0.0, %v524
          %526 = vmatmul.f32.gmra.mxu0 %v430
          %v527 = vpop.f32.mrf.mxu0
          %v528 = vadd.f32 0.0, %v527
          %529 = vmatmul.f32.gmra.mxu0 %v431
          %v530 = vpop.f32.mrf.mxu0
          %v531 = vadd.f32 0.0, %v530
          %532 = vmatmul.f32.gmra.mxu0 %v432
          %v533 = vpop.f32.mrf.mxu0
          %v534 = vadd.f32 0.0, %v533
          %535 = vmatmul.f32.gmra.mxu0 %v433
          %v536 = vpop.f32.mrf.mxu0
          %v537 = vadd.f32 0.0, %v536
          %538 = vmatmul.f32.gmra.mxu0 %v434
          %v539 = vpop.f32.mrf.mxu0
          %v540 = vadd.f32 0.0, %v539
          %541 = vmatmul.f32.gmra.mxu0 %v435
          %v542 = vpop.f32.mrf.mxu0
          %v543 = vadd.f32 0.0, %v542
          %544 = vmatmul.f32.gmra.mxu0 %v436
          %v545 = vpop.f32.mrf.mxu0
          %v546 = vadd.f32 0.0, %v545
          %547 = vmatmul.f32.gmra.mxu0 %v437
          %v548 = vpop.f32.mrf.mxu0
          %v549 = vadd.f32 0.0, %v548
          %550 = vmatmul.f32.gmra.mxu0 %v438
          %v551 = vpop.f32.mrf.mxu0
          %v552 = vadd.f32 0.0, %v551
          %553 = vmatmul.f32.gmra.mxu0 %v439
          %v554 = vpop.f32.mrf.mxu0
          %v555 = vadd.f32 0.0, %v554
          %556 = vmatmul.f32.gmra.mxu0 %v440
          %v557 = vpop.f32.mrf.mxu0
          %v558 = vadd.f32 0.0, %v557
          %559 = vmatmul.f32.gmra.mxu0 %v441
          %v560 = vpop.f32.mrf.mxu0
          %v561 = vadd.f32 0.0, %v560
          %562 = vmatmul.f32.gmra.mxu0 %v442
          %v563 = vpop.f32.mrf.mxu0
          %v564 = vadd.f32 0.0, %v563
          %565 = vmatmul.f32.gmra.mxu0 %v443
          %v566 = vpop.f32.mrf.mxu0
          %v567 = vadd.f32 0.0, %v566
          %568 = vmatmul.f32.gmra.mxu0 %v444
          %v569 = vpop.f32.mrf.mxu0
          %v570 = vadd.f32 0.0, %v569
          %571 = vmatmul.f32.gmra.mxu0 %v445
          %v572 = vpop.f32.mrf.mxu0
          %v573 = vadd.f32 0.0, %v572
          %574 = vmatmul.f32.gmra.mxu0 %v446
          %v575 = vpop.f32.mrf.mxu0
          %v576 = vadd.f32 0.0, %v575
          %577 = vmatmul.f32.gmra.mxu0 %v447
          %v578 = vpop.f32.mrf.mxu0
          %v579 = vadd.f32 0.0, %v578
          %580 = vmatmul.f32.gmra.mxu0 %v448
          %v581 = vpop.f32.mrf.mxu0
          %v582 = vadd.f32 0.0, %v581
          %583 = vmatmul.f32.gmra.mxu0 %v449
          %v584 = vpop.f32.mrf.mxu0
          %v585 = vadd.f32 0.0, %v584
          %586 = vmatmul.f32.gmra.mxu0 %v450
          %v587 = vpop.f32.mrf.mxu0
          %v588 = vadd.f32 0.0, %v587
          %589 = vmatmul.f32.gmra.mxu0 %v451
          %v590 = vpop.f32.mrf.mxu0
          %v591 = vadd.f32 0.0, %v590
          %592 = vmatmul.f32.gmra.mxu0 %v452
          %v593 = vpop.f32.mrf.mxu0
          %v594 = vadd.f32 0.0, %v593
          %595 = vmatmul.f32.gmra.mxu0 %v453
          %v596 = vpop.f32.mrf.mxu0
          %v597 = vadd.f32 0.0, %v596
          %598 = vdwg.mxu0
          %599 = vmatpush.msra.mxu0 %v485
          %600 = vmatpush.msra.mxu0 %v483
          %601 = vmatpush.msra.mxu0 %v481
          %602 = vmatpush.msra.mxu0 %v479
          %603 = vmatpush.msra.mxu0 %v477
          %604 = vmatpush.msra.mxu0 %v475
          %605 = vmatpush.msra.mxu0 %v473
          %606 = vmatpush.msra.mxu0 %v471
          %607 = vmatpush.msra.mxu0 %v469
          %608 = vmatpush.msra.mxu0 %v467
          %609 = vmatpush.msra.mxu0 %v465
          %610 = vmatpush.msra.mxu0 %v463
          %611 = vmatpush.msra.mxu0 %v461
          %612 = vmatpush.msra.mxu0 %v459
          %613 = vmatpush.msra.mxu0 %v457
          %614 = vmatpush.msra.mxu0 %v455
          %615 = vmatmul.f32.gmra.mxu0 %v422
          %v616 = vpop.f32.mrf.mxu0
          %v617 = vadd.f32 0.0, %v616
          %618 = vmatmul.f32.gmra.mxu0 %v423
          %v619 = vpop.f32.mrf.mxu0
          %v620 = vadd.f32 0.0, %v619
          %621 = vmatmul.f32.gmra.mxu0 %v424
          %v622 = vpop.f32.mrf.mxu0
          %v623 = vadd.f32 0.0, %v622
          %624 = vmatmul.f32.gmra.mxu0 %v425
          %v625 = vpop.f32.mrf.mxu0
          %v626 = vadd.f32 0.0, %v625
          %627 = vmatmul.f32.gmra.mxu0 %v426
          %v628 = vpop.f32.mrf.mxu0
          %v629 = vadd.f32 0.0, %v628
          %630 = vmatmul.f32.gmra.mxu0 %v427
          %v631 = vpop.f32.mrf.mxu0
          %v632 = vadd.f32 0.0, %v631
          %633 = vmatmul.f32.gmra.mxu0 %v428
          %v634 = vpop.f32.mrf.mxu0
          %v635 = vadd.f32 0.0, %v634
          %636 = vmatmul.f32.gmra.mxu0 %v429
          %v637 = vpop.f32.mrf.mxu0
          %v638 = vadd.f32 0.0, %v637
          %639 = vmatmul.f32.gmra.mxu0 %v430
          %v640 = vpop.f32.mrf.mxu0
          %v641 = vadd.f32 0.0, %v640
          %642 = vmatmul.f32.gmra.mxu0 %v431
          %v643 = vpop.f32.mrf.mxu0
          %v644 = vadd.f32 0.0, %v643
          %645 = vmatmul.f32.gmra.mxu0 %v432
          %v646 = vpop.f32.mrf.mxu0
          %v647 = vadd.f32 0.0, %v646
          %648 = vmatmul.f32.gmra.mxu0 %v433
          %v649 = vpop.f32.mrf.mxu0
          %v650 = vadd.f32 0.0, %v649
          %651 = vmatmul.f32.gmra.mxu0 %v434
          %v652 = vpop.f32.mrf.mxu0
          %v653 = vadd.f32 0.0, %v652
          %654 = vmatmul.f32.gmra.mxu0 %v435
          %v655 = vpop.f32.mrf.mxu0
          %v656 = vadd.f32 0.0, %v655
          %657 = vmatmul.f32.gmra.mxu0 %v436
          %v658 = vpop.f32.mrf.mxu0
          %v659 = vadd.f32 0.0, %v658
          %660 = vmatmul.f32.gmra.mxu0 %v437
          %v661 = vpop.f32.mrf.mxu0
          %v662 = vadd.f32 0.0, %v661
          %663 = vmatmul.f32.gmra.mxu0 %v438
          %v664 = vpop.f32.mrf.mxu0
          %v665 = vadd.f32 0.0, %v664
          %666 = vmatmul.f32.gmra.mxu0 %v439
          %v667 = vpop.f32.mrf.mxu0
          %v668 = vadd.f32 0.0, %v667
          %669 = vmatmul.f32.gmra.mxu0 %v440
          %v670 = vpop.f32.mrf.mxu0
          %v671 = vadd.f32 0.0, %v670
          %672 = vmatmul.f32.gmra.mxu0 %v441
          %v673 = vpop.f32.mrf.mxu0
          %v674 = vadd.f32 0.0, %v673
          %675 = vmatmul.f32.gmra.mxu0 %v442
          %v676 = vpop.f32.mrf.mxu0
          %v677 = vadd.f32 0.0, %v676
          %678 = vmatmul.f32.gmra.mxu0 %v443
          %v679 = vpop.f32.mrf.mxu0
          %v680 = vadd.f32 0.0, %v679
          %681 = vmatmul.f32.gmra.mxu0 %v444
          %v682 = vpop.f32.mrf.mxu0
          %v683 = vadd.f32 0.0, %v682
          %684 = vmatmul.f32.gmra.mxu0 %v445
          %v685 = vpop.f32.mrf.mxu0
          %v686 = vadd.f32 0.0, %v685
          %687 = vmatmul.f32.gmra.mxu0 %v446
          %v688 = vpop.f32.mrf.mxu0
          %v689 = vadd.f32 0.0, %v688
          %690 = vmatmul.f32.gmra.mxu0 %v447
          %v691 = vpop.f32.mrf.mxu0
          %v692 = vadd.f32 0.0, %v691
          %693 = vmatmul.f32.gmra.mxu0 %v448
          %v694 = vpop.f32.mrf.mxu0
          %v695 = vadd.f32 0.0, %v694
          %696 = vmatmul.f32.gmra.mxu0 %v449
          %v697 = vpop.f32.mrf.mxu0
          %v698 = vadd.f32 0.0, %v697
          %699 = vmatmul.f32.gmra.mxu0 %v450
          %v700 = vpop.f32.mrf.mxu0
          %v701 = vadd.f32 0.0, %v700
          %702 = vmatmul.f32.gmra.mxu0 %v451
          %v703 = vpop.f32.mrf.mxu0
          %v704 = vadd.f32 0.0, %v703
          %705 = vmatmul.f32.gmra.mxu0 %v452
          %v706 = vpop.f32.mrf.mxu0
          %v707 = vadd.f32 0.0, %v706
          %708 = vmatmul.f32.gmra.mxu0 %v453
          %v709 = vpop.f32.mrf.mxu0
          %v710 = vadd.f32 0.0, %v709
          %711 = vdwg.mxu0
          %712 = vst [vmem:[#allocation2] sm:$0xff] %v504
          %713 = vst [vmem:[#allocation2 + $0x8] sm:$0xff] %v617
          %714 = vst [vmem:[#allocation2 + $0x10] sm:$0xff] %v507
          %715 = vst [vmem:[#allocation2 + $0x18] sm:$0xff] %v620
          %716 = vst [vmem:[#allocation2 + $0x20] sm:$0xff] %v510
          %717 = vst [vmem:[#allocation2 + $0x28] sm:$0xff] %v623
          %718 = vst [vmem:[#allocation2 + $0x30] sm:$0xff] %v513
          %719 = vst [vmem:[#allocation2 + $0x38] sm:$0xff] %v626
          %720 = vst [vmem:[#allocation2 + $0x40] sm:$0xff] %v516
          %721 = vst [vmem:[#allocation2 + $0x48] sm:$0xff] %v629
          %722 = vst [vmem:[#allocation2 + $0x50] sm:$0xff] %v519
          %723 = vst [vmem:[#allocation2 + $0x58] sm:$0xff] %v632
          %724 = vst [vmem:[#allocation2 + $0x60] sm:$0xff] %v522
          %725 = vst [vmem:[#allocation2 + $0x68] sm:$0xff] %v635
          %726 = vst [vmem:[#allocation2 + $0x70] sm:$0xff] %v525
          %727 = vst [vmem:[#allocation2 + $0x78] sm:$0xff] %v638
          %728 = vst [vmem:[#allocation2 + $0x80] sm:$0xff] %v528
          %729 = vst [vmem:[#allocation2 + $0x88] sm:$0xff] %v641
          %730 = vst [vmem:[#allocation2 + $0x90] sm:$0xff] %v531
          %731 = vst [vmem:[#allocation2 + $0x98] sm:$0xff] %v644
          %732 = vst [vmem:[#allocation2 + $0xa0] sm:$0xff] %v534
          %733 = vst [vmem:[#allocation2 + $0xa8] sm:$0xff] %v647
          %734 = vst [vmem:[#allocation2 + $0xb0] sm:$0xff] %v537
          %735 = vst [vmem:[#allocation2 + $0xb8] sm:$0xff] %v650
          %736 = vst [vmem:[#allocation2 + $0xc0] sm:$0xff] %v540
          %737 = vst [vmem:[#allocation2 + $0xc8] sm:$0xff] %v653
          %738 = vst [vmem:[#allocation2 + $0xd0] sm:$0xff] %v543
          %739 = vst [vmem:[#allocation2 + $0xd8] sm:$0xff] %v656
          %740 = vst [vmem:[#allocation2 + $0xe0] sm:$0xff] %v546
          %741 = vst [vmem:[#allocation2 + $0xe8] sm:$0xff] %v659
          %742 = vst [vmem:[#allocation2 + $0xf0] sm:$0xff] %v549
          %743 = vst [vmem:[#allocation2 + $0xf8] sm:$0xff] %v662
          %744 = vst [vmem:[#allocation2 + $0x100] sm:$0xff] %v552
          %745 = vst [vmem:[#allocation2 + $0x108] sm:$0xff] %v665
          %746 = vst [vmem:[#allocation2 + $0x110] sm:$0xff] %v555
          %747 = vst [vmem:[#allocation2 + $0x118] sm:$0xff] %v668
          %748 = vst [vmem:[#allocation2 + $0x120] sm:$0xff] %v558
          %749 = vst [vmem:[#allocation2 + $0x128] sm:$0xff] %v671
          %750 = vst [vmem:[#allocation2 + $0x130] sm:$0xff] %v561
          %751 = vst [vmem:[#allocation2 + $0x138] sm:$0xff] %v674
          %752 = vst [vmem:[#allocation2 + $0x140] sm:$0xff] %v564
          %753 = vst [vmem:[#allocation2 + $0x148] sm:$0xff] %v677
          %754 = vst [vmem:[#allocation2 + $0x150] sm:$0xff] %v567
          %755 = vst [vmem:[#allocation2 + $0x158] sm:$0xff] %v680
          %756 = vst [vmem:[#allocation2 + $0x160] sm:$0xff] %v570
          %757 = vst [vmem:[#allocation2 + $0x168] sm:$0xff] %v683
          %758 = vst [vmem:[#allocation2 + $0x170] sm:$0xff] %v573
          %759 = vst [vmem:[#allocation2 + $0x178] sm:$0xff] %v686
          %760 = vst [vmem:[#allocation2 + $0x180] sm:$0xff] %v576
          %761 = vst [vmem:[#allocation2 + $0x188] sm:$0xff] %v689
          %762 = vst [vmem:[#allocation2 + $0x190] sm:$0xff] %v579
          %763 = vst [vmem:[#allocation2 + $0x198] sm:$0xff] %v692
          %764 = vst [vmem:[#allocation2 + $0x1a0] sm:$0xff] %v582
          %765 = vst [vmem:[#allocation2 + $0x1a8] sm:$0xff] %v695
          %766 = vst [vmem:[#allocation2 + $0x1b0] sm:$0xff] %v585
          %767 = vst [vmem:[#allocation2 + $0x1b8] sm:$0xff] %v698
          %768 = vst [vmem:[#allocation2 + $0x1c0] sm:$0xff] %v588
          %769 = vst [vmem:[#allocation2 + $0x1c8] sm:$0xff] %v701
          %770 = vst [vmem:[#allocation2 + $0x1d0] sm:$0xff] %v591
          %771 = vst [vmem:[#allocation2 + $0x1d8] sm:$0xff] %v704
          %772 = vst [vmem:[#allocation2 + $0x1e0] sm:$0xff] %v594
          %773 = vst [vmem:[#allocation2 + $0x1e8] sm:$0xff] %v707
          %774 = vst [vmem:[#allocation2 + $0x1f0] sm:$0xff] %v597
          %775 = vst [vmem:[#allocation2 + $0x1f8] sm:$0xff] %v710
        $region76: #{tpu_custom_call.1} parent=55 // pred_fallthru
          _
        %s776 = smul.u32 %s33, 256
        %s777 = sshra.s32 %s776, 7
        %s778 = sand.u32 %s776, 127
        %s779 = smul.addr %s777, 8
        %s780 = scalar_lea.vmem %s366, %s779 [#allocation3]
        %v781 = vld [vmem:[%s780] sm:$0xff]
        %v782 = vld [vmem:[%s780 + $0x8] sm:$0xff]
        %v783 = vld [vmem:[%s780 + $0x10] sm:$0xff]
        %v784 = vld [vmem:[%s780 + $0x18] sm:$0xff]
        %v785 = vld [vmem:[%s780 + $0x20] sm:$0xff]
        %v786 = vld [vmem:[%s780 + $0x28] sm:$0xff]
        %v787 = vld [vmem:[%s780 + $0x30] sm:$0xff]
        %v788 = vld [vmem:[%s780 + $0x38] sm:$0xff]
        %v789 = vld [vmem:[%s780 + $0x40] sm:$0xff]
        %v790 = vld [vmem:[%s780 + $0x48] sm:$0xff]
        %v791 = vld [vmem:[%s780 + $0x50] sm:$0xff]
        %v792 = vld [vmem:[%s780 + $0x58] sm:$0xff]
        %v793 = vld [vmem:[%s780 + $0x60] sm:$0xff]
        %v794 = vld [vmem:[%s780 + $0x68] sm:$0xff]
        %v795 = vld [vmem:[%s780 + $0x70] sm:$0xff]
        %v796 = vld [vmem:[%s780 + $0x78] sm:$0xff]
        %v797 = vld [vmem:[%s780 + $0x80] sm:$0xff]
        %v798 = vld [vmem:[%s780 + $0x88] sm:$0xff]
        %v799 = vld [vmem:[%s780 + $0x90] sm:$0xff]
        %v800 = vld [vmem:[%s780 + $0x98] sm:$0xff]
        %v801 = vld [vmem:[%s780 + $0xa0] sm:$0xff]
        %v802 = vld [vmem:[%s780 + $0xa8] sm:$0xff]
        %v803 = vld [vmem:[%s780 + $0xb0] sm:$0xff]
        %v804 = vld [vmem:[%s780 + $0xb8] sm:$0xff]
        %v805 = vld [vmem:[%s780 + $0xc0] sm:$0xff]
        %v806 = vld [vmem:[%s780 + $0xc8] sm:$0xff]
        %v807 = vld [vmem:[%s780 + $0xd0] sm:$0xff]
        %v808 = vld [vmem:[%s780 + $0xd8] sm:$0xff]
        %v809 = vld [vmem:[%s780 + $0xe0] sm:$0xff]
        %v810 = vld [vmem:[%s780 + $0xe8] sm:$0xff]
        %v811 = vld [vmem:[%s780 + $0xf0] sm:$0xff]
        %v812 = vld [vmem:[%s780 + $0xf8] sm:$0xff]
        %v813 = vld [vmem:[%s1] sm:$0xff]
        %v814 = vld [vmem:[%s1 + $0x8] sm:$0xff]
        %v815 = vld [vmem:[%s1 + $0x10] sm:$0xff]
        %v816 = vld [vmem:[%s1 + $0x18] sm:$0xff]
        %v817 = vld [vmem:[%s1 + $0x20] sm:$0xff]
        %v818 = vld [vmem:[%s1 + $0x28] sm:$0xff]
        %v819 = vld [vmem:[%s1 + $0x30] sm:$0xff]
        %v820 = vld [vmem:[%s1 + $0x38] sm:$0xff]
        %v821 = vld [vmem:[%s1 + $0x40] sm:$0xff]
        %v822 = vld [vmem:[%s1 + $0x48] sm:$0xff]
        %v823 = vld [vmem:[%s1 + $0x50] sm:$0xff]
        %v824 = vld [vmem:[%s1 + $0x58] sm:$0xff]
        %v825 = vld [vmem:[%s1 + $0x60] sm:$0xff]
        %v826 = vld [vmem:[%s1 + $0x68] sm:$0xff]
        %v827 = vld [vmem:[%s1 + $0x70] sm:$0xff]
        %v828 = vld [vmem:[%s1 + $0x78] sm:$0xff]
        %829 = vmatpush.msra.mxu0 %v811
        %830 = vmatpush.msra.mxu0 %v809
        %831 = vmatpush.msra.mxu0 %v807
        %832 = vmatpush.msra.mxu0 %v805
        %833 = vmatpush.msra.mxu0 %v803
        %834 = vmatpush.msra.mxu0 %v801
        %835 = vmatpush.msra.mxu0 %v799
        %836 = vmatpush.msra.mxu0 %v797
        %837 = vmatpush.msra.mxu0 %v795
        %838 = vmatpush.msra.mxu0 %v793
        %839 = vmatpush.msra.mxu0 %v791
        %840 = vmatpush.msra.mxu0 %v789
        %841 = vmatpush.msra.mxu0 %v787
        %842 = vmatpush.msra.mxu0 %v785
        %843 = vmatpush.msra.mxu0 %v783
        %844 = vmatpush.msra.mxu0 %v781
        %845 = vmatmul.f32.gmra.mxu0 %v813
        %v846 = vpop.f32.mrf.mxu0
        %v847 = vadd.f32 0.0, %v846
        %848 = vmatmul.f32.gmra.mxu0 %v814
        %v849 = vpop.f32.mrf.mxu0
        %v850 = vadd.f32 0.0, %v849
        %851 = vmatmul.f32.gmra.mxu0 %v815
        %v852 = vpop.f32.mrf.mxu0
        %v853 = vadd.f32 0.0, %v852
        %854 = vmatmul.f32.gmra.mxu0 %v816
        %v855 = vpop.f32.mrf.mxu0
        %v856 = vadd.f32 0.0, %v855
        %857 = vmatmul.f32.gmra.mxu0 %v817
        %v858 = vpop.f32.mrf.mxu0
        %v859 = vadd.f32 0.0, %v858
        %860 = vmatmul.f32.gmra.mxu0 %v818
        %v861 = vpop.f32.mrf.mxu0
        %v862 = vadd.f32 0.0, %v861
        %863 = vmatmul.f32.gmra.mxu0 %v819
        %v864 = vpop.f32.mrf.mxu0
        %v865 = vadd.f32 0.0, %v864
        %866 = vmatmul.f32.gmra.mxu0 %v820
        %v867 = vpop.f32.mrf.mxu0
        %v868 = vadd.f32 0.0, %v867
        %869 = vmatmul.f32.gmra.mxu0 %v821
        %v870 = vpop.f32.mrf.mxu0
        %v871 = vadd.f32 0.0, %v870
        %872 = vmatmul.f32.gmra.mxu0 %v822
        %v873 = vpop.f32.mrf.mxu0
        %v874 = vadd.f32 0.0, %v873
        %875 = vmatmul.f32.gmra.mxu0 %v823
        %v876 = vpop.f32.mrf.mxu0
        %v877 = vadd.f32 0.0, %v876
        %878 = vmatmul.f32.gmra.mxu0 %v824
        %v879 = vpop.f32.mrf.mxu0
        %v880 = vadd.f32 0.0, %v879
        %881 = vmatmul.f32.gmra.mxu0 %v825
        %v882 = vpop.f32.mrf.mxu0
        %v883 = vadd.f32 0.0, %v882
        %884 = vmatmul.f32.gmra.mxu0 %v826
        %v885 = vpop.f32.mrf.mxu0
        %v886 = vadd.f32 0.0, %v885
        %887 = vmatmul.f32.gmra.mxu0 %v827
        %v888 = vpop.f32.mrf.mxu0
        %v889 = vadd.f32 0.0, %v888
        %890 = vmatmul.f32.gmra.mxu0 %v828
        %v891 = vpop.f32.mrf.mxu0
        %v892 = vadd.f32 0.0, %v891
        %893 = vdwg.mxu0
        %894 = vmatpush.msra.mxu0 %v812
        %895 = vmatpush.msra.mxu0 %v810
        %896 = vmatpush.msra.mxu0 %v808
        %897 = vmatpush.msra.mxu0 %v806
        %898 = vmatpush.msra.mxu0 %v804
        %899 = vmatpush.msra.mxu0 %v802
        %900 = vmatpush.msra.mxu0 %v800
        %901 = vmatpush.msra.mxu0 %v798
        %902 = vmatpush.msra.mxu0 %v796
        %903 = vmatpush.msra.mxu0 %v794
        %904 = vmatpush.msra.mxu0 %v792
        %905 = vmatpush.msra.mxu0 %v790
        %906 = vmatpush.msra.mxu0 %v788
        %907 = vmatpush.msra.mxu0 %v786
        %908 = vmatpush.msra.mxu0 %v784
        %909 = vmatpush.msra.mxu0 %v782
        %910 = vmatmul.f32.gmra.mxu0 %v813
        %v911 = vpop.f32.mrf.mxu0
        %v912 = vadd.f32 0.0, %v911
        %913 = vmatmul.f32.gmra.mxu0 %v814
        %v914 = vpop.f32.mrf.mxu0
        %v915 = vadd.f32 0.0, %v914
        %916 = vmatmul.f32.gmra.mxu0 %v815
        %v917 = vpop.f32.mrf.mxu0
        %v918 = vadd.f32 0.0, %v917
        %919 = vmatmul.f32.gmra.mxu0 %v816
        %v920 = vpop.f32.mrf.mxu0
        %v921 = vadd.f32 0.0, %v920
        %922 = vmatmul.f32.gmra.mxu0 %v817
        %v923 = vpop.f32.mrf.mxu0
        %v924 = vadd.f32 0.0, %v923
        %925 = vmatmul.f32.gmra.mxu0 %v818
        %v926 = vpop.f32.mrf.mxu0
        %v927 = vadd.f32 0.0, %v926
        %928 = vmatmul.f32.gmra.mxu0 %v819
        %v929 = vpop.f32.mrf.mxu0
        %v930 = vadd.f32 0.0, %v929
        %931 = vmatmul.f32.gmra.mxu0 %v820
        %v932 = vpop.f32.mrf.mxu0
        %v933 = vadd.f32 0.0, %v932
        %934 = vmatmul.f32.gmra.mxu0 %v821
        %v935 = vpop.f32.mrf.mxu0
        %v936 = vadd.f32 0.0, %v935
        %937 = vmatmul.f32.gmra.mxu0 %v822
        %v938 = vpop.f32.mrf.mxu0
        %v939 = vadd.f32 0.0, %v938
        %940 = vmatmul.f32.gmra.mxu0 %v823
        %v941 = vpop.f32.mrf.mxu0
        %v942 = vadd.f32 0.0, %v941
        %943 = vmatmul.f32.gmra.mxu0 %v824
        %v944 = vpop.f32.mrf.mxu0
        %v945 = vadd.f32 0.0, %v944
        %946 = vmatmul.f32.gmra.mxu0 %v825
        %v947 = vpop.f32.mrf.mxu0
        %v948 = vadd.f32 0.0, %v947
        %949 = vmatmul.f32.gmra.mxu0 %v826
        %v950 = vpop.f32.mrf.mxu0
        %v951 = vadd.f32 0.0, %v950
        %952 = vmatmul.f32.gmra.mxu0 %v827
        %v953 = vpop.f32.mrf.mxu0
        %v954 = vadd.f32 0.0, %v953
        %955 = vmatmul.f32.gmra.mxu0 %v828
        %v956 = vpop.f32.mrf.mxu0
        %v957 = vadd.f32 0.0, %v956
        %958 = vdwg.mxu0
        %v959 = vld [vmem:[#allocation2] sm:$0xff]
        %v960 = vld [vmem:[#allocation2 + $0x8] sm:$0xff]
        %v961 = vld [vmem:[#allocation2 + $0x10] sm:$0xff]
        %v962 = vld [vmem:[#allocation2 + $0x18] sm:$0xff]
        %v963 = vld [vmem:[#allocation2 + $0x20] sm:$0xff]
        %v964 = vld [vmem:[#allocation2 + $0x28] sm:$0xff]
        %v965 = vld [vmem:[#allocation2 + $0x30] sm:$0xff]
        %v966 = vld [vmem:[#allocation2 + $0x38] sm:$0xff]
        %v967 = vld [vmem:[#allocation2 + $0x40] sm:$0xff]
        %v968 = vld [vmem:[#allocation2 + $0x48] sm:$0xff]
        %v969 = vld [vmem:[#allocation2 + $0x50] sm:$0xff]
        %v970 = vld [vmem:[#allocation2 + $0x58] sm:$0xff]
        %v971 = vld [vmem:[#allocation2 + $0x60] sm:$0xff]
        %v972 = vld [vmem:[#allocation2 + $0x68] sm:$0xff]
        %v973 = vld [vmem:[#allocation2 + $0x70] sm:$0xff]
        %v974 = vld [vmem:[#allocation2 + $0x78] sm:$0xff]
        %v975 = vld [vmem:[#allocation2 + $0x100] sm:$0xff]
        %v976 = vld [vmem:[#allocation2 + $0x108] sm:$0xff]
        %v977 = vld [vmem:[#allocation2 + $0x110] sm:$0xff]
        %v978 = vld [vmem:[#allocation2 + $0x118] sm:$0xff]
        %v979 = vld [vmem:[#allocation2 + $0x120] sm:$0xff]
        %v980 = vld [vmem:[#allocation2 + $0x128] sm:$0xff]
        %v981 = vld [vmem:[#allocation2 + $0x130] sm:$0xff]
        %v982 = vld [vmem:[#allocation2 + $0x138] sm:$0xff]
        %v983 = vld [vmem:[#allocation2 + $0x140] sm:$0xff]
        %v984 = vld [vmem:[#allocation2 + $0x148] sm:$0xff]
        %v985 = vld [vmem:[#allocation2 + $0x150] sm:$0xff]
        %v986 = vld [vmem:[#allocation2 + $0x158] sm:$0xff]
        %v987 = vld [vmem:[#allocation2 + $0x160] sm:$0xff]
        %v988 = vld [vmem:[#allocation2 + $0x168] sm:$0xff]
        %v989 = vld [vmem:[#allocation2 + $0x170] sm:$0xff]
        %v990 = vld [vmem:[#allocation2 + $0x178] sm:$0xff]
        %991 = vxpose.xlu0.b32.start [1/16] %v847, 128
        %992 = vxpose.xlu0.b32.cont [2/16] %v850, 128
        %993 = vxpose.xlu0.b32.cont [3/16] %v853, 128
        %994 = vxpose.xlu0.b32.cont [4/16] %v856, 128
        %995 = vxpose.xlu0.b32.cont [5/16] %v859, 128
        %996 = vxpose.xlu0.b32.cont [6/16] %v862, 128
        %997 = vxpose.xlu0.b32.cont [7/16] %v865, 128
        %998 = vxpose.xlu0.b32.cont [8/16] %v868, 128
        %999 = vxpose.xlu0.b32.cont [9/16] 0.0, 128
        %1000 = vxpose.xlu0.b32.cont [10/16] 0.0, 128
        %1001 = vxpose.xlu0.b32.cont [11/16] 0.0, 128
        %1002 = vxpose.xlu0.b32.cont [12/16] 0.0, 128
        %1003 = vxpose.xlu0.b32.cont [13/16] 0.0, 128
        %1004 = vxpose.xlu0.b32.cont [14/16] 0.0, 128
        %1005 = vxpose.xlu0.b32.cont [15/16] 0.0, 128
        %1006 = vxpose.xlu0.b32.end [16/16] 0.0, 128
        %v1007 = vpop.trf.xlu0
        %v1008 = vpop.trf.xlu0
        %v1009 = vpop.trf.xlu0
        %v1010 = vpop.trf.xlu0
        %v1011 = vpop.trf.xlu0
        %v1012 = vpop.trf.xlu0
        %v1013 = vpop.trf.xlu0
        %v1014 = vpop.trf.xlu0
        %v1015 = vpop.trf.xlu0
        %v1016 = vpop.trf.xlu0
        %v1017 = vpop.trf.xlu0
        %v1018 = vpop.trf.xlu0
        %v1019 = vpop.trf.xlu0
        %v1020 = vpop.trf.xlu0
        %v1021 = vpop.trf.xlu0
        %v1022 = vpop.trf.xlu0
        %1023 = vxpose.xlu0.b32.start [1/16] %v912, 128
        %1024 = vxpose.xlu0.b32.cont [2/16] %v915, 128
        %1025 = vxpose.xlu0.b32.cont [3/16] %v918, 128
        %1026 = vxpose.xlu0.b32.cont [4/16] %v921, 128
        %1027 = vxpose.xlu0.b32.cont [5/16] %v924, 128
        %1028 = vxpose.xlu0.b32.cont [6/16] %v927, 128
        %1029 = vxpose.xlu0.b32.cont [7/16] %v930, 128
        %1030 = vxpose.xlu0.b32.cont [8/16] %v933, 128
        %1031 = vxpose.xlu0.b32.cont [9/16] 0.0, 128
        %1032 = vxpose.xlu0.b32.cont [10/16] 0.0, 128
        %1033 = vxpose.xlu0.b32.cont [11/16] 0.0, 128
        %1034 = vxpose.xlu0.b32.cont [12/16] 0.0, 128
        %1035 = vxpose.xlu0.b32.cont [13/16] 0.0, 128
        %1036 = vxpose.xlu0.b32.cont [14/16] 0.0, 128
        %1037 = vxpose.xlu0.b32.cont [15/16] 0.0, 128
        %1038 = vxpose.xlu0.b32.end [16/16] 0.0, 128
        %v1039 = vpop.trf.xlu0
        %v1040 = vpop.trf.xlu0
        %v1041 = vpop.trf.xlu0
        %v1042 = vpop.trf.xlu0
        %v1043 = vpop.trf.xlu0
        %v1044 = vpop.trf.xlu0
        %v1045 = vpop.trf.xlu0
        %v1046 = vpop.trf.xlu0
        %v1047 = vpop.trf.xlu0
        %v1048 = vpop.trf.xlu0
        %v1049 = vpop.trf.xlu0
        %v1050 = vpop.trf.xlu0
        %v1051 = vpop.trf.xlu0
        %v1052 = vpop.trf.xlu0
        %v1053 = vpop.trf.xlu0
        %v1054 = vpop.trf.xlu0
        %vm1055 = vcmask 523264
        %v1057 = vsel %vm1055, %v1007, 0
        %v1060 = vsel %vm1055, %v1008, 0
        %v1063 = vsel %vm1055, %v1009, 0
        %v1066 = vsel %vm1055, %v1010, 0
        %v1069 = vsel %vm1055, %v1011, 0
        %v1072 = vsel %vm1055, %v1012, 0
        %v1075 = vsel %vm1055, %v1013, 0
        %v1078 = vsel %vm1055, %v1014, 0
        %v1081 = vsel %vm1055, %v1015, 0
        %v1084 = vsel %vm1055, %v1016, 0
        %v1087 = vsel %vm1055, %v1017, 0
        %v1090 = vsel %vm1055, %v1018, 0
        %v1093 = vsel %vm1055, %v1019, 0
        %v1096 = vsel %vm1055, %v1020, 0
        %v1099 = vsel %vm1055, %v1021, 0
        %v1102 = vsel %vm1055, %v1022, 0
        %v1105 = vsel %vm1055, %v1039, 0
        %v1108 = vsel %vm1055, %v1040, 0
        %v1111 = vsel %vm1055, %v1041, 0
        %v1114 = vsel %vm1055, %v1042, 0
        %v1117 = vsel %vm1055, %v1043, 0
        %v1120 = vsel %vm1055, %v1044, 0
        %v1123 = vsel %vm1055, %v1045, 0
        %v1126 = vsel %vm1055, %v1046, 0
        %v1129 = vsel %vm1055, %v1047, 0
        %v1132 = vsel %vm1055, %v1048, 0
        %v1135 = vsel %vm1055, %v1049, 0
        %v1138 = vsel %vm1055, %v1050, 0
        %v1141 = vsel %vm1055, %v1051, 0
        %v1144 = vsel %vm1055, %v1052, 0
        %v1147 = vsel %vm1055, %v1053, 0
        %v1150 = vsel %vm1055, %v1054, 0
        %1152 = vmatpush.msra.mxu0 0.0
        %1153 = vmatpush.msra.mxu0 0.0
        %1154 = vmatpush.msra.mxu0 0.0
        %1155 = vmatpush.msra.mxu0 0.0
        %1156 = vmatpush.msra.mxu0 0.0
        %1157 = vmatpush.msra.mxu0 0.0
        %1158 = vmatpush.msra.mxu0 0.0
        %1159 = vmatpush.msra.mxu0 0.0
        %1160 = vmatpush.msra.mxu0 %v973
        %1161 = vmatpush.msra.mxu0 %v971
        %1162 = vmatpush.msra.mxu0 %v969
        %1163 = vmatpush.msra.mxu0 %v967
        %1164 = vmatpush.msra.mxu0 %v965
        %1165 = vmatpush.msra.mxu0 %v963
        %1166 = vmatpush.msra.mxu0 %v961
        %1167 = vmatpush.msra.mxu0 %v959
        %1168 = vmatmul.f32.gmra.mxu0 %v1057
        %v1169 = vpop.f32.mrf.mxu0
        %v1170 = vadd.f32 0.0, %v1169
        %1171 = vmatmul.f32.gmra.mxu0 %v1060
        %v1172 = vpop.f32.mrf.mxu0
        %v1173 = vadd.f32 0.0, %v1172
        %1174 = vmatmul.f32.gmra.mxu0 %v1063
        %v1175 = vpop.f32.mrf.mxu0
        %v1176 = vadd.f32 0.0, %v1175
        %1177 = vmatmul.f32.gmra.mxu0 %v1066
        %v1178 = vpop.f32.mrf.mxu0
        %v1179 = vadd.f32 0.0, %v1178
        %1180 = vmatmul.f32.gmra.mxu0 %v1069
        %v1181 = vpop.f32.mrf.mxu0
        %v1182 = vadd.f32 0.0, %v1181
        %1183 = vmatmul.f32.gmra.mxu0 %v1072
        %v1184 = vpop.f32.mrf.mxu0
        %v1185 = vadd.f32 0.0, %v1184
        %1186 = vmatmul.f32.gmra.mxu0 %v1075
        %v1187 = vpop.f32.mrf.mxu0
        %v1188 = vadd.f32 0.0, %v1187
        %1189 = vmatmul.f32.gmra.mxu0 %v1078
        %v1190 = vpop.f32.mrf.mxu0
        %v1191 = vadd.f32 0.0, %v1190
        %1192 = vmatmul.f32.gmra.mxu0 %v1081
        %v1193 = vpop.f32.mrf.mxu0
        %v1194 = vadd.f32 0.0, %v1193
        %1195 = vmatmul.f32.gmra.mxu0 %v1084
        %v1196 = vpop.f32.mrf.mxu0
        %v1197 = vadd.f32 0.0, %v1196
        %1198 = vmatmul.f32.gmra.mxu0 %v1087
        %v1199 = vpop.f32.mrf.mxu0
        %v1200 = vadd.f32 0.0, %v1199
        %1201 = vmatmul.f32.gmra.mxu0 %v1090
        %v1202 = vpop.f32.mrf.mxu0
        %v1203 = vadd.f32 0.0, %v1202
        %1204 = vmatmul.f32.gmra.mxu0 %v1093
        %v1205 = vpop.f32.mrf.mxu0
        %v1206 = vadd.f32 0.0, %v1205
        %1207 = vmatmul.f32.gmra.mxu0 %v1096
        %v1208 = vpop.f32.mrf.mxu0
        %v1209 = vadd.f32 0.0, %v1208
        %1210 = vmatmul.f32.gmra.mxu0 %v1099
        %v1211 = vpop.f32.mrf.mxu0
        %v1212 = vadd.f32 0.0, %v1211
        %1213 = vmatmul.f32.gmra.mxu0 %v1102
        %v1214 = vpop.f32.mrf.mxu0
        %v1215 = vadd.f32 0.0, %v1214
        %1216 = vmatmul.f32.gmra.mxu0 %v1105
        %v1217 = vpop.f32.mrf.mxu0
        %v1218 = vadd.f32 0.0, %v1217
        %1219 = vmatmul.f32.gmra.mxu0 %v1108
        %v1220 = vpop.f32.mrf.mxu0
        %v1221 = vadd.f32 0.0, %v1220
        %1222 = vmatmul.f32.gmra.mxu0 %v1111
        %v1223 = vpop.f32.mrf.mxu0
        %v1224 = vadd.f32 0.0, %v1223
        %1225 = vmatmul.f32.gmra.mxu0 %v1114
        %v1226 = vpop.f32.mrf.mxu0
        %v1227 = vadd.f32 0.0, %v1226
        %1228 = vmatmul.f32.gmra.mxu0 %v1117
        %v1229 = vpop.f32.mrf.mxu0
        %v1230 = vadd.f32 0.0, %v1229
        %1231 = vmatmul.f32.gmra.mxu0 %v1120
        %v1232 = vpop.f32.mrf.mxu0
        %v1233 = vadd.f32 0.0, %v1232
        %1234 = vmatmul.f32.gmra.mxu0 %v1123
        %v1235 = vpop.f32.mrf.mxu0
        %v1236 = vadd.f32 0.0, %v1235
        %1237 = vmatmul.f32.gmra.mxu0 %v1126
        %v1238 = vpop.f32.mrf.mxu0
        %v1239 = vadd.f32 0.0, %v1238
        %1240 = vmatmul.f32.gmra.mxu0 %v1129
        %v1241 = vpop.f32.mrf.mxu0
        %v1242 = vadd.f32 0.0, %v1241
        %1243 = vmatmul.f32.gmra.mxu0 %v1132
        %v1244 = vpop.f32.mrf.mxu0
        %v1245 = vadd.f32 0.0, %v1244
        %1246 = vmatmul.f32.gmra.mxu0 %v1135
        %v1247 = vpop.f32.mrf.mxu0
        %v1248 = vadd.f32 0.0, %v1247
        %1249 = vmatmul.f32.gmra.mxu0 %v1138
        %v1250 = vpop.f32.mrf.mxu0
        %v1251 = vadd.f32 0.0, %v1250
        %1252 = vmatmul.f32.gmra.mxu0 %v1141
        %v1253 = vpop.f32.mrf.mxu0
        %v1254 = vadd.f32 0.0, %v1253
        %1255 = vmatmul.f32.gmra.mxu0 %v1144
        %v1256 = vpop.f32.mrf.mxu0
        %v1257 = vadd.f32 0.0, %v1256
        %1258 = vmatmul.f32.gmra.mxu0 %v1147
        %v1259 = vpop.f32.mrf.mxu0
        %v1260 = vadd.f32 0.0, %v1259
        %1261 = vmatmul.f32.gmra.mxu0 %v1150
        %v1262 = vpop.f32.mrf.mxu0
        %v1263 = vadd.f32 0.0, %v1262
        %1264 = vdwg.mxu0
        %1265 = vmatpush.msra.mxu0 0.0
        %1266 = vmatpush.msra.mxu0 0.0
        %1267 = vmatpush.msra.mxu0 0.0
        %1268 = vmatpush.msra.mxu0 0.0
        %1269 = vmatpush.msra.mxu0 0.0
        %1270 = vmatpush.msra.mxu0 0.0
        %1271 = vmatpush.msra.mxu0 0.0
        %1272 = vmatpush.msra.mxu0 0.0
        %1273 = vmatpush.msra.mxu0 %v974
        %1274 = vmatpush.msra.mxu0 %v972
        %1275 = vmatpush.msra.mxu0 %v970
        %1276 = vmatpush.msra.mxu0 %v968
        %1277 = vmatpush.msra.mxu0 %v966
        %1278 = vmatpush.msra.mxu0 %v964
        %1279 = vmatpush.msra.mxu0 %v962
        %1280 = vmatpush.msra.mxu0 %v960
        %1281 = vmatmul.f32.gmra.mxu0 %v1057
        %v1282 = vpop.f32.mrf.mxu0
        %v1283 = vadd.f32 0.0, %v1282
        %1284 = vmatmul.f32.gmra.mxu0 %v1060
        %v1285 = vpop.f32.mrf.mxu0
        %v1286 = vadd.f32 0.0, %v1285
        %1287 = vmatmul.f32.gmra.mxu0 %v1063
        %v1288 = vpop.f32.mrf.mxu0
        %v1289 = vadd.f32 0.0, %v1288
        %1290 = vmatmul.f32.gmra.mxu0 %v1066
        %v1291 = vpop.f32.mrf.mxu0
        %v1292 = vadd.f32 0.0, %v1291
        %1293 = vmatmul.f32.gmra.mxu0 %v1069
        %v1294 = vpop.f32.mrf.mxu0
        %v1295 = vadd.f32 0.0, %v1294
        %1296 = vmatmul.f32.gmra.mxu0 %v1072
        %v1297 = vpop.f32.mrf.mxu0
        %v1298 = vadd.f32 0.0, %v1297
        %1299 = vmatmul.f32.gmra.mxu0 %v1075
        %v1300 = vpop.f32.mrf.mxu0
        %v1301 = vadd.f32 0.0, %v1300
        %1302 = vmatmul.f32.gmra.mxu0 %v1078
        %v1303 = vpop.f32.mrf.mxu0
        %v1304 = vadd.f32 0.0, %v1303
        %1305 = vmatmul.f32.gmra.mxu0 %v1081
        %v1306 = vpop.f32.mrf.mxu0
        %v1307 = vadd.f32 0.0, %v1306
        %1308 = vmatmul.f32.gmra.mxu0 %v1084
        %v1309 = vpop.f32.mrf.mxu0
        %v1310 = vadd.f32 0.0, %v1309
        %1311 = vmatmul.f32.gmra.mxu0 %v1087
        %v1312 = vpop.f32.mrf.mxu0
        %v1313 = vadd.f32 0.0, %v1312
        %1314 = vmatmul.f32.gmra.mxu0 %v1090
        %v1315 = vpop.f32.mrf.mxu0
        %v1316 = vadd.f32 0.0, %v1315
        %1317 = vmatmul.f32.gmra.mxu0 %v1093
        %v1318 = vpop.f32.mrf.mxu0
        %v1319 = vadd.f32 0.0, %v1318
        %1320 = vmatmul.f32.gmra.mxu0 %v1096
        %v1321 = vpop.f32.mrf.mxu0
        %v1322 = vadd.f32 0.0, %v1321
        %1323 = vmatmul.f32.gmra.mxu0 %v1099
        %v1324 = vpop.f32.mrf.mxu0
        %v1325 = vadd.f32 0.0, %v1324
        %1326 = vmatmul.f32.gmra.mxu0 %v1102
        %v1327 = vpop.f32.mrf.mxu0
        %v1328 = vadd.f32 0.0, %v1327
        %1329 = vmatmul.f32.gmra.mxu0 %v1105
        %v1330 = vpop.f32.mrf.mxu0
        %v1331 = vadd.f32 0.0, %v1330
        %1332 = vmatmul.f32.gmra.mxu0 %v1108
        %v1333 = vpop.f32.mrf.mxu0
        %v1334 = vadd.f32 0.0, %v1333
        %1335 = vmatmul.f32.gmra.mxu0 %v1111
        %v1336 = vpop.f32.mrf.mxu0
        %v1337 = vadd.f32 0.0, %v1336
        %1338 = vmatmul.f32.gmra.mxu0 %v1114
        %v1339 = vpop.f32.mrf.mxu0
        %v1340 = vadd.f32 0.0, %v1339
        %1341 = vmatmul.f32.gmra.mxu0 %v1117
        %v1342 = vpop.f32.mrf.mxu0
        %v1343 = vadd.f32 0.0, %v1342
        %1344 = vmatmul.f32.gmra.mxu0 %v1120
        %v1345 = vpop.f32.mrf.mxu0
        %v1346 = vadd.f32 0.0, %v1345
        %1347 = vmatmul.f32.gmra.mxu0 %v1123
        %v1348 = vpop.f32.mrf.mxu0
        %v1349 = vadd.f32 0.0, %v1348
        %1350 = vmatmul.f32.gmra.mxu0 %v1126
        %v1351 = vpop.f32.mrf.mxu0
        %v1352 = vadd.f32 0.0, %v1351
        %1353 = vmatmul.f32.gmra.mxu0 %v1129
        %v1354 = vpop.f32.mrf.mxu0
        %v1355 = vadd.f32 0.0, %v1354
        %1356 = vmatmul.f32.gmra.mxu0 %v1132
        %v1357 = vpop.f32.mrf.mxu0
        %v1358 = vadd.f32 0.0, %v1357
        %1359 = vmatmul.f32.gmra.mxu0 %v1135
        %v1360 = vpop.f32.mrf.mxu0
        %v1361 = vadd.f32 0.0, %v1360
        %1362 = vmatmul.f32.gmra.mxu0 %v1138
        %v1363 = vpop.f32.mrf.mxu0
        %v1364 = vadd.f32 0.0, %v1363
        %1365 = vmatmul.f32.gmra.mxu0 %v1141
        %v1366 = vpop.f32.mrf.mxu0
        %v1367 = vadd.f32 0.0, %v1366
        %1368 = vmatmul.f32.gmra.mxu0 %v1144
        %v1369 = vpop.f32.mrf.mxu0
        %v1370 = vadd.f32 0.0, %v1369
        %1371 = vmatmul.f32.gmra.mxu0 %v1147
        %v1372 = vpop.f32.mrf.mxu0
        %v1373 = vadd.f32 0.0, %v1372
        %1374 = vmatmul.f32.gmra.mxu0 %v1150
        %v1375 = vpop.f32.mrf.mxu0
        %v1376 = vadd.f32 0.0, %v1375
        %1377 = vdwg.mxu0
        %v1378 = vmax.f32 %v1170, %v1283
        %1379 = vmax.xlane.f32.xlu0 %v1378
        %v1380 = vpop.xlane.xlu0 %1379
        %v1381 = vmax.f32 %v1173, %v1286
        %1382 = vmax.xlane.f32.xlu0 %v1381
        %v1383 = vpop.xlane.xlu0 %1382
        %v1384 = vmax.f32 %v1176, %v1289
        %1385 = vmax.xlane.f32.xlu0 %v1384
        %v1386 = vpop.xlane.xlu0 %1385
        %v1387 = vmax.f32 %v1179, %v1292
        %1388 = vmax.xlane.f32.xlu0 %v1387
        %v1389 = vpop.xlane.xlu0 %1388
        %v1390 = vmax.f32 %v1182, %v1295
        %1391 = vmax.xlane.f32.xlu0 %v1390
        %v1392 = vpop.xlane.xlu0 %1391
        %v1393 = vmax.f32 %v1185, %v1298
        %1394 = vmax.xlane.f32.xlu0 %v1393
        %v1395 = vpop.xlane.xlu0 %1394
        %v1396 = vmax.f32 %v1188, %v1301
        %1397 = vmax.xlane.f32.xlu0 %v1396
        %v1398 = vpop.xlane.xlu0 %1397
        %v1399 = vmax.f32 %v1191, %v1304
        %1400 = vmax.xlane.f32.xlu0 %v1399
        %v1401 = vpop.xlane.xlu0 %1400
        %v1402 = vmax.f32 %v1194, %v1307
        %1403 = vmax.xlane.f32.xlu0 %v1402
        %v1404 = vpop.xlane.xlu0 %1403
        %v1405 = vmax.f32 %v1197, %v1310
        %1406 = vmax.xlane.f32.xlu0 %v1405
        %v1407 = vpop.xlane.xlu0 %1406
        %v1408 = vmax.f32 %v1200, %v1313
        %1409 = vmax.xlane.f32.xlu0 %v1408
        %v1410 = vpop.xlane.xlu0 %1409
        %v1411 = vmax.f32 %v1203, %v1316
        %1412 = vmax.xlane.f32.xlu0 %v1411
        %v1413 = vpop.xlane.xlu0 %1412
        %v1414 = vmax.f32 %v1206, %v1319
        %1415 = vmax.xlane.f32.xlu0 %v1414
        %v1416 = vpop.xlane.xlu0 %1415
        %v1417 = vmax.f32 %v1209, %v1322
        %1418 = vmax.xlane.f32.xlu0 %v1417
        %v1419 = vpop.xlane.xlu0 %1418
        %v1420 = vmax.f32 %v1212, %v1325
        %1421 = vmax.xlane.f32.xlu0 %v1420
        %v1422 = vpop.xlane.xlu0 %1421
        %v1423 = vmax.f32 %v1215, %v1328
        %1424 = vmax.xlane.f32.xlu0 %v1423
        %v1425 = vpop.xlane.xlu0 %1424
        %v1426 = vmax.f32 %v1218, %v1331
        %1427 = vmax.xlane.f32.xlu0 %v1426
        %v1428 = vpop.xlane.xlu0 %1427
        %v1429 = vmax.f32 %v1221, %v1334
        %1430 = vmax.xlane.f32.xlu0 %v1429
        %v1431 = vpop.xlane.xlu0 %1430
        %v1432 = vmax.f32 %v1224, %v1337
        %1433 = vmax.xlane.f32.xlu0 %v1432
        %v1434 = vpop.xlane.xlu0 %1433
        %v1435 = vmax.f32 %v1227, %v1340
        %1436 = vmax.xlane.f32.xlu0 %v1435
        %v1437 = vpop.xlane.xlu0 %1436
        %v1438 = vmax.f32 %v1230, %v1343
        %1439 = vmax.xlane.f32.xlu0 %v1438
        %v1440 = vpop.xlane.xlu0 %1439
        %v1441 = vmax.f32 %v1233, %v1346
        %1442 = vmax.xlane.f32.xlu0 %v1441
        %v1443 = vpop.xlane.xlu0 %1442
        %v1444 = vmax.f32 %v1236, %v1349
        %1445 = vmax.xlane.f32.xlu0 %v1444
        %v1446 = vpop.xlane.xlu0 %1445
        %v1447 = vmax.f32 %v1239, %v1352
        %1448 = vmax.xlane.f32.xlu0 %v1447
        %v1449 = vpop.xlane.xlu0 %1448
        %v1450 = vmax.f32 %v1242, %v1355
        %1451 = vmax.xlane.f32.xlu0 %v1450
        %v1452 = vpop.xlane.xlu0 %1451
        %v1453 = vmax.f32 %v1245, %v1358
        %1454 = vmax.xlane.f32.xlu0 %v1453
        %v1455 = vpop.xlane.xlu0 %1454
        %v1456 = vmax.f32 %v1248, %v1361
        %1457 = vmax.xlane.f32.xlu0 %v1456
        %v1458 = vpop.xlane.xlu0 %1457
        %v1459 = vmax.f32 %v1251, %v1364
        %1460 = vmax.xlane.f32.xlu0 %v1459
        %v1461 = vpop.xlane.xlu0 %1460
        %v1462 = vmax.f32 %v1254, %v1367
        %1463 = vmax.xlane.f32.xlu0 %v1462
        %v1464 = vpop.xlane.xlu0 %1463
        %v1465 = vmax.f32 %v1257, %v1370
        %1466 = vmax.xlane.f32.xlu0 %v1465
        %v1467 = vpop.xlane.xlu0 %1466
        %v1468 = vmax.f32 %v1260, %v1373
        %1469 = vmax.xlane.f32.xlu0 %v1468
        %v1470 = vpop.xlane.xlu0 %1469
        %v1471 = vmax.f32 %v1263, %v1376
        %1472 = vmax.xlane.f32.xlu0 %v1471
        %v1473 = vpop.xlane.xlu0 %1472
        %v1474 = vsub.f32 %v1170, %v1380
        %v1475 = vsub.f32 %v1283, %v1380
        %v1476 = vsub.f32 %v1173, %v1383
        %v1477 = vsub.f32 %v1286, %v1383
        %v1478 = vsub.f32 %v1176, %v1386
        %v1479 = vsub.f32 %v1289, %v1386
        %v1480 = vsub.f32 %v1179, %v1389
        %v1481 = vsub.f32 %v1292, %v1389
        %v1482 = vsub.f32 %v1182, %v1392
        %v1483 = vsub.f32 %v1295, %v1392
        %v1484 = vsub.f32 %v1185, %v1395
        %v1485 = vsub.f32 %v1298, %v1395
        %v1486 = vsub.f32 %v1188, %v1398
        %v1487 = vsub.f32 %v1301, %v1398
        %v1488 = vsub.f32 %v1191, %v1401
        %v1489 = vsub.f32 %v1304, %v1401
        %v1490 = vsub.f32 %v1194, %v1404
        %v1491 = vsub.f32 %v1307, %v1404
        %v1492 = vsub.f32 %v1197, %v1407
        %v1493 = vsub.f32 %v1310, %v1407
        %v1494 = vsub.f32 %v1200, %v1410
        %v1495 = vsub.f32 %v1313, %v1410
        %v1496 = vsub.f32 %v1203, %v1413
        %v1497 = vsub.f32 %v1316, %v1413
        %v1498 = vsub.f32 %v1206, %v1416
        %v1499 = vsub.f32 %v1319, %v1416
        %v1500 = vsub.f32 %v1209, %v1419
        %v1501 = vsub.f32 %v1322, %v1419
        %v1502 = vsub.f32 %v1212, %v1422
        %v1503 = vsub.f32 %v1325, %v1422
        %v1504 = vsub.f32 %v1215, %v1425
        %v1505 = vsub.f32 %v1328, %v1425
        %v1506 = vsub.f32 %v1218, %v1428
        %v1507 = vsub.f32 %v1331, %v1428
        %v1508 = vsub.f32 %v1221, %v1431
        %v1509 = vsub.f32 %v1334, %v1431
        %v1510 = vsub.f32 %v1224, %v1434
        %v1511 = vsub.f32 %v1337, %v1434
        %v1512 = vsub.f32 %v1227, %v1437
        %v1513 = vsub.f32 %v1340, %v1437
        %v1514 = vsub.f32 %v1230, %v1440
        %v1515 = vsub.f32 %v1343, %v1440
        %v1516 = vsub.f32 %v1233, %v1443
        %v1517 = vsub.f32 %v1346, %v1443
        %v1518 = vsub.f32 %v1236, %v1446
        %v1519 = vsub.f32 %v1349, %v1446
        %v1520 = vsub.f32 %v1239, %v1449
        %v1521 = vsub.f32 %v1352, %v1449
        %v1522 = vsub.f32 %v1242, %v1452
        %v1523 = vsub.f32 %v1355, %v1452
        %v1524 = vsub.f32 %v1245, %v1455
        %v1525 = vsub.f32 %v1358, %v1455
        %v1526 = vsub.f32 %v1248, %v1458
        %v1527 = vsub.f32 %v1361, %v1458
        %v1528 = vsub.f32 %v1251, %v1461
        %v1529 = vsub.f32 %v1364, %v1461
        %v1530 = vsub.f32 %v1254, %v1464
        %v1531 = vsub.f32 %v1367, %v1464
        %v1532 = vsub.f32 %v1257, %v1467
        %v1533 = vsub.f32 %v1370, %v1467
        %v1534 = vsub.f32 %v1260, %v1470
        %v1535 = vsub.f32 %v1373, %v1470
        %v1536 = vsub.f32 %v1263, %v1473
        %v1537 = vsub.f32 %v1376, %v1473
        %v1538 = vmul.f32 %v1474, 1.442695
        %v1539 = vpow.pop %v1538
        %v1540 = vmul.f32 %v1475, 1.442695
        %v1541 = vpow.pop %v1540
        %v1542 = vmul.f32 %v1476, 1.442695
        %v1543 = vpow.pop %v1542
        %v1544 = vmul.f32 %v1477, 1.442695
        %v1545 = vpow.pop %v1544
        %v1546 = vmul.f32 %v1478, 1.442695
        %v1547 = vpow.pop %v1546
        %v1548 = vmul.f32 %v1479, 1.442695
        %v1549 = vpow.pop %v1548
        %v1550 = vmul.f32 %v1480, 1.442695
        %v1551 = vpow.pop %v1550
        %v1552 = vmul.f32 %v1481, 1.442695
        %v1553 = vpow.pop %v1552
        %v1554 = vmul.f32 %v1482, 1.442695
        %v1555 = vpow.pop %v1554
        %v1556 = vmul.f32 %v1483, 1.442695
        %v1557 = vpow.pop %v1556
        %v1558 = vmul.f32 %v1484, 1.442695
        %v1559 = vpow.pop %v1558
        %v1560 = vmul.f32 %v1485, 1.442695
        %v1561 = vpow.pop %v1560
        %v1562 = vmul.f32 %v1486, 1.442695
        %v1563 = vpow.pop %v1562
        %v1564 = vmul.f32 %v1487, 1.442695
        %v1565 = vpow.pop %v1564
        %v1566 = vmul.f32 %v1488, 1.442695
        %v1567 = vpow.pop %v1566
        %v1568 = vmul.f32 %v1489, 1.442695
        %v1569 = vpow.pop %v1568
        %v1570 = vmul.f32 %v1490, 1.442695
        %v1571 = vpow.pop %v1570
        %v1572 = vmul.f32 %v1491, 1.442695
        %v1573 = vpow.pop %v1572
        %v1574 = vmul.f32 %v1492, 1.442695
        %v1575 = vpow.pop %v1574
        %v1576 = vmul.f32 %v1493, 1.442695
        %v1577 = vpow.pop %v1576
        %v1578 = vmul.f32 %v1494, 1.442695
        %v1579 = vpow.pop %v1578
        %v1580 = vmul.f32 %v1495, 1.442695
        %v1581 = vpow.pop %v1580
        %v1582 = vmul.f32 %v1496, 1.442695
        %v1583 = vpow.pop %v1582
        %v1584 = vmul.f32 %v1497, 1.442695
        %v1585 = vpow.pop %v1584
        %v1586 = vmul.f32 %v1498, 1.442695
        %v1587 = vpow.pop %v1586
        %v1588 = vmul.f32 %v1499, 1.442695
        %v1589 = vpow.pop %v1588
        %v1590 = vmul.f32 %v1500, 1.442695
        %v1591 = vpow.pop %v1590
        %v1592 = vmul.f32 %v1501, 1.442695
        %v1593 = vpow.pop %v1592
        %v1594 = vmul.f32 %v1502, 1.442695
        %v1595 = vpow.pop %v1594
        %v1596 = vmul.f32 %v1503, 1.442695
        %v1597 = vpow.pop %v1596
        %v1598 = vmul.f32 %v1504, 1.442695
        %v1599 = vpow.pop %v1598
        %v1600 = vmul.f32 %v1505, 1.442695
        %v1601 = vpow.pop %v1600
        %v1602 = vmul.f32 %v1506, 1.442695
        %v1603 = vpow.pop %v1602
        %v1604 = vmul.f32 %v1507, 1.442695
        %v1605 = vpow.pop %v1604
        %v1606 = vmul.f32 %v1508, 1.442695
        %v1607 = vpow.pop %v1606
        %v1608 = vmul.f32 %v1509, 1.442695
        %v1609 = vpow.pop %v1608
        %v1610 = vmul.f32 %v1510, 1.442695
        %v1611 = vpow.pop %v1610
        %v1612 = vmul.f32 %v1511, 1.442695
        %v1613 = vpow.pop %v1612
        %v1614 = vmul.f32 %v1512, 1.442695
        %v1615 = vpow.pop %v1614
        %v1616 = vmul.f32 %v1513, 1.442695
        %v1617 = vpow.pop %v1616
        %v1618 = vmul.f32 %v1514, 1.442695
        %v1619 = vpow.pop %v1618
        %v1620 = vmul.f32 %v1515, 1.442695
        %v1621 = vpow.pop %v1620
        %v1622 = vmul.f32 %v1516, 1.442695
        %v1623 = vpow.pop %v1622
        %v1624 = vmul.f32 %v1517, 1.442695
        %v1625 = vpow.pop %v1624
        %v1626 = vmul.f32 %v1518, 1.442695
        %v1627 = vpow.pop %v1626
        %v1628 = vmul.f32 %v1519, 1.442695
        %v1629 = vpow.pop %v1628
        %v1630 = vmul.f32 %v1520, 1.442695
        %v1631 = vpow.pop %v1630
        %v1632 = vmul.f32 %v1521, 1.442695
        %v1633 = vpow.pop %v1632
        %v1634 = vmul.f32 %v1522, 1.442695
        %v1635 = vpow.pop %v1634
        %v1636 = vmul.f32 %v1523, 1.442695
        %v1637 = vpow.pop %v1636
        %v1638 = vmul.f32 %v1524, 1.442695
        %v1639 = vpow.pop %v1638
        %v1640 = vmul.f32 %v1525, 1.442695
        %v1641 = vpow.pop %v1640
        %v1642 = vmul.f32 %v1526, 1.442695
        %v1643 = vpow.pop %v1642
        %v1644 = vmul.f32 %v1527, 1.442695
        %v1645 = vpow.pop %v1644
        %v1646 = vmul.f32 %v1528, 1.442695
        %v1647 = vpow.pop %v1646
        %v1648 = vmul.f32 %v1529, 1.442695
        %v1649 = vpow.pop %v1648
        %v1650 = vmul.f32 %v1530, 1.442695
        %v1651 = vpow.pop %v1650
        %v1652 = vmul.f32 %v1531, 1.442695
        %v1653 = vpow.pop %v1652
        %v1654 = vmul.f32 %v1532, 1.442695
        %v1655 = vpow.pop %v1654
        %v1656 = vmul.f32 %v1533, 1.442695
        %v1657 = vpow.pop %v1656
        %v1658 = vmul.f32 %v1534, 1.442695
        %v1659 = vpow.pop %v1658
        %v1660 = vmul.f32 %v1535, 1.442695
        %v1661 = vpow.pop %v1660
        %v1662 = vmul.f32 %v1536, 1.442695
        %v1663 = vpow.pop %v1662
        %v1664 = vmul.f32 %v1537, 1.442695
        %v1665 = vpow.pop %v1664
        %v1666 = vadd.f32 %v1539, %v1541
        %1667 = vadd.xlane.f32.xlu0 %v1666
        %v1668 = vpop.xlane.xlu0 %1667
        %v1669 = vadd.f32 %v1543, %v1545
        %1670 = vadd.xlane.f32.xlu0 %v1669
        %v1671 = vpop.xlane.xlu0 %1670
        %v1672 = vadd.f32 %v1547, %v1549
        %1673 = vadd.xlane.f32.xlu0 %v1672
        %v1674 = vpop.xlane.xlu0 %1673
        %v1675 = vadd.f32 %v1551, %v1553
        %1676 = vadd.xlane.f32.xlu0 %v1675
        %v1677 = vpop.xlane.xlu0 %1676
        %v1678 = vadd.f32 %v1555, %v1557
        %1679 = vadd.xlane.f32.xlu0 %v1678
        %v1680 = vpop.xlane.xlu0 %1679
        %v1681 = vadd.f32 %v1559, %v1561
        %1682 = vadd.xlane.f32.xlu0 %v1681
        %v1683 = vpop.xlane.xlu0 %1682
        %v1684 = vadd.f32 %v1563, %v1565
        %1685 = vadd.xlane.f32.xlu0 %v1684
        %v1686 = vpop.xlane.xlu0 %1685
        %v1687 = vadd.f32 %v1567, %v1569
        %1688 = vadd.xlane.f32.xlu0 %v1687
        %v1689 = vpop.xlane.xlu0 %1688
        %v1690 = vadd.f32 %v1571, %v1573
        %1691 = vadd.xlane.f32.xlu0 %v1690
        %v1692 = vpop.xlane.xlu0 %1691
        %v1693 = vadd.f32 %v1575, %v1577
        %1694 = vadd.xlane.f32.xlu0 %v1693
        %v1695 = vpop.xlane.xlu0 %1694
        %v1696 = vadd.f32 %v1579, %v1581
        %1697 = vadd.xlane.f32.xlu0 %v1696
        %v1698 = vpop.xlane.xlu0 %1697
        %v1699 = vadd.f32 %v1583, %v1585
        %1700 = vadd.xlane.f32.xlu0 %v1699
        %v1701 = vpop.xlane.xlu0 %1700
        %v1702 = vadd.f32 %v1587, %v1589
        %1703 = vadd.xlane.f32.xlu0 %v1702
        %v1704 = vpop.xlane.xlu0 %1703
        %v1705 = vadd.f32 %v1591, %v1593
        %1706 = vadd.xlane.f32.xlu0 %v1705
        %v1707 = vpop.xlane.xlu0 %1706
        %v1708 = vadd.f32 %v1595, %v1597
        %1709 = vadd.xlane.f32.xlu0 %v1708
        %v1710 = vpop.xlane.xlu0 %1709
        %v1711 = vadd.f32 %v1599, %v1601
        %1712 = vadd.xlane.f32.xlu0 %v1711
        %v1713 = vpop.xlane.xlu0 %1712
        %v1714 = vadd.f32 %v1603, %v1605
        %1715 = vadd.xlane.f32.xlu0 %v1714
        %v1716 = vpop.xlane.xlu0 %1715
        %v1717 = vadd.f32 %v1607, %v1609
        %1718 = vadd.xlane.f32.xlu0 %v1717
        %v1719 = vpop.xlane.xlu0 %1718
        %v1720 = vadd.f32 %v1611, %v1613
        %1721 = vadd.xlane.f32.xlu0 %v1720
        %v1722 = vpop.xlane.xlu0 %1721
        %v1723 = vadd.f32 %v1615, %v1617
        %1724 = vadd.xlane.f32.xlu0 %v1723
        %v1725 = vpop.xlane.xlu0 %1724
        %v1726 = vadd.f32 %v1619, %v1621
        %1727 = vadd.xlane.f32.xlu0 %v1726
        %v1728 = vpop.xlane.xlu0 %1727
        %v1729 = vadd.f32 %v1623, %v1625
        %1730 = vadd.xlane.f32.xlu0 %v1729
        %v1731 = vpop.xlane.xlu0 %1730
        %v1732 = vadd.f32 %v1627, %v1629
        %1733 = vadd.xlane.f32.xlu0 %v1732
        %v1734 = vpop.xlane.xlu0 %1733
        %v1735 = vadd.f32 %v1631, %v1633
        %1736 = vadd.xlane.f32.xlu0 %v1735
        %v1737 = vpop.xlane.xlu0 %1736
        %v1738 = vadd.f32 %v1635, %v1637
        %1739 = vadd.xlane.f32.xlu0 %v1738
        %v1740 = vpop.xlane.xlu0 %1739
        %v1741 = vadd.f32 %v1639, %v1641
        %1742 = vadd.xlane.f32.xlu0 %v1741
        %v1743 = vpop.xlane.xlu0 %1742
        %v1744 = vadd.f32 %v1643, %v1645
        %1745 = vadd.xlane.f32.xlu0 %v1744
        %v1746 = vpop.xlane.xlu0 %1745
        %v1747 = vadd.f32 %v1647, %v1649
        %1748 = vadd.xlane.f32.xlu0 %v1747
        %v1749 = vpop.xlane.xlu0 %1748
        %v1750 = vadd.f32 %v1651, %v1653
        %1751 = vadd.xlane.f32.xlu0 %v1750
        %v1752 = vpop.xlane.xlu0 %1751
        %v1753 = vadd.f32 %v1655, %v1657
        %1754 = vadd.xlane.f32.xlu0 %v1753
        %v1755 = vpop.xlane.xlu0 %1754
        %v1756 = vadd.f32 %v1659, %v1661
        %1757 = vadd.xlane.f32.xlu0 %v1756
        %v1758 = vpop.xlane.xlu0 %1757
        %v1759 = vadd.f32 %v1663, %v1665
        %1760 = vadd.xlane.f32.xlu0 %v1759
        %v1761 = vpop.xlane.xlu0 %1760
        %1762 = vmatpush.xpose.msra.mxu0 0.0
        %1763 = vmatpush.xpose.msra.mxu0 0.0
        %1764 = vmatpush.xpose.msra.mxu0 0.0
        %1765 = vmatpush.xpose.msra.mxu0 0.0
        %1766 = vmatpush.xpose.msra.mxu0 0.0
        %1767 = vmatpush.xpose.msra.mxu0 0.0
        %1768 = vmatpush.xpose.msra.mxu0 0.0
        %1769 = vmatpush.xpose.msra.mxu0 0.0
        %1770 = vmatpush.xpose.msra.mxu0 %v989
        %1771 = vmatpush.xpose.msra.mxu0 %v987
        %1772 = vmatpush.xpose.msra.mxu0 %v985
        %1773 = vmatpush.xpose.msra.mxu0 %v983
        %1774 = vmatpush.xpose.msra.mxu0 %v981
        %1775 = vmatpush.xpose.msra.mxu0 %v979
        %1776 = vmatpush.xpose.msra.mxu0 %v977
        %1777 = vmatpush.xpose.msra.mxu0 %v975
        %1778 = vmatmul.f32.gmra.mxu0 %v1539
        %v1779 = vpop.f32.mrf.mxu0
        %v1780 = vadd.f32 0.0, %v1779
        %1781 = vmatmul.f32.gmra.mxu0 %v1543
        %v1782 = vpop.f32.mrf.mxu0
        %v1783 = vadd.f32 0.0, %v1782
        %1784 = vmatmul.f32.gmra.mxu0 %v1547
        %v1785 = vpop.f32.mrf.mxu0
        %v1786 = vadd.f32 0.0, %v1785
        %1787 = vmatmul.f32.gmra.mxu0 %v1551
        %v1788 = vpop.f32.mrf.mxu0
        %v1789 = vadd.f32 0.0, %v1788
        %1790 = vmatmul.f32.gmra.mxu0 %v1555
        %v1791 = vpop.f32.mrf.mxu0
        %v1792 = vadd.f32 0.0, %v1791
        %1793 = vmatmul.f32.gmra.mxu0 %v1559
        %v1794 = vpop.f32.mrf.mxu0
        %v1795 = vadd.f32 0.0, %v1794
        %1796 = vmatmul.f32.gmra.mxu0 %v1563
        %v1797 = vpop.f32.mrf.mxu0
        %v1798 = vadd.f32 0.0, %v1797
        %1799 = vmatmul.f32.gmra.mxu0 %v1567
        %v1800 = vpop.f32.mrf.mxu0
        %v1801 = vadd.f32 0.0, %v1800
        %1802 = vmatmul.f32.gmra.mxu0 %v1571
        %v1803 = vpop.f32.mrf.mxu0
        %v1804 = vadd.f32 0.0, %v1803
        %1805 = vmatmul.f32.gmra.mxu0 %v1575
        %v1806 = vpop.f32.mrf.mxu0
        %v1807 = vadd.f32 0.0, %v1806
        %1808 = vmatmul.f32.gmra.mxu0 %v1579
        %v1809 = vpop.f32.mrf.mxu0
        %v1810 = vadd.f32 0.0, %v1809
        %1811 = vmatmul.f32.gmra.mxu0 %v1583
        %v1812 = vpop.f32.mrf.mxu0
        %v1813 = vadd.f32 0.0, %v1812
        %1814 = vmatmul.f32.gmra.mxu0 %v1587
        %v1815 = vpop.f32.mrf.mxu0
        %v1816 = vadd.f32 0.0, %v1815
        %1817 = vmatmul.f32.gmra.mxu0 %v1591
        %v1818 = vpop.f32.mrf.mxu0
        %v1819 = vadd.f32 0.0, %v1818
        %1820 = vmatmul.f32.gmra.mxu0 %v1595
        %v1821 = vpop.f32.mrf.mxu0
        %v1822 = vadd.f32 0.0, %v1821
        %1823 = vmatmul.f32.gmra.mxu0 %v1599
        %v1824 = vpop.f32.mrf.mxu0
        %v1825 = vadd.f32 0.0, %v1824
        %1826 = vmatmul.f32.gmra.mxu0 %v1603
        %v1827 = vpop.f32.mrf.mxu0
        %v1828 = vadd.f32 0.0, %v1827
        %1829 = vmatmul.f32.gmra.mxu0 %v1607
        %v1830 = vpop.f32.mrf.mxu0
        %v1831 = vadd.f32 0.0, %v1830
        %1832 = vmatmul.f32.gmra.mxu0 %v1611
        %v1833 = vpop.f32.mrf.mxu0
        %v1834 = vadd.f32 0.0, %v1833
        %1835 = vmatmul.f32.gmra.mxu0 %v1615
        %v1836 = vpop.f32.mrf.mxu0
        %v1837 = vadd.f32 0.0, %v1836
        %1838 = vmatmul.f32.gmra.mxu0 %v1619
        %v1839 = vpop.f32.mrf.mxu0
        %v1840 = vadd.f32 0.0, %v1839
        %1841 = vmatmul.f32.gmra.mxu0 %v1623
        %v1842 = vpop.f32.mrf.mxu0
        %v1843 = vadd.f32 0.0, %v1842
        %1844 = vmatmul.f32.gmra.mxu0 %v1627
        %v1845 = vpop.f32.mrf.mxu0
        %v1846 = vadd.f32 0.0, %v1845
        %1847 = vmatmul.f32.gmra.mxu0 %v1631
        %v1848 = vpop.f32.mrf.mxu0
        %v1849 = vadd.f32 0.0, %v1848
        %1850 = vmatmul.f32.gmra.mxu0 %v1635
        %v1851 = vpop.f32.mrf.mxu0
        %v1852 = vadd.f32 0.0, %v1851
        %1853 = vmatmul.f32.gmra.mxu0 %v1639
        %v1854 = vpop.f32.mrf.mxu0
        %v1855 = vadd.f32 0.0, %v1854
        %1856 = vmatmul.f32.gmra.mxu0 %v1643
        %v1857 = vpop.f32.mrf.mxu0
        %v1858 = vadd.f32 0.0, %v1857
        %1859 = vmatmul.f32.gmra.mxu0 %v1647
        %v1860 = vpop.f32.mrf.mxu0
        %v1861 = vadd.f32 0.0, %v1860
        %1862 = vmatmul.f32.gmra.mxu0 %v1651
        %v1863 = vpop.f32.mrf.mxu0
        %v1864 = vadd.f32 0.0, %v1863
        %1865 = vmatmul.f32.gmra.mxu0 %v1655
        %v1866 = vpop.f32.mrf.mxu0
        %v1867 = vadd.f32 0.0, %v1866
        %1868 = vmatmul.f32.gmra.mxu0 %v1659
        %v1869 = vpop.f32.mrf.mxu0
        %v1870 = vadd.f32 0.0, %v1869
        %1871 = vmatmul.f32.gmra.mxu0 %v1663
        %v1872 = vpop.f32.mrf.mxu0
        %v1873 = vadd.f32 0.0, %v1872
        %1874 = vdwg.mxu0
        %1875 = vmatpush.xpose.msra.mxu0 0.0
        %1876 = vmatpush.xpose.msra.mxu0 0.0
        %1877 = vmatpush.xpose.msra.mxu0 0.0
        %1878 = vmatpush.xpose.msra.mxu0 0.0
        %1879 = vmatpush.xpose.msra.mxu0 0.0
        %1880 = vmatpush.xpose.msra.mxu0 0.0
        %1881 = vmatpush.xpose.msra.mxu0 0.0
        %1882 = vmatpush.xpose.msra.mxu0 0.0
        %1883 = vmatpush.xpose.msra.mxu0 %v990
        %1884 = vmatpush.xpose.msra.mxu0 %v988
        %1885 = vmatpush.xpose.msra.mxu0 %v986
        %1886 = vmatpush.xpose.msra.mxu0 %v984
        %1887 = vmatpush.xpose.msra.mxu0 %v982
        %1888 = vmatpush.xpose.msra.mxu0 %v980
        %1889 = vmatpush.xpose.msra.mxu0 %v978
        %1890 = vmatpush.xpose.msra.mxu0 %v976
        %1891 = vmatmul.f32.gmra.mxu0 %v1541
        %v1892 = vpop.f32.mrf.mxu0
        %v1893 = vadd.f32 %v1780, %v1892
        %1894 = vmatmul.f32.gmra.mxu0 %v1545
        %v1895 = vpop.f32.mrf.mxu0
        %v1896 = vadd.f32 %v1783, %v1895
        %1897 = vmatmul.f32.gmra.mxu0 %v1549
        %v1898 = vpop.f32.mrf.mxu0
        %v1899 = vadd.f32 %v1786, %v1898
        %1900 = vmatmul.f32.gmra.mxu0 %v1553
        %v1901 = vpop.f32.mrf.mxu0
        %v1902 = vadd.f32 %v1789, %v1901
        %1903 = vmatmul.f32.gmra.mxu0 %v1557
        %v1904 = vpop.f32.mrf.mxu0
        %v1905 = vadd.f32 %v1792, %v1904
        %1906 = vmatmul.f32.gmra.mxu0 %v1561
        %v1907 = vpop.f32.mrf.mxu0
        %v1908 = vadd.f32 %v1795, %v1907
        %1909 = vmatmul.f32.gmra.mxu0 %v1565
        %v1910 = vpop.f32.mrf.mxu0
        %v1911 = vadd.f32 %v1798, %v1910
        %1912 = vmatmul.f32.gmra.mxu0 %v1569
        %v1913 = vpop.f32.mrf.mxu0
        %v1914 = vadd.f32 %v1801, %v1913
        %1915 = vmatmul.f32.gmra.mxu0 %v1573
        %v1916 = vpop.f32.mrf.mxu0
        %v1917 = vadd.f32 %v1804, %v1916
        %1918 = vmatmul.f32.gmra.mxu0 %v1577
        %v1919 = vpop.f32.mrf.mxu0
        %v1920 = vadd.f32 %v1807, %v1919
        %1921 = vmatmul.f32.gmra.mxu0 %v1581
        %v1922 = vpop.f32.mrf.mxu0
        %v1923 = vadd.f32 %v1810, %v1922
        %1924 = vmatmul.f32.gmra.mxu0 %v1585
        %v1925 = vpop.f32.mrf.mxu0
        %v1926 = vadd.f32 %v1813, %v1925
        %1927 = vmatmul.f32.gmra.mxu0 %v1589
        %v1928 = vpop.f32.mrf.mxu0
        %v1929 = vadd.f32 %v1816, %v1928
        %1930 = vmatmul.f32.gmra.mxu0 %v1593
        %v1931 = vpop.f32.mrf.mxu0
        %v1932 = vadd.f32 %v1819, %v1931
        %1933 = vmatmul.f32.gmra.mxu0 %v1597
        %v1934 = vpop.f32.mrf.mxu0
        %v1935 = vadd.f32 %v1822, %v1934
        %1936 = vmatmul.f32.gmra.mxu0 %v1601
        %v1937 = vpop.f32.mrf.mxu0
        %v1938 = vadd.f32 %v1825, %v1937
        %1939 = vmatmul.f32.gmra.mxu0 %v1605
        %v1940 = vpop.f32.mrf.mxu0
        %v1941 = vadd.f32 %v1828, %v1940
        %1942 = vmatmul.f32.gmra.mxu0 %v1609
        %v1943 = vpop.f32.mrf.mxu0
        %v1944 = vadd.f32 %v1831, %v1943
        %1945 = vmatmul.f32.gmra.mxu0 %v1613
        %v1946 = vpop.f32.mrf.mxu0
        %v1947 = vadd.f32 %v1834, %v1946
        %1948 = vmatmul.f32.gmra.mxu0 %v1617
        %v1949 = vpop.f32.mrf.mxu0
        %v1950 = vadd.f32 %v1837, %v1949
        %1951 = vmatmul.f32.gmra.mxu0 %v1621
        %v1952 = vpop.f32.mrf.mxu0
        %v1953 = vadd.f32 %v1840, %v1952
        %1954 = vmatmul.f32.gmra.mxu0 %v1625
        %v1955 = vpop.f32.mrf.mxu0
        %v1956 = vadd.f32 %v1843, %v1955
        %1957 = vmatmul.f32.gmra.mxu0 %v1629
        %v1958 = vpop.f32.mrf.mxu0
        %v1959 = vadd.f32 %v1846, %v1958
        %1960 = vmatmul.f32.gmra.mxu0 %v1633
        %v1961 = vpop.f32.mrf.mxu0
        %v1962 = vadd.f32 %v1849, %v1961
        %1963 = vmatmul.f32.gmra.mxu0 %v1637
        %v1964 = vpop.f32.mrf.mxu0
        %v1965 = vadd.f32 %v1852, %v1964
        %1966 = vmatmul.f32.gmra.mxu0 %v1641
        %v1967 = vpop.f32.mrf.mxu0
        %v1968 = vadd.f32 %v1855, %v1967
        %1969 = vmatmul.f32.gmra.mxu0 %v1645
        %v1970 = vpop.f32.mrf.mxu0
        %v1971 = vadd.f32 %v1858, %v1970
        %1972 = vmatmul.f32.gmra.mxu0 %v1649
        %v1973 = vpop.f32.mrf.mxu0
        %v1974 = vadd.f32 %v1861, %v1973
        %1975 = vmatmul.f32.gmra.mxu0 %v1653
        %v1976 = vpop.f32.mrf.mxu0
        %v1977 = vadd.f32 %v1864, %v1976
        %1978 = vmatmul.f32.gmra.mxu0 %v1657
        %v1979 = vpop.f32.mrf.mxu0
        %v1980 = vadd.f32 %v1867, %v1979
        %1981 = vmatmul.f32.gmra.mxu0 %v1661
        %v1982 = vpop.f32.mrf.mxu0
        %v1983 = vadd.f32 %v1870, %v1982
        %1984 = vmatmul.f32.gmra.mxu0 %v1665
        %v1985 = vpop.f32.mrf.mxu0
        %v1986 = vadd.f32 %v1873, %v1985
        %1987 = vdwg.mxu0
        %v1988 = vrcp.pop %v1668
        %v1989 = vmul.f32 %v1668, %v1988
        %v1990 = vsub.f32 1.0, %v1989
        %v1991 = vmul.f32 %v1988, %v1990
        %v1992 = vadd.f32 %v1988, %v1991
        %vm1993 = vweird.f32 %v1668
        %vm1994 = vweird.f32 %v1988
        %vm1995 = vmor %vm1993, %vm1994
        %v1996 = vsel %vm1995, %v1988, %v1992
        %v1997 = vand.u32 2147483647, %v1668
        %vm1998 = vcmp.eq.f32.partialorder %v1997, 8.507059e+37
        %v1999 = vand.u32 %v1668, 2147483648
        %v2000 = vor.u32 1.1754944e-38, %v1999
        %v2001 = vsel %vm1998, %v2000, %v1996
        %v2002 = vmul.f32 1.0, %v2001
        %v2003 = vrcp.pop %v1671
        %v2004 = vmul.f32 %v1671, %v2003
        %v2005 = vsub.f32 1.0, %v2004
        %v2006 = vmul.f32 %v2003, %v2005
        %v2007 = vadd.f32 %v2003, %v2006
        %vm2008 = vweird.f32 %v1671
        %vm2009 = vweird.f32 %v2003
        %vm2010 = vmor %vm2008, %vm2009
        %v2011 = vsel %vm2010, %v2003, %v2007
        %v2012 = vand.u32 2147483647, %v1671
        %vm2013 = vcmp.eq.f32.partialorder %v2012, 8.507059e+37
        %v2014 = vand.u32 %v1671, 2147483648
        %v2015 = vor.u32 1.1754944e-38, %v2014
        %v2016 = vsel %vm2013, %v2015, %v2011
        %v2017 = vmul.f32 1.0, %v2016
        %v2018 = vrcp.pop %v1674
        %v2019 = vmul.f32 %v1674, %v2018
        %v2020 = vsub.f32 1.0, %v2019
        %v2021 = vmul.f32 %v2018, %v2020
        %v2022 = vadd.f32 %v2018, %v2021
        %vm2023 = vweird.f32 %v1674
        %vm2024 = vweird.f32 %v2018
        %vm2025 = vmor %vm2023, %vm2024
        %v2026 = vsel %vm2025, %v2018, %v2022
        %v2027 = vand.u32 2147483647, %v1674
        %vm2028 = vcmp.eq.f32.partialorder %v2027, 8.507059e+37
        %v2029 = vand.u32 %v1674, 2147483648
        %v2030 = vor.u32 1.1754944e-38, %v2029
        %v2031 = vsel %vm2028, %v2030, %v2026
        %v2032 = vmul.f32 1.0, %v2031
        %v2033 = vrcp.pop %v1677
        %v2034 = vmul.f32 %v1677, %v2033
        %v2035 = vsub.f32 1.0, %v2034
        %v2036 = vmul.f32 %v2033, %v2035
        %v2037 = vadd.f32 %v2033, %v2036
        %vm2038 = vweird.f32 %v1677
        %vm2039 = vweird.f32 %v2033
        %vm2040 = vmor %vm2038, %vm2039
        %v2041 = vsel %vm2040, %v2033, %v2037
        %v2042 = vand.u32 2147483647, %v1677
        %vm2043 = vcmp.eq.f32.partialorder %v2042, 8.507059e+37
        %v2044 = vand.u32 %v1677, 2147483648
        %v2045 = vor.u32 1.1754944e-38, %v2044
        %v2046 = vsel %vm2043, %v2045, %v2041
        %v2047 = vmul.f32 1.0, %v2046
        %v2048 = vrcp.pop %v1680
        %v2049 = vmul.f32 %v1680, %v2048
        %v2050 = vsub.f32 1.0, %v2049
        %v2051 = vmul.f32 %v2048, %v2050
        %v2052 = vadd.f32 %v2048, %v2051
        %vm2053 = vweird.f32 %v1680
        %vm2054 = vweird.f32 %v2048
        %vm2055 = vmor %vm2053, %vm2054
        %v2056 = vsel %vm2055, %v2048, %v2052
        %v2057 = vand.u32 2147483647, %v1680
        %vm2058 = vcmp.eq.f32.partialorder %v2057, 8.507059e+37
        %v2059 = vand.u32 %v1680, 2147483648
        %v2060 = vor.u32 1.1754944e-38, %v2059
        %v2061 = vsel %vm2058, %v2060, %v2056
        %v2062 = vmul.f32 1.0, %v2061
        %v2063 = vrcp.pop %v1683
        %v2064 = vmul.f32 %v1683, %v2063
        %v2065 = vsub.f32 1.0, %v2064
        %v2066 = vmul.f32 %v2063, %v2065
        %v2067 = vadd.f32 %v2063, %v2066
        %vm2068 = vweird.f32 %v1683
        %vm2069 = vweird.f32 %v2063
        %vm2070 = vmor %vm2068, %vm2069
        %v2071 = vsel %vm2070, %v2063, %v2067
        %v2072 = vand.u32 2147483647, %v1683
        %vm2073 = vcmp.eq.f32.partialorder %v2072, 8.507059e+37
        %v2074 = vand.u32 %v1683, 2147483648
        %v2075 = vor.u32 1.1754944e-38, %v2074
        %v2076 = vsel %vm2073, %v2075, %v2071
        %v2077 = vmul.f32 1.0, %v2076
        %v2078 = vrcp.pop %v1686
        %v2079 = vmul.f32 %v1686, %v2078
        %v2080 = vsub.f32 1.0, %v2079
        %v2081 = vmul.f32 %v2078, %v2080
        %v2082 = vadd.f32 %v2078, %v2081
        %vm2083 = vweird.f32 %v1686
        %vm2084 = vweird.f32 %v2078
        %vm2085 = vmor %vm2083, %vm2084
        %v2086 = vsel %vm2085, %v2078, %v2082
        %v2087 = vand.u32 2147483647, %v1686
        %vm2088 = vcmp.eq.f32.partialorder %v2087, 8.507059e+37
        %v2089 = vand.u32 %v1686, 2147483648
        %v2090 = vor.u32 1.1754944e-38, %v2089
        %v2091 = vsel %vm2088, %v2090, %v2086
        %v2092 = vmul.f32 1.0, %v2091
        %v2093 = vrcp.pop %v1689
        %v2094 = vmul.f32 %v1689, %v2093
        %v2095 = vsub.f32 1.0, %v2094
        %v2096 = vmul.f32 %v2093, %v2095
        %v2097 = vadd.f32 %v2093, %v2096
        %vm2098 = vweird.f32 %v1689
        %vm2099 = vweird.f32 %v2093
        %vm2100 = vmor %vm2098, %vm2099
        %v2101 = vsel %vm2100, %v2093, %v2097
        %v2102 = vand.u32 2147483647, %v1689
        %vm2103 = vcmp.eq.f32.partialorder %v2102, 8.507059e+37
        %v2104 = vand.u32 %v1689, 2147483648
        %v2105 = vor.u32 1.1754944e-38, %v2104
        %v2106 = vsel %vm2103, %v2105, %v2101
        %v2107 = vmul.f32 1.0, %v2106
        %v2108 = vrcp.pop %v1692
        %v2109 = vmul.f32 %v1692, %v2108
        %v2110 = vsub.f32 1.0, %v2109
        %v2111 = vmul.f32 %v2108, %v2110
        %v2112 = vadd.f32 %v2108, %v2111
        %vm2113 = vweird.f32 %v1692
        %vm2114 = vweird.f32 %v2108
        %vm2115 = vmor %vm2113, %vm2114
        %v2116 = vsel %vm2115, %v2108, %v2112
        %v2117 = vand.u32 2147483647, %v1692
        %vm2118 = vcmp.eq.f32.partialorder %v2117, 8.507059e+37
        %v2119 = vand.u32 %v1692, 2147483648
        %v2120 = vor.u32 1.1754944e-38, %v2119
        %v2121 = vsel %vm2118, %v2120, %v2116
        %v2122 = vmul.f32 1.0, %v2121
        %v2123 = vrcp.pop %v1695
        %v2124 = vmul.f32 %v1695, %v2123
        %v2125 = vsub.f32 1.0, %v2124
        %v2126 = vmul.f32 %v2123, %v2125
        %v2127 = vadd.f32 %v2123, %v2126
        %vm2128 = vweird.f32 %v1695
        %vm2129 = vweird.f32 %v2123
        %vm2130 = vmor %vm2128, %vm2129
        %v2131 = vsel %vm2130, %v2123, %v2127
        %v2132 = vand.u32 2147483647, %v1695
        %vm2133 = vcmp.eq.f32.partialorder %v2132, 8.507059e+37
        %v2134 = vand.u32 %v1695, 2147483648
        %v2135 = vor.u32 1.1754944e-38, %v2134
        %v2136 = vsel %vm2133, %v2135, %v2131
        %v2137 = vmul.f32 1.0, %v2136
        %v2138 = vrcp.pop %v1698
        %v2139 = vmul.f32 %v1698, %v2138
        %v2140 = vsub.f32 1.0, %v2139
        %v2141 = vmul.f32 %v2138, %v2140
        %v2142 = vadd.f32 %v2138, %v2141
        %vm2143 = vweird.f32 %v1698
        %vm2144 = vweird.f32 %v2138
        %vm2145 = vmor %vm2143, %vm2144
        %v2146 = vsel %vm2145, %v2138, %v2142
        %v2147 = vand.u32 2147483647, %v1698
        %vm2148 = vcmp.eq.f32.partialorder %v2147, 8.507059e+37
        %v2149 = vand.u32 %v1698, 2147483648
        %v2150 = vor.u32 1.1754944e-38, %v2149
        %v2151 = vsel %vm2148, %v2150, %v2146
        %v2152 = vmul.f32 1.0, %v2151
        %v2153 = vrcp.pop %v1701
        %v2154 = vmul.f32 %v1701, %v2153
        %v2155 = vsub.f32 1.0, %v2154
        %v2156 = vmul.f32 %v2153, %v2155
        %v2157 = vadd.f32 %v2153, %v2156
        %vm2158 = vweird.f32 %v1701
        %vm2159 = vweird.f32 %v2153
        %vm2160 = vmor %vm2158, %vm2159
        %v2161 = vsel %vm2160, %v2153, %v2157
        %v2162 = vand.u32 2147483647, %v1701
        %vm2163 = vcmp.eq.f32.partialorder %v2162, 8.507059e+37
        %v2164 = vand.u32 %v1701, 2147483648
        %v2165 = vor.u32 1.1754944e-38, %v2164
        %v2166 = vsel %vm2163, %v2165, %v2161
        %v2167 = vmul.f32 1.0, %v2166
        %v2168 = vrcp.pop %v1704
        %v2169 = vmul.f32 %v1704, %v2168
        %v2170 = vsub.f32 1.0, %v2169
        %v2171 = vmul.f32 %v2168, %v2170
        %v2172 = vadd.f32 %v2168, %v2171
        %vm2173 = vweird.f32 %v1704
        %vm2174 = vweird.f32 %v2168
        %vm2175 = vmor %vm2173, %vm2174
        %v2176 = vsel %vm2175, %v2168, %v2172
        %v2177 = vand.u32 2147483647, %v1704
        %vm2178 = vcmp.eq.f32.partialorder %v2177, 8.507059e+37
        %v2179 = vand.u32 %v1704, 2147483648
        %v2180 = vor.u32 1.1754944e-38, %v2179
        %v2181 = vsel %vm2178, %v2180, %v2176
        %v2182 = vmul.f32 1.0, %v2181
        %v2183 = vrcp.pop %v1707
        %v2184 = vmul.f32 %v1707, %v2183
        %v2185 = vsub.f32 1.0, %v2184
        %v2186 = vmul.f32 %v2183, %v2185
        %v2187 = vadd.f32 %v2183, %v2186
        %vm2188 = vweird.f32 %v1707
        %vm2189 = vweird.f32 %v2183
        %vm2190 = vmor %vm2188, %vm2189
        %v2191 = vsel %vm2190, %v2183, %v2187
        %v2192 = vand.u32 2147483647, %v1707
        %vm2193 = vcmp.eq.f32.partialorder %v2192, 8.507059e+37
        %v2194 = vand.u32 %v1707, 2147483648
        %v2195 = vor.u32 1.1754944e-38, %v2194
        %v2196 = vsel %vm2193, %v2195, %v2191
        %v2197 = vmul.f32 1.0, %v2196
        %v2198 = vrcp.pop %v1710
        %v2199 = vmul.f32 %v1710, %v2198
        %v2200 = vsub.f32 1.0, %v2199
        %v2201 = vmul.f32 %v2198, %v2200
        %v2202 = vadd.f32 %v2198, %v2201
        %vm2203 = vweird.f32 %v1710
        %vm2204 = vweird.f32 %v2198
        %vm2205 = vmor %vm2203, %vm2204
        %v2206 = vsel %vm2205, %v2198, %v2202
        %v2207 = vand.u32 2147483647, %v1710
        %vm2208 = vcmp.eq.f32.partialorder %v2207, 8.507059e+37
        %v2209 = vand.u32 %v1710, 2147483648
        %v2210 = vor.u32 1.1754944e-38, %v2209
        %v2211 = vsel %vm2208, %v2210, %v2206
        %v2212 = vmul.f32 1.0, %v2211
        %v2213 = vrcp.pop %v1713
        %v2214 = vmul.f32 %v1713, %v2213
        %v2215 = vsub.f32 1.0, %v2214
        %v2216 = vmul.f32 %v2213, %v2215
        %v2217 = vadd.f32 %v2213, %v2216
        %vm2218 = vweird.f32 %v1713
        %vm2219 = vweird.f32 %v2213
        %vm2220 = vmor %vm2218, %vm2219
        %v2221 = vsel %vm2220, %v2213, %v2217
        %v2222 = vand.u32 2147483647, %v1713
        %vm2223 = vcmp.eq.f32.partialorder %v2222, 8.507059e+37
        %v2224 = vand.u32 %v1713, 2147483648
        %v2225 = vor.u32 1.1754944e-38, %v2224
        %v2226 = vsel %vm2223, %v2225, %v2221
        %v2227 = vmul.f32 1.0, %v2226
        %v2228 = vrcp.pop %v1716
        %v2229 = vmul.f32 %v1716, %v2228
        %v2230 = vsub.f32 1.0, %v2229
        %v2231 = vmul.f32 %v2228, %v2230
        %v2232 = vadd.f32 %v2228, %v2231
        %vm2233 = vweird.f32 %v1716
        %vm2234 = vweird.f32 %v2228
        %vm2235 = vmor %vm2233, %vm2234
        %v2236 = vsel %vm2235, %v2228, %v2232
        %v2237 = vand.u32 2147483647, %v1716
        %vm2238 = vcmp.eq.f32.partialorder %v2237, 8.507059e+37
        %v2239 = vand.u32 %v1716, 2147483648
        %v2240 = vor.u32 1.1754944e-38, %v2239
        %v2241 = vsel %vm2238, %v2240, %v2236
        %v2242 = vmul.f32 1.0, %v2241
        %v2243 = vrcp.pop %v1719
        %v2244 = vmul.f32 %v1719, %v2243
        %v2245 = vsub.f32 1.0, %v2244
        %v2246 = vmul.f32 %v2243, %v2245
        %v2247 = vadd.f32 %v2243, %v2246
        %vm2248 = vweird.f32 %v1719
        %vm2249 = vweird.f32 %v2243
        %vm2250 = vmor %vm2248, %vm2249
        %v2251 = vsel %vm2250, %v2243, %v2247
        %v2252 = vand.u32 2147483647, %v1719
        %vm2253 = vcmp.eq.f32.partialorder %v2252, 8.507059e+37
        %v2254 = vand.u32 %v1719, 2147483648
        %v2255 = vor.u32 1.1754944e-38, %v2254
        %v2256 = vsel %vm2253, %v2255, %v2251
        %v2257 = vmul.f32 1.0, %v2256
        %v2258 = vrcp.pop %v1722
        %v2259 = vmul.f32 %v1722, %v2258
        %v2260 = vsub.f32 1.0, %v2259
        %v2261 = vmul.f32 %v2258, %v2260
        %v2262 = vadd.f32 %v2258, %v2261
        %vm2263 = vweird.f32 %v1722
        %vm2264 = vweird.f32 %v2258
        %vm2265 = vmor %vm2263, %vm2264
        %v2266 = vsel %vm2265, %v2258, %v2262
        %v2267 = vand.u32 2147483647, %v1722
        %vm2268 = vcmp.eq.f32.partialorder %v2267, 8.507059e+37
        %v2269 = vand.u32 %v1722, 2147483648
        %v2270 = vor.u32 1.1754944e-38, %v2269
        %v2271 = vsel %vm2268, %v2270, %v2266
        %v2272 = vmul.f32 1.0, %v2271
        %v2273 = vrcp.pop %v1725
        %v2274 = vmul.f32 %v1725, %v2273
        %v2275 = vsub.f32 1.0, %v2274
        %v2276 = vmul.f32 %v2273, %v2275
        %v2277 = vadd.f32 %v2273, %v2276
        %vm2278 = vweird.f32 %v1725
        %vm2279 = vweird.f32 %v2273
        %vm2280 = vmor %vm2278, %vm2279
        %v2281 = vsel %vm2280, %v2273, %v2277
        %v2282 = vand.u32 2147483647, %v1725
        %vm2283 = vcmp.eq.f32.partialorder %v2282, 8.507059e+37
        %v2284 = vand.u32 %v1725, 2147483648
        %v2285 = vor.u32 1.1754944e-38, %v2284
        %v2286 = vsel %vm2283, %v2285, %v2281
        %v2287 = vmul.f32 1.0, %v2286
        %v2288 = vrcp.pop %v1728
        %v2289 = vmul.f32 %v1728, %v2288
        %v2290 = vsub.f32 1.0, %v2289
        %v2291 = vmul.f32 %v2288, %v2290
        %v2292 = vadd.f32 %v2288, %v2291
        %vm2293 = vweird.f32 %v1728
        %vm2294 = vweird.f32 %v2288
        %vm2295 = vmor %vm2293, %vm2294
        %v2296 = vsel %vm2295, %v2288, %v2292
        %v2297 = vand.u32 2147483647, %v1728
        %vm2298 = vcmp.eq.f32.partialorder %v2297, 8.507059e+37
        %v2299 = vand.u32 %v1728, 2147483648
        %v2300 = vor.u32 1.1754944e-38, %v2299
        %v2301 = vsel %vm2298, %v2300, %v2296
        %v2302 = vmul.f32 1.0, %v2301
        %v2303 = vrcp.pop %v1731
        %v2304 = vmul.f32 %v1731, %v2303
        %v2305 = vsub.f32 1.0, %v2304
        %v2306 = vmul.f32 %v2303, %v2305
        %v2307 = vadd.f32 %v2303, %v2306
        %vm2308 = vweird.f32 %v1731
        %vm2309 = vweird.f32 %v2303
        %vm2310 = vmor %vm2308, %vm2309
        %v2311 = vsel %vm2310, %v2303, %v2307
        %v2312 = vand.u32 2147483647, %v1731
        %vm2313 = vcmp.eq.f32.partialorder %v2312, 8.507059e+37
        %v2314 = vand.u32 %v1731, 2147483648
        %v2315 = vor.u32 1.1754944e-38, %v2314
        %v2316 = vsel %vm2313, %v2315, %v2311
        %v2317 = vmul.f32 1.0, %v2316
        %v2318 = vrcp.pop %v1734
        %v2319 = vmul.f32 %v1734, %v2318
        %v2320 = vsub.f32 1.0, %v2319
        %v2321 = vmul.f32 %v2318, %v2320
        %v2322 = vadd.f32 %v2318, %v2321
        %vm2323 = vweird.f32 %v1734
        %vm2324 = vweird.f32 %v2318
        %vm2325 = vmor %vm2323, %vm2324
        %v2326 = vsel %vm2325, %v2318, %v2322
        %v2327 = vand.u32 2147483647, %v1734
        %vm2328 = vcmp.eq.f32.partialorder %v2327, 8.507059e+37
        %v2329 = vand.u32 %v1734, 2147483648
        %v2330 = vor.u32 1.1754944e-38, %v2329
        %v2331 = vsel %vm2328, %v2330, %v2326
        %v2332 = vmul.f32 1.0, %v2331
        %v2333 = vrcp.pop %v1737
        %v2334 = vmul.f32 %v1737, %v2333
        %v2335 = vsub.f32 1.0, %v2334
        %v2336 = vmul.f32 %v2333, %v2335
        %v2337 = vadd.f32 %v2333, %v2336
        %vm2338 = vweird.f32 %v1737
        %vm2339 = vweird.f32 %v2333
        %vm2340 = vmor %vm2338, %vm2339
        %v2341 = vsel %vm2340, %v2333, %v2337
        %v2342 = vand.u32 2147483647, %v1737
        %vm2343 = vcmp.eq.f32.partialorder %v2342, 8.507059e+37
        %v2344 = vand.u32 %v1737, 2147483648
        %v2345 = vor.u32 1.1754944e-38, %v2344
        %v2346 = vsel %vm2343, %v2345, %v2341
        %v2347 = vmul.f32 1.0, %v2346
        %v2348 = vrcp.pop %v1740
        %v2349 = vmul.f32 %v1740, %v2348
        %v2350 = vsub.f32 1.0, %v2349
        %v2351 = vmul.f32 %v2348, %v2350
        %v2352 = vadd.f32 %v2348, %v2351
        %vm2353 = vweird.f32 %v1740
        %vm2354 = vweird.f32 %v2348
        %vm2355 = vmor %vm2353, %vm2354
        %v2356 = vsel %vm2355, %v2348, %v2352
        %v2357 = vand.u32 2147483647, %v1740
        %vm2358 = vcmp.eq.f32.partialorder %v2357, 8.507059e+37
        %v2359 = vand.u32 %v1740, 2147483648
        %v2360 = vor.u32 1.1754944e-38, %v2359
        %v2361 = vsel %vm2358, %v2360, %v2356
        %v2362 = vmul.f32 1.0, %v2361
        %v2363 = vrcp.pop %v1743
        %v2364 = vmul.f32 %v1743, %v2363
        %v2365 = vsub.f32 1.0, %v2364
        %v2366 = vmul.f32 %v2363, %v2365
        %v2367 = vadd.f32 %v2363, %v2366
        %vm2368 = vweird.f32 %v1743
        %vm2369 = vweird.f32 %v2363
        %vm2370 = vmor %vm2368, %vm2369
        %v2371 = vsel %vm2370, %v2363, %v2367
        %v2372 = vand.u32 2147483647, %v1743
        %vm2373 = vcmp.eq.f32.partialorder %v2372, 8.507059e+37
        %v2374 = vand.u32 %v1743, 2147483648
        %v2375 = vor.u32 1.1754944e-38, %v2374
        %v2376 = vsel %vm2373, %v2375, %v2371
        %v2377 = vmul.f32 1.0, %v2376
        %v2378 = vrcp.pop %v1746
        %v2379 = vmul.f32 %v1746, %v2378
        %v2380 = vsub.f32 1.0, %v2379
        %v2381 = vmul.f32 %v2378, %v2380
        %v2382 = vadd.f32 %v2378, %v2381
        %vm2383 = vweird.f32 %v1746
        %vm2384 = vweird.f32 %v2378
        %vm2385 = vmor %vm2383, %vm2384
        %v2386 = vsel %vm2385, %v2378, %v2382
        %v2387 = vand.u32 2147483647, %v1746
        %vm2388 = vcmp.eq.f32.partialorder %v2387, 8.507059e+37
        %v2389 = vand.u32 %v1746, 2147483648
        %v2390 = vor.u32 1.1754944e-38, %v2389
        %v2391 = vsel %vm2388, %v2390, %v2386
        %v2392 = vmul.f32 1.0, %v2391
        %v2393 = vrcp.pop %v1749
        %v2394 = vmul.f32 %v1749, %v2393
        %v2395 = vsub.f32 1.0, %v2394
        %v2396 = vmul.f32 %v2393, %v2395
        %v2397 = vadd.f32 %v2393, %v2396
        %vm2398 = vweird.f32 %v1749
        %vm2399 = vweird.f32 %v2393
        %vm2400 = vmor %vm2398, %vm2399
        %v2401 = vsel %vm2400, %v2393, %v2397
        %v2402 = vand.u32 2147483647, %v1749
        %vm2403 = vcmp.eq.f32.partialorder %v2402, 8.507059e+37
        %v2404 = vand.u32 %v1749, 2147483648
        %v2405 = vor.u32 1.1754944e-38, %v2404
        %v2406 = vsel %vm2403, %v2405, %v2401
        %v2407 = vmul.f32 1.0, %v2406
        %v2408 = vrcp.pop %v1752
        %v2409 = vmul.f32 %v1752, %v2408
        %v2410 = vsub.f32 1.0, %v2409
        %v2411 = vmul.f32 %v2408, %v2410
        %v2412 = vadd.f32 %v2408, %v2411
        %vm2413 = vweird.f32 %v1752
        %vm2414 = vweird.f32 %v2408
        %vm2415 = vmor %vm2413, %vm2414
        %v2416 = vsel %vm2415, %v2408, %v2412
        %v2417 = vand.u32 2147483647, %v1752
        %vm2418 = vcmp.eq.f32.partialorder %v2417, 8.507059e+37
        %v2419 = vand.u32 %v1752, 2147483648
        %v2420 = vor.u32 1.1754944e-38, %v2419
        %v2421 = vsel %vm2418, %v2420, %v2416
        %v2422 = vmul.f32 1.0, %v2421
        %v2423 = vrcp.pop %v1755
        %v2424 = vmul.f32 %v1755, %v2423
        %v2425 = vsub.f32 1.0, %v2424
        %v2426 = vmul.f32 %v2423, %v2425
        %v2427 = vadd.f32 %v2423, %v2426
        %vm2428 = vweird.f32 %v1755
        %vm2429 = vweird.f32 %v2423
        %vm2430 = vmor %vm2428, %vm2429
        %v2431 = vsel %vm2430, %v2423, %v2427
        %v2432 = vand.u32 2147483647, %v1755
        %vm2433 = vcmp.eq.f32.partialorder %v2432, 8.507059e+37
        %v2434 = vand.u32 %v1755, 2147483648
        %v2435 = vor.u32 1.1754944e-38, %v2434
        %v2436 = vsel %vm2433, %v2435, %v2431
        %v2437 = vmul.f32 1.0, %v2436
        %v2438 = vrcp.pop %v1758
        %v2439 = vmul.f32 %v1758, %v2438
        %v2440 = vsub.f32 1.0, %v2439
        %v2441 = vmul.f32 %v2438, %v2440
        %v2442 = vadd.f32 %v2438, %v2441
        %vm2443 = vweird.f32 %v1758
        %vm2444 = vweird.f32 %v2438
        %vm2445 = vmor %vm2443, %vm2444
        %v2446 = vsel %vm2445, %v2438, %v2442
        %v2447 = vand.u32 2147483647, %v1758
        %vm2448 = vcmp.eq.f32.partialorder %v2447, 8.507059e+37
        %v2449 = vand.u32 %v1758, 2147483648
        %v2450 = vor.u32 1.1754944e-38, %v2449
        %v2451 = vsel %vm2448, %v2450, %v2446
        %v2452 = vmul.f32 1.0, %v2451
        %v2453 = vrcp.pop %v1761
        %v2454 = vmul.f32 %v1761, %v2453
        %v2455 = vsub.f32 1.0, %v2454
        %v2456 = vmul.f32 %v2453, %v2455
        %v2457 = vadd.f32 %v2453, %v2456
        %vm2458 = vweird.f32 %v1761
        %vm2459 = vweird.f32 %v2453
        %vm2460 = vmor %vm2458, %vm2459
        %v2461 = vsel %vm2460, %v2453, %v2457
        %v2462 = vand.u32 2147483647, %v1761
        %vm2463 = vcmp.eq.f32.partialorder %v2462, 8.507059e+37
        %v2464 = vand.u32 %v1761, 2147483648
        %v2465 = vor.u32 1.1754944e-38, %v2464
        %v2466 = vsel %vm2463, %v2465, %v2461
        %v2467 = vmul.f32 1.0, %v2466
        %v2468 = vmul.f32 %v1893, %v2002
        %v2469 = vmul.f32 %v1896, %v2017
        %v2470 = vmul.f32 %v1899, %v2032
        %v2471 = vmul.f32 %v1902, %v2047
        %v2472 = vmul.f32 %v1905, %v2062
        %v2473 = vmul.f32 %v1908, %v2077
        %v2474 = vmul.f32 %v1911, %v2092
        %v2475 = vmul.f32 %v1914, %v2107
        %v2476 = vmul.f32 %v1917, %v2122
        %v2477 = vmul.f32 %v1920, %v2137
        %v2478 = vmul.f32 %v1923, %v2152
        %v2479 = vmul.f32 %v1926, %v2167
        %v2480 = vmul.f32 %v1929, %v2182
        %v2481 = vmul.f32 %v1932, %v2197
        %v2482 = vmul.f32 %v1935, %v2212
        %v2483 = vmul.f32 %v1938, %v2227
        %v2484 = vmul.f32 %v1941, %v2242
        %v2485 = vmul.f32 %v1944, %v2257
        %v2486 = vmul.f32 %v1947, %v2272
        %v2487 = vmul.f32 %v1950, %v2287
        %v2488 = vmul.f32 %v1953, %v2302
        %v2489 = vmul.f32 %v1956, %v2317
        %v2490 = vmul.f32 %v1959, %v2332
        %v2491 = vmul.f32 %v1962, %v2347
        %v2492 = vmul.f32 %v1965, %v2362
        %v2493 = vmul.f32 %v1968, %v2377
        %v2494 = vmul.f32 %v1971, %v2392
        %v2495 = vmul.f32 %v1974, %v2407
        %v2496 = vmul.f32 %v1977, %v2422
        %v2497 = vmul.f32 %v1980, %v2437
        %v2498 = vmul.f32 %v1983, %v2452
        %v2499 = vmul.f32 %v1986, %v2467
        %v2500 = vld [vmem:[#allocation2 + $0x80] sm:$0xff]
        %v2501 = vld [vmem:[#allocation2 + $0x88] sm:$0xff]
        %v2502 = vld [vmem:[#allocation2 + $0x90] sm:$0xff]
        %v2503 = vld [vmem:[#allocation2 + $0x98] sm:$0xff]
        %v2504 = vld [vmem:[#allocation2 + $0xa0] sm:$0xff]
        %v2505 = vld [vmem:[#allocation2 + $0xa8] sm:$0xff]
        %v2506 = vld [vmem:[#allocation2 + $0xb0] sm:$0xff]
        %v2507 = vld [vmem:[#allocation2 + $0xb8] sm:$0xff]
        %v2508 = vld [vmem:[#allocation2 + $0xc0] sm:$0xff]
        %v2509 = vld [vmem:[#allocation2 + $0xc8] sm:$0xff]
        %v2510 = vld [vmem:[#allocation2 + $0xd0] sm:$0xff]
        %v2511 = vld [vmem:[#allocation2 + $0xd8] sm:$0xff]
        %v2512 = vld [vmem:[#allocation2 + $0xe0] sm:$0xff]
        %v2513 = vld [vmem:[#allocation2 + $0xe8] sm:$0xff]
        %v2514 = vld [vmem:[#allocation2 + $0xf0] sm:$0xff]
        %v2515 = vld [vmem:[#allocation2 + $0xf8] sm:$0xff]
        %v2516 = vld [vmem:[#allocation2 + $0x180] sm:$0xff]
        %v2517 = vld [vmem:[#allocation2 + $0x188] sm:$0xff]
        %v2518 = vld [vmem:[#allocation2 + $0x190] sm:$0xff]
        %v2519 = vld [vmem:[#allocation2 + $0x198] sm:$0xff]
        %v2520 = vld [vmem:[#allocation2 + $0x1a0] sm:$0xff]
        %v2521 = vld [vmem:[#allocation2 + $0x1a8] sm:$0xff]
        %v2522 = vld [vmem:[#allocation2 + $0x1b0] sm:$0xff]
        %v2523 = vld [vmem:[#allocation2 + $0x1b8] sm:$0xff]
        %v2524 = vld [vmem:[#allocation2 + $0x1c0] sm:$0xff]
        %v2525 = vld [vmem:[#allocation2 + $0x1c8] sm:$0xff]
        %v2526 = vld [vmem:[#allocation2 + $0x1d0] sm:$0xff]
        %v2527 = vld [vmem:[#allocation2 + $0x1d8] sm:$0xff]
        %v2528 = vld [vmem:[#allocation2 + $0x1e0] sm:$0xff]
        %v2529 = vld [vmem:[#allocation2 + $0x1e8] sm:$0xff]
        %v2530 = vld [vmem:[#allocation2 + $0x1f0] sm:$0xff]
        %v2531 = vld [vmem:[#allocation2 + $0x1f8] sm:$0xff]
        %2532 = vxpose.xlu0.b32.start [1/16] %v871, 128
        %2533 = vxpose.xlu0.b32.cont [2/16] %v874, 128
        %2534 = vxpose.xlu0.b32.cont [3/16] %v877, 128
        %2535 = vxpose.xlu0.b32.cont [4/16] %v880, 128
        %2536 = vxpose.xlu0.b32.cont [5/16] %v883, 128
        %2537 = vxpose.xlu0.b32.cont [6/16] %v886, 128
        %2538 = vxpose.xlu0.b32.cont [7/16] %v889, 128
        %2539 = vxpose.xlu0.b32.cont [8/16] %v892, 128
        %2540 = vxpose.xlu0.b32.cont [9/16] 0.0, 128
        %2541 = vxpose.xlu0.b32.cont [10/16] 0.0, 128
        %2542 = vxpose.xlu0.b32.cont [11/16] 0.0, 128
        %2543 = vxpose.xlu0.b32.cont [12/16] 0.0, 128
        %2544 = vxpose.xlu0.b32.cont [13/16] 0.0, 128
        %2545 = vxpose.xlu0.b32.cont [14/16] 0.0, 128
        %2546 = vxpose.xlu0.b32.cont [15/16] 0.0, 128
        %2547 = vxpose.xlu0.b32.end [16/16] 0.0, 128
        %v2548 = vpop.trf.xlu0
        %v2549 = vpop.trf.xlu0
        %v2550 = vpop.trf.xlu0
        %v2551 = vpop.trf.xlu0
        %v2552 = vpop.trf.xlu0
        %v2553 = vpop.trf.xlu0
        %v2554 = vpop.trf.xlu0
        %v2555 = vpop.trf.xlu0
        %v2556 = vpop.trf.xlu0
        %v2557 = vpop.trf.xlu0
        %v2558 = vpop.trf.xlu0
        %v2559 = vpop.trf.xlu0
        %v2560 = vpop.trf.xlu0
        %v2561 = vpop.trf.xlu0
        %v2562 = vpop.trf.xlu0
        %v2563 = vpop.trf.xlu0
        %2564 = vxpose.xlu0.b32.start [1/16] %v936, 128
        %2565 = vxpose.xlu0.b32.cont [2/16] %v939, 128
        %2566 = vxpose.xlu0.b32.cont [3/16] %v942, 128
        %2567 = vxpose.xlu0.b32.cont [4/16] %v945, 128
        %2568 = vxpose.xlu0.b32.cont [5/16] %v948, 128
        %2569 = vxpose.xlu0.b32.cont [6/16] %v951, 128
        %2570 = vxpose.xlu0.b32.cont [7/16] %v954, 128
        %2571 = vxpose.xlu0.b32.cont [8/16] %v957, 128
        %2572 = vxpose.xlu0.b32.cont [9/16] 0.0, 128
        %2573 = vxpose.xlu0.b32.cont [10/16] 0.0, 128
        %2574 = vxpose.xlu0.b32.cont [11/16] 0.0, 128
        %2575 = vxpose.xlu0.b32.cont [12/16] 0.0, 128
        %2576 = vxpose.xlu0.b32.cont [13/16] 0.0, 128
        %2577 = vxpose.xlu0.b32.cont [14/16] 0.0, 128
        %2578 = vxpose.xlu0.b32.cont [15/16] 0.0, 128
        %2579 = vxpose.xlu0.b32.end [16/16] 0.0, 128
        %v2580 = vpop.trf.xlu0
        %v2581 = vpop.trf.xlu0
        %v2582 = vpop.trf.xlu0
        %v2583 = vpop.trf.xlu0
        %v2584 = vpop.trf.xlu0
        %v2585 = vpop.trf.xlu0
        %v2586 = vpop.trf.xlu0
        %v2587 = vpop.trf.xlu0
        %v2588 = vpop.trf.xlu0
        %v2589 = vpop.trf.xlu0
        %v2590 = vpop.trf.xlu0
        %v2591 = vpop.trf.xlu0
        %v2592 = vpop.trf.xlu0
        %v2593 = vpop.trf.xlu0
        %v2594 = vpop.trf.xlu0
        %v2595 = vpop.trf.xlu0
        %v2597 = vsel %vm1055, %v2548, 0
        %v2600 = vsel %vm1055, %v2549, 0
        %v2603 = vsel %vm1055, %v2550, 0
        %v2606 = vsel %vm1055, %v2551, 0
        %v2609 = vsel %vm1055, %v2552, 0
        %v2612 = vsel %vm1055, %v2553, 0
        %v2615 = vsel %vm1055, %v2554, 0
        %v2618 = vsel %vm1055, %v2555, 0
        %v2621 = vsel %vm1055, %v2556, 0
        %v2624 = vsel %vm1055, %v2557, 0
        %v2627 = vsel %vm1055, %v2558, 0
        %v2630 = vsel %vm1055, %v2559, 0
        %v2633 = vsel %vm1055, %v2560, 0
        %v2636 = vsel %vm1055, %v2561, 0
        %v2639 = vsel %vm1055, %v2562, 0
        %v2642 = vsel %vm1055, %v2563, 0
        %v2645 = vsel %vm1055, %v2580, 0
        %v2648 = vsel %vm1055, %v2581, 0
        %v2651 = vsel %vm1055, %v2582, 0
        %v2654 = vsel %vm1055, %v2583, 0
        %v2657 = vsel %vm1055, %v2584, 0
        %v2660 = vsel %vm1055, %v2585, 0
        %v2663 = vsel %vm1055, %v2586, 0
        %v2666 = vsel %vm1055, %v2587, 0
        %v2669 = vsel %vm1055, %v2588, 0
        %v2672 = vsel %vm1055, %v2589, 0
        %v2675 = vsel %vm1055, %v2590, 0
        %v2678 = vsel %vm1055, %v2591, 0
        %v2681 = vsel %vm1055, %v2592, 0
        %v2684 = vsel %vm1055, %v2593, 0
        %v2687 = vsel %vm1055, %v2594, 0
        %v2690 = vsel %vm1055, %v2595, 0
        %2692 = vmatpush.msra.mxu0 0.0
        %2693 = vmatpush.msra.mxu0 0.0
        %2694 = vmatpush.msra.mxu0 0.0
        %2695 = vmatpush.msra.mxu0 0.0
        %2696 = vmatpush.msra.mxu0 0.0
        %2697 = vmatpush.msra.mxu0 0.0
        %2698 = vmatpush.msra.mxu0 0.0
        %2699 = vmatpush.msra.mxu0 0.0
        %2700 = vmatpush.msra.mxu0 %v2514
        %2701 = vmatpush.msra.mxu0 %v2512
        %2702 = vmatpush.msra.mxu0 %v2510
        %2703 = vmatpush.msra.mxu0 %v2508
        %2704 = vmatpush.msra.mxu0 %v2506
        %2705 = vmatpush.msra.mxu0 %v2504
        %2706 = vmatpush.msra.mxu0 %v2502
        %2707 = vmatpush.msra.mxu0 %v2500
        %2708 = vmatmul.f32.gmra.mxu0 %v2597
        %v2709 = vpop.f32.mrf.mxu0
        %v2710 = vadd.f32 0.0, %v2709
        %2711 = vmatmul.f32.gmra.mxu0 %v2600
        %v2712 = vpop.f32.mrf.mxu0
        %v2713 = vadd.f32 0.0, %v2712
        %2714 = vmatmul.f32.gmra.mxu0 %v2603
        %v2715 = vpop.f32.mrf.mxu0
        %v2716 = vadd.f32 0.0, %v2715
        %2717 = vmatmul.f32.gmra.mxu0 %v2606
        %v2718 = vpop.f32.mrf.mxu0
        %v2719 = vadd.f32 0.0, %v2718
        %2720 = vmatmul.f32.gmra.mxu0 %v2609
        %v2721 = vpop.f32.mrf.mxu0
        %v2722 = vadd.f32 0.0, %v2721
        %2723 = vmatmul.f32.gmra.mxu0 %v2612
        %v2724 = vpop.f32.mrf.mxu0
        %v2725 = vadd.f32 0.0, %v2724
        %2726 = vmatmul.f32.gmra.mxu0 %v2615
        %v2727 = vpop.f32.mrf.mxu0
        %v2728 = vadd.f32 0.0, %v2727
        %2729 = vmatmul.f32.gmra.mxu0 %v2618
        %v2730 = vpop.f32.mrf.mxu0
        %v2731 = vadd.f32 0.0, %v2730
        %2732 = vmatmul.f32.gmra.mxu0 %v2621
        %v2733 = vpop.f32.mrf.mxu0
        %v2734 = vadd.f32 0.0, %v2733
        %2735 = vmatmul.f32.gmra.mxu0 %v2624
        %v2736 = vpop.f32.mrf.mxu0
        %v2737 = vadd.f32 0.0, %v2736
        %2738 = vmatmul.f32.gmra.mxu0 %v2627
        %v2739 = vpop.f32.mrf.mxu0
        %v2740 = vadd.f32 0.0, %v2739
        %2741 = vmatmul.f32.gmra.mxu0 %v2630
        %v2742 = vpop.f32.mrf.mxu0
        %v2743 = vadd.f32 0.0, %v2742
        %2744 = vmatmul.f32.gmra.mxu0 %v2633
        %v2745 = vpop.f32.mrf.mxu0
        %v2746 = vadd.f32 0.0, %v2745
        %2747 = vmatmul.f32.gmra.mxu0 %v2636
        %v2748 = vpop.f32.mrf.mxu0
        %v2749 = vadd.f32 0.0, %v2748
        %2750 = vmatmul.f32.gmra.mxu0 %v2639
        %v2751 = vpop.f32.mrf.mxu0
        %v2752 = vadd.f32 0.0, %v2751
        %2753 = vmatmul.f32.gmra.mxu0 %v2642
        %v2754 = vpop.f32.mrf.mxu0
        %v2755 = vadd.f32 0.0, %v2754
        %2756 = vmatmul.f32.gmra.mxu0 %v2645
        %v2757 = vpop.f32.mrf.mxu0
        %v2758 = vadd.f32 0.0, %v2757
        %2759 = vmatmul.f32.gmra.mxu0 %v2648
        %v2760 = vpop.f32.mrf.mxu0
        %v2761 = vadd.f32 0.0, %v2760
        %2762 = vmatmul.f32.gmra.mxu0 %v2651
        %v2763 = vpop.f32.mrf.mxu0
        %v2764 = vadd.f32 0.0, %v2763
        %2765 = vmatmul.f32.gmra.mxu0 %v2654
        %v2766 = vpop.f32.mrf.mxu0
        %v2767 = vadd.f32 0.0, %v2766
        %2768 = vmatmul.f32.gmra.mxu0 %v2657
        %v2769 = vpop.f32.mrf.mxu0
        %v2770 = vadd.f32 0.0, %v2769
        %2771 = vmatmul.f32.gmra.mxu0 %v2660
        %v2772 = vpop.f32.mrf.mxu0
        %v2773 = vadd.f32 0.0, %v2772
        %2774 = vmatmul.f32.gmra.mxu0 %v2663
        %v2775 = vpop.f32.mrf.mxu0
        %v2776 = vadd.f32 0.0, %v2775
        %2777 = vmatmul.f32.gmra.mxu0 %v2666
        %v2778 = vpop.f32.mrf.mxu0
        %v2779 = vadd.f32 0.0, %v2778
        %2780 = vmatmul.f32.gmra.mxu0 %v2669
        %v2781 = vpop.f32.mrf.mxu0
        %v2782 = vadd.f32 0.0, %v2781
        %2783 = vmatmul.f32.gmra.mxu0 %v2672
        %v2784 = vpop.f32.mrf.mxu0
        %v2785 = vadd.f32 0.0, %v2784
        %2786 = vmatmul.f32.gmra.mxu0 %v2675
        %v2787 = vpop.f32.mrf.mxu0
        %v2788 = vadd.f32 0.0, %v2787
        %2789 = vmatmul.f32.gmra.mxu0 %v2678
        %v2790 = vpop.f32.mrf.mxu0
        %v2791 = vadd.f32 0.0, %v2790
        %2792 = vmatmul.f32.gmra.mxu0 %v2681
        %v2793 = vpop.f32.mrf.mxu0
        %v2794 = vadd.f32 0.0, %v2793
        %2795 = vmatmul.f32.gmra.mxu0 %v2684
        %v2796 = vpop.f32.mrf.mxu0
        %v2797 = vadd.f32 0.0, %v2796
        %2798 = vmatmul.f32.gmra.mxu0 %v2687
        %v2799 = vpop.f32.mrf.mxu0
        %v2800 = vadd.f32 0.0, %v2799
        %2801 = vmatmul.f32.gmra.mxu0 %v2690
        %v2802 = vpop.f32.mrf.mxu0
        %v2803 = vadd.f32 0.0, %v2802
        %2804 = vdwg.mxu0
        %2805 = vmatpush.msra.mxu0 0.0
        %2806 = vmatpush.msra.mxu0 0.0
        %2807 = vmatpush.msra.mxu0 0.0
        %2808 = vmatpush.msra.mxu0 0.0
        %2809 = vmatpush.msra.mxu0 0.0
        %2810 = vmatpush.msra.mxu0 0.0
        %2811 = vmatpush.msra.mxu0 0.0
        %2812 = vmatpush.msra.mxu0 0.0
        %2813 = vmatpush.msra.mxu0 %v2515
        %2814 = vmatpush.msra.mxu0 %v2513
        %2815 = vmatpush.msra.mxu0 %v2511
        %2816 = vmatpush.msra.mxu0 %v2509
        %2817 = vmatpush.msra.mxu0 %v2507
        %2818 = vmatpush.msra.mxu0 %v2505
        %2819 = vmatpush.msra.mxu0 %v2503
        %2820 = vmatpush.msra.mxu0 %v2501
        %2821 = vmatmul.f32.gmra.mxu0 %v2597
        %v2822 = vpop.f32.mrf.mxu0
        %v2823 = vadd.f32 0.0, %v2822
        %2824 = vmatmul.f32.gmra.mxu0 %v2600
        %v2825 = vpop.f32.mrf.mxu0
        %v2826 = vadd.f32 0.0, %v2825
        %2827 = vmatmul.f32.gmra.mxu0 %v2603
        %v2828 = vpop.f32.mrf.mxu0
        %v2829 = vadd.f32 0.0, %v2828
        %2830 = vmatmul.f32.gmra.mxu0 %v2606
        %v2831 = vpop.f32.mrf.mxu0
        %v2832 = vadd.f32 0.0, %v2831
        %2833 = vmatmul.f32.gmra.mxu0 %v2609
        %v2834 = vpop.f32.mrf.mxu0
        %v2835 = vadd.f32 0.0, %v2834
        %2836 = vmatmul.f32.gmra.mxu0 %v2612
        %v2837 = vpop.f32.mrf.mxu0
        %v2838 = vadd.f32 0.0, %v2837
        %2839 = vmatmul.f32.gmra.mxu0 %v2615
        %v2840 = vpop.f32.mrf.mxu0
        %v2841 = vadd.f32 0.0, %v2840
        %2842 = vmatmul.f32.gmra.mxu0 %v2618
        %v2843 = vpop.f32.mrf.mxu0
        %v2844 = vadd.f32 0.0, %v2843
        %2845 = vmatmul.f32.gmra.mxu0 %v2621
        %v2846 = vpop.f32.mrf.mxu0
        %v2847 = vadd.f32 0.0, %v2846
        %2848 = vmatmul.f32.gmra.mxu0 %v2624
        %v2849 = vpop.f32.mrf.mxu0
        %v2850 = vadd.f32 0.0, %v2849
        %2851 = vmatmul.f32.gmra.mxu0 %v2627
        %v2852 = vpop.f32.mrf.mxu0
        %v2853 = vadd.f32 0.0, %v2852
        %2854 = vmatmul.f32.gmra.mxu0 %v2630
        %v2855 = vpop.f32.mrf.mxu0
        %v2856 = vadd.f32 0.0, %v2855
        %2857 = vmatmul.f32.gmra.mxu0 %v2633
        %v2858 = vpop.f32.mrf.mxu0
        %v2859 = vadd.f32 0.0, %v2858
        %2860 = vmatmul.f32.gmra.mxu0 %v2636
        %v2861 = vpop.f32.mrf.mxu0
        %v2862 = vadd.f32 0.0, %v2861
        %2863 = vmatmul.f32.gmra.mxu0 %v2639
        %v2864 = vpop.f32.mrf.mxu0
        %v2865 = vadd.f32 0.0, %v2864
        %2866 = vmatmul.f32.gmra.mxu0 %v2642
        %v2867 = vpop.f32.mrf.mxu0
        %v2868 = vadd.f32 0.0, %v2867
        %2869 = vmatmul.f32.gmra.mxu0 %v2645
        %v2870 = vpop.f32.mrf.mxu0
        %v2871 = vadd.f32 0.0, %v2870
        %2872 = vmatmul.f32.gmra.mxu0 %v2648
        %v2873 = vpop.f32.mrf.mxu0
        %v2874 = vadd.f32 0.0, %v2873
        %2875 = vmatmul.f32.gmra.mxu0 %v2651
        %v2876 = vpop.f32.mrf.mxu0
        %v2877 = vadd.f32 0.0, %v2876
        %2878 = vmatmul.f32.gmra.mxu0 %v2654
        %v2879 = vpop.f32.mrf.mxu0
        %v2880 = vadd.f32 0.0, %v2879
        %2881 = vmatmul.f32.gmra.mxu0 %v2657
        %v2882 = vpop.f32.mrf.mxu0
        %v2883 = vadd.f32 0.0, %v2882
        %2884 = vmatmul.f32.gmra.mxu0 %v2660
        %v2885 = vpop.f32.mrf.mxu0
        %v2886 = vadd.f32 0.0, %v2885
        %2887 = vmatmul.f32.gmra.mxu0 %v2663
        %v2888 = vpop.f32.mrf.mxu0
        %v2889 = vadd.f32 0.0, %v2888
        %2890 = vmatmul.f32.gmra.mxu0 %v2666
        %v2891 = vpop.f32.mrf.mxu0
        %v2892 = vadd.f32 0.0, %v2891
        %2893 = vmatmul.f32.gmra.mxu0 %v2669
        %v2894 = vpop.f32.mrf.mxu0
        %v2895 = vadd.f32 0.0, %v2894
        %2896 = vmatmul.f32.gmra.mxu0 %v2672
        %v2897 = vpop.f32.mrf.mxu0
        %v2898 = vadd.f32 0.0, %v2897
        %2899 = vmatmul.f32.gmra.mxu0 %v2675
        %v2900 = vpop.f32.mrf.mxu0
        %v2901 = vadd.f32 0.0, %v2900
        %2902 = vmatmul.f32.gmra.mxu0 %v2678
        %v2903 = vpop.f32.mrf.mxu0
        %v2904 = vadd.f32 0.0, %v2903
        %2905 = vmatmul.f32.gmra.mxu0 %v2681
        %v2906 = vpop.f32.mrf.mxu0
        %v2907 = vadd.f32 0.0, %v2906
        %2908 = vmatmul.f32.gmra.mxu0 %v2684
        %v2909 = vpop.f32.mrf.mxu0
        %v2910 = vadd.f32 0.0, %v2909
        %2911 = vmatmul.f32.gmra.mxu0 %v2687
        %v2912 = vpop.f32.mrf.mxu0
        %v2913 = vadd.f32 0.0, %v2912
        %2914 = vmatmul.f32.gmra.mxu0 %v2690
        %v2915 = vpop.f32.mrf.mxu0
        %v2916 = vadd.f32 0.0, %v2915
        %2917 = vdwg.mxu0
        %v2918 = vmax.f32 %v2710, %v2823
        %2919 = vmax.xlane.f32.xlu0 %v2918
        %v2920 = vpop.xlane.xlu0 %2919
        %v2921 = vmax.f32 %v2713, %v2826
        %2922 = vmax.xlane.f32.xlu0 %v2921
        %v2923 = vpop.xlane.xlu0 %2922
        %v2924 = vmax.f32 %v2716, %v2829
        %2925 = vmax.xlane.f32.xlu0 %v2924
        %v2926 = vpop.xlane.xlu0 %2925
        %v2927 = vmax.f32 %v2719, %v2832
        %2928 = vmax.xlane.f32.xlu0 %v2927
        %v2929 = vpop.xlane.xlu0 %2928
        %v2930 = vmax.f32 %v2722, %v2835
        %2931 = vmax.xlane.f32.xlu0 %v2930
        %v2932 = vpop.xlane.xlu0 %2931
        %v2933 = vmax.f32 %v2725, %v2838
        %2934 = vmax.xlane.f32.xlu0 %v2933
        %v2935 = vpop.xlane.xlu0 %2934
        %v2936 = vmax.f32 %v2728, %v2841
        %2937 = vmax.xlane.f32.xlu0 %v2936
        %v2938 = vpop.xlane.xlu0 %2937
        %v2939 = vmax.f32 %v2731, %v2844
        %2940 = vmax.xlane.f32.xlu0 %v2939
        %v2941 = vpop.xlane.xlu0 %2940
        %v2942 = vmax.f32 %v2734, %v2847
        %2943 = vmax.xlane.f32.xlu0 %v2942
        %v2944 = vpop.xlane.xlu0 %2943
        %v2945 = vmax.f32 %v2737, %v2850
        %2946 = vmax.xlane.f32.xlu0 %v2945
        %v2947 = vpop.xlane.xlu0 %2946
        %v2948 = vmax.f32 %v2740, %v2853
        %2949 = vmax.xlane.f32.xlu0 %v2948
        %v2950 = vpop.xlane.xlu0 %2949
        %v2951 = vmax.f32 %v2743, %v2856
        %2952 = vmax.xlane.f32.xlu0 %v2951
        %v2953 = vpop.xlane.xlu0 %2952
        %v2954 = vmax.f32 %v2746, %v2859
        %2955 = vmax.xlane.f32.xlu0 %v2954
        %v2956 = vpop.xlane.xlu0 %2955
        %v2957 = vmax.f32 %v2749, %v2862
        %2958 = vmax.xlane.f32.xlu0 %v2957
        %v2959 = vpop.xlane.xlu0 %2958
        %v2960 = vmax.f32 %v2752, %v2865
        %2961 = vmax.xlane.f32.xlu0 %v2960
        %v2962 = vpop.xlane.xlu0 %2961
        %v2963 = vmax.f32 %v2755, %v2868
        %2964 = vmax.xlane.f32.xlu0 %v2963
        %v2965 = vpop.xlane.xlu0 %2964
        %v2966 = vmax.f32 %v2758, %v2871
        %2967 = vmax.xlane.f32.xlu0 %v2966
        %v2968 = vpop.xlane.xlu0 %2967
        %v2969 = vmax.f32 %v2761, %v2874
        %2970 = vmax.xlane.f32.xlu0 %v2969
        %v2971 = vpop.xlane.xlu0 %2970
        %v2972 = vmax.f32 %v2764, %v2877
        %2973 = vmax.xlane.f32.xlu0 %v2972
        %v2974 = vpop.xlane.xlu0 %2973
        %v2975 = vmax.f32 %v2767, %v2880
        %2976 = vmax.xlane.f32.xlu0 %v2975
        %v2977 = vpop.xlane.xlu0 %2976
        %v2978 = vmax.f32 %v2770, %v2883
        %2979 = vmax.xlane.f32.xlu0 %v2978
        %v2980 = vpop.xlane.xlu0 %2979
        %v2981 = vmax.f32 %v2773, %v2886
        %2982 = vmax.xlane.f32.xlu0 %v2981
        %v2983 = vpop.xlane.xlu0 %2982
        %v2984 = vmax.f32 %v2776, %v2889
        %2985 = vmax.xlane.f32.xlu0 %v2984
        %v2986 = vpop.xlane.xlu0 %2985
        %v2987 = vmax.f32 %v2779, %v2892
        %2988 = vmax.xlane.f32.xlu0 %v2987
        %v2989 = vpop.xlane.xlu0 %2988
        %v2990 = vmax.f32 %v2782, %v2895
        %2991 = vmax.xlane.f32.xlu0 %v2990
        %v2992 = vpop.xlane.xlu0 %2991
        %v2993 = vmax.f32 %v2785, %v2898
        %2994 = vmax.xlane.f32.xlu0 %v2993
        %v2995 = vpop.xlane.xlu0 %2994
        %v2996 = vmax.f32 %v2788, %v2901
        %2997 = vmax.xlane.f32.xlu0 %v2996
        %v2998 = vpop.xlane.xlu0 %2997
        %v2999 = vmax.f32 %v2791, %v2904
        %3000 = vmax.xlane.f32.xlu0 %v2999
        %v3001 = vpop.xlane.xlu0 %3000
        %v3002 = vmax.f32 %v2794, %v2907
        %3003 = vmax.xlane.f32.xlu0 %v3002
        %v3004 = vpop.xlane.xlu0 %3003
        %v3005 = vmax.f32 %v2797, %v2910
        %3006 = vmax.xlane.f32.xlu0 %v3005
        %v3007 = vpop.xlane.xlu0 %3006
        %v3008 = vmax.f32 %v2800, %v2913
        %3009 = vmax.xlane.f32.xlu0 %v3008
        %v3010 = vpop.xlane.xlu0 %3009
        %v3011 = vmax.f32 %v2803, %v2916
        %3012 = vmax.xlane.f32.xlu0 %v3011
        %v3013 = vpop.xlane.xlu0 %3012
        %v3014 = vsub.f32 %v2710, %v2920
        %v3015 = vsub.f32 %v2823, %v2920
        %v3016 = vsub.f32 %v2713, %v2923
        %v3017 = vsub.f32 %v2826, %v2923
        %v3018 = vsub.f32 %v2716, %v2926
        %v3019 = vsub.f32 %v2829, %v2926
        %v3020 = vsub.f32 %v2719, %v2929
        %v3021 = vsub.f32 %v2832, %v2929
        %v3022 = vsub.f32 %v2722, %v2932
        %v3023 = vsub.f32 %v2835, %v2932
        %v3024 = vsub.f32 %v2725, %v2935
        %v3025 = vsub.f32 %v2838, %v2935
        %v3026 = vsub.f32 %v2728, %v2938
        %v3027 = vsub.f32 %v2841, %v2938
        %v3028 = vsub.f32 %v2731, %v2941
        %v3029 = vsub.f32 %v2844, %v2941
        %v3030 = vsub.f32 %v2734, %v2944
        %v3031 = vsub.f32 %v2847, %v2944
        %v3032 = vsub.f32 %v2737, %v2947
        %v3033 = vsub.f32 %v2850, %v2947
        %v3034 = vsub.f32 %v2740, %v2950
        %v3035 = vsub.f32 %v2853, %v2950
        %v3036 = vsub.f32 %v2743, %v2953
        %v3037 = vsub.f32 %v2856, %v2953
        %v3038 = vsub.f32 %v2746, %v2956
        %v3039 = vsub.f32 %v2859, %v2956
        %v3040 = vsub.f32 %v2749, %v2959
        %v3041 = vsub.f32 %v2862, %v2959
        %v3042 = vsub.f32 %v2752, %v2962
        %v3043 = vsub.f32 %v2865, %v2962
        %v3044 = vsub.f32 %v2755, %v2965
        %v3045 = vsub.f32 %v2868, %v2965
        %v3046 = vsub.f32 %v2758, %v2968
        %v3047 = vsub.f32 %v2871, %v2968
        %v3048 = vsub.f32 %v2761, %v2971
        %v3049 = vsub.f32 %v2874, %v2971
        %v3050 = vsub.f32 %v2764, %v2974
        %v3051 = vsub.f32 %v2877, %v2974
        %v3052 = vsub.f32 %v2767, %v2977
        %v3053 = vsub.f32 %v2880, %v2977
        %v3054 = vsub.f32 %v2770, %v2980
        %v3055 = vsub.f32 %v2883, %v2980
        %v3056 = vsub.f32 %v2773, %v2983
        %v3057 = vsub.f32 %v2886, %v2983
        %v3058 = vsub.f32 %v2776, %v2986
        %v3059 = vsub.f32 %v2889, %v2986
        %v3060 = vsub.f32 %v2779, %v2989
        %v3061 = vsub.f32 %v2892, %v2989
        %v3062 = vsub.f32 %v2782, %v2992
        %v3063 = vsub.f32 %v2895, %v2992
        %v3064 = vsub.f32 %v2785, %v2995
        %v3065 = vsub.f32 %v2898, %v2995
        %v3066 = vsub.f32 %v2788, %v2998
        %v3067 = vsub.f32 %v2901, %v2998
        %v3068 = vsub.f32 %v2791, %v3001
        %v3069 = vsub.f32 %v2904, %v3001
        %v3070 = vsub.f32 %v2794, %v3004
        %v3071 = vsub.f32 %v2907, %v3004
        %v3072 = vsub.f32 %v2797, %v3007
        %v3073 = vsub.f32 %v2910, %v3007
        %v3074 = vsub.f32 %v2800, %v3010
        %v3075 = vsub.f32 %v2913, %v3010
        %v3076 = vsub.f32 %v2803, %v3013
        %v3077 = vsub.f32 %v2916, %v3013
        %v3078 = vmul.f32 %v3014, 1.442695
        %v3079 = vpow.pop %v3078
        %v3080 = vmul.f32 %v3015, 1.442695
        %v3081 = vpow.pop %v3080
        %v3082 = vmul.f32 %v3016, 1.442695
        %v3083 = vpow.pop %v3082
        %v3084 = vmul.f32 %v3017, 1.442695
        %v3085 = vpow.pop %v3084
        %v3086 = vmul.f32 %v3018, 1.442695
        %v3087 = vpow.pop %v3086
        %v3088 = vmul.f32 %v3019, 1.442695
        %v3089 = vpow.pop %v3088
        %v3090 = vmul.f32 %v3020, 1.442695
        %v3091 = vpow.pop %v3090
        %v3092 = vmul.f32 %v3021, 1.442695
        %v3093 = vpow.pop %v3092
        %v3094 = vmul.f32 %v3022, 1.442695
        %v3095 = vpow.pop %v3094
        %v3096 = vmul.f32 %v3023, 1.442695
        %v3097 = vpow.pop %v3096
        %v3098 = vmul.f32 %v3024, 1.442695
        %v3099 = vpow.pop %v3098
        %v3100 = vmul.f32 %v3025, 1.442695
        %v3101 = vpow.pop %v3100
        %v3102 = vmul.f32 %v3026, 1.442695
        %v3103 = vpow.pop %v3102
        %v3104 = vmul.f32 %v3027, 1.442695
        %v3105 = vpow.pop %v3104
        %v3106 = vmul.f32 %v3028, 1.442695
        %v3107 = vpow.pop %v3106
        %v3108 = vmul.f32 %v3029, 1.442695
        %v3109 = vpow.pop %v3108
        %v3110 = vmul.f32 %v3030, 1.442695
        %v3111 = vpow.pop %v3110
        %v3112 = vmul.f32 %v3031, 1.442695
        %v3113 = vpow.pop %v3112
        %v3114 = vmul.f32 %v3032, 1.442695
        %v3115 = vpow.pop %v3114
        %v3116 = vmul.f32 %v3033, 1.442695
        %v3117 = vpow.pop %v3116
        %v3118 = vmul.f32 %v3034, 1.442695
        %v3119 = vpow.pop %v3118
        %v3120 = vmul.f32 %v3035, 1.442695
        %v3121 = vpow.pop %v3120
        %v3122 = vmul.f32 %v3036, 1.442695
        %v3123 = vpow.pop %v3122
        %v3124 = vmul.f32 %v3037, 1.442695
        %v3125 = vpow.pop %v3124
        %v3126 = vmul.f32 %v3038, 1.442695
        %v3127 = vpow.pop %v3126
        %v3128 = vmul.f32 %v3039, 1.442695
        %v3129 = vpow.pop %v3128
        %v3130 = vmul.f32 %v3040, 1.442695
        %v3131 = vpow.pop %v3130
        %v3132 = vmul.f32 %v3041, 1.442695
        %v3133 = vpow.pop %v3132
        %v3134 = vmul.f32 %v3042, 1.442695
        %v3135 = vpow.pop %v3134
        %v3136 = vmul.f32 %v3043, 1.442695
        %v3137 = vpow.pop %v3136
        %v3138 = vmul.f32 %v3044, 1.442695
        %v3139 = vpow.pop %v3138
        %v3140 = vmul.f32 %v3045, 1.442695
        %v3141 = vpow.pop %v3140
        %v3142 = vmul.f32 %v3046, 1.442695
        %v3143 = vpow.pop %v3142
        %v3144 = vmul.f32 %v3047, 1.442695
        %v3145 = vpow.pop %v3144
        %v3146 = vmul.f32 %v3048, 1.442695
        %v3147 = vpow.pop %v3146
        %v3148 = vmul.f32 %v3049, 1.442695
        %v3149 = vpow.pop %v3148
        %v3150 = vmul.f32 %v3050, 1.442695
        %v3151 = vpow.pop %v3150
        %v3152 = vmul.f32 %v3051, 1.442695
        %v3153 = vpow.pop %v3152
        %v3154 = vmul.f32 %v3052, 1.442695
        %v3155 = vpow.pop %v3154
        %v3156 = vmul.f32 %v3053, 1.442695
        %v3157 = vpow.pop %v3156
        %v3158 = vmul.f32 %v3054, 1.442695
        %v3159 = vpow.pop %v3158
        %v3160 = vmul.f32 %v3055, 1.442695
        %v3161 = vpow.pop %v3160
        %v3162 = vmul.f32 %v3056, 1.442695
        %v3163 = vpow.pop %v3162
        %v3164 = vmul.f32 %v3057, 1.442695
        %v3165 = vpow.pop %v3164
        %v3166 = vmul.f32 %v3058, 1.442695
        %v3167 = vpow.pop %v3166
        %v3168 = vmul.f32 %v3059, 1.442695
        %v3169 = vpow.pop %v3168
        %v3170 = vmul.f32 %v3060, 1.442695
        %v3171 = vpow.pop %v3170
        %v3172 = vmul.f32 %v3061, 1.442695
        %v3173 = vpow.pop %v3172
        %v3174 = vmul.f32 %v3062, 1.442695
        %v3175 = vpow.pop %v3174
        %v3176 = vmul.f32 %v3063, 1.442695
        %v3177 = vpow.pop %v3176
        %v3178 = vmul.f32 %v3064, 1.442695
        %v3179 = vpow.pop %v3178
        %v3180 = vmul.f32 %v3065, 1.442695
        %v3181 = vpow.pop %v3180
        %v3182 = vmul.f32 %v3066, 1.442695
        %v3183 = vpow.pop %v3182
        %v3184 = vmul.f32 %v3067, 1.442695
        %v3185 = vpow.pop %v3184
        %v3186 = vmul.f32 %v3068, 1.442695
        %v3187 = vpow.pop %v3186
        %v3188 = vmul.f32 %v3069, 1.442695
        %v3189 = vpow.pop %v3188
        %v3190 = vmul.f32 %v3070, 1.442695
        %v3191 = vpow.pop %v3190
        %v3192 = vmul.f32 %v3071, 1.442695
        %v3193 = vpow.pop %v3192
        %v3194 = vmul.f32 %v3072, 1.442695
        %v3195 = vpow.pop %v3194
        %v3196 = vmul.f32 %v3073, 1.442695
        %v3197 = vpow.pop %v3196
        %v3198 = vmul.f32 %v3074, 1.442695
        %v3199 = vpow.pop %v3198
        %v3200 = vmul.f32 %v3075, 1.442695
        %v3201 = vpow.pop %v3200
        %v3202 = vmul.f32 %v3076, 1.442695
        %v3203 = vpow.pop %v3202
        %v3204 = vmul.f32 %v3077, 1.442695
        %v3205 = vpow.pop %v3204
        %v3206 = vadd.f32 %v3079, %v3081
        %3207 = vadd.xlane.f32.xlu0 %v3206
        %v3208 = vpop.xlane.xlu0 %3207
        %v3209 = vadd.f32 %v3083, %v3085
        %3210 = vadd.xlane.f32.xlu0 %v3209
        %v3211 = vpop.xlane.xlu0 %3210
        %v3212 = vadd.f32 %v3087, %v3089
        %3213 = vadd.xlane.f32.xlu0 %v3212
        %v3214 = vpop.xlane.xlu0 %3213
        %v3215 = vadd.f32 %v3091, %v3093
        %3216 = vadd.xlane.f32.xlu0 %v3215
        %v3217 = vpop.xlane.xlu0 %3216
        %v3218 = vadd.f32 %v3095, %v3097
        %3219 = vadd.xlane.f32.xlu0 %v3218
        %v3220 = vpop.xlane.xlu0 %3219
        %v3221 = vadd.f32 %v3099, %v3101
        %3222 = vadd.xlane.f32.xlu0 %v3221
        %v3223 = vpop.xlane.xlu0 %3222
        %v3224 = vadd.f32 %v3103, %v3105
        %3225 = vadd.xlane.f32.xlu0 %v3224
        %v3226 = vpop.xlane.xlu0 %3225
        %v3227 = vadd.f32 %v3107, %v3109
        %3228 = vadd.xlane.f32.xlu0 %v3227
        %v3229 = vpop.xlane.xlu0 %3228
        %v3230 = vadd.f32 %v3111, %v3113
        %3231 = vadd.xlane.f32.xlu0 %v3230
        %v3232 = vpop.xlane.xlu0 %3231
        %v3233 = vadd.f32 %v3115, %v3117
        %3234 = vadd.xlane.f32.xlu0 %v3233
        %v3235 = vpop.xlane.xlu0 %3234
        %v3236 = vadd.f32 %v3119, %v3121
        %3237 = vadd.xlane.f32.xlu0 %v3236
        %v3238 = vpop.xlane.xlu0 %3237
        %v3239 = vadd.f32 %v3123, %v3125
        %3240 = vadd.xlane.f32.xlu0 %v3239
        %v3241 = vpop.xlane.xlu0 %3240
        %v3242 = vadd.f32 %v3127, %v3129
        %3243 = vadd.xlane.f32.xlu0 %v3242
        %v3244 = vpop.xlane.xlu0 %3243
        %v3245 = vadd.f32 %v3131, %v3133
        %3246 = vadd.xlane.f32.xlu0 %v3245
        %v3247 = vpop.xlane.xlu0 %3246
        %v3248 = vadd.f32 %v3135, %v3137
        %3249 = vadd.xlane.f32.xlu0 %v3248
        %v3250 = vpop.xlane.xlu0 %3249
        %v3251 = vadd.f32 %v3139, %v3141
        %3252 = vadd.xlane.f32.xlu0 %v3251
        %v3253 = vpop.xlane.xlu0 %3252
        %v3254 = vadd.f32 %v3143, %v3145
        %3255 = vadd.xlane.f32.xlu0 %v3254
        %v3256 = vpop.xlane.xlu0 %3255
        %v3257 = vadd.f32 %v3147, %v3149
        %3258 = vadd.xlane.f32.xlu0 %v3257
        %v3259 = vpop.xlane.xlu0 %3258
        %v3260 = vadd.f32 %v3151, %v3153
        %3261 = vadd.xlane.f32.xlu0 %v3260
        %v3262 = vpop.xlane.xlu0 %3261
        %v3263 = vadd.f32 %v3155, %v3157
        %3264 = vadd.xlane.f32.xlu0 %v3263
        %v3265 = vpop.xlane.xlu0 %3264
        %v3266 = vadd.f32 %v3159, %v3161
        %3267 = vadd.xlane.f32.xlu0 %v3266
        %v3268 = vpop.xlane.xlu0 %3267
        %v3269 = vadd.f32 %v3163, %v3165
        %3270 = vadd.xlane.f32.xlu0 %v3269
        %v3271 = vpop.xlane.xlu0 %3270
        %v3272 = vadd.f32 %v3167, %v3169
        %3273 = vadd.xlane.f32.xlu0 %v3272
        %v3274 = vpop.xlane.xlu0 %3273
        %v3275 = vadd.f32 %v3171, %v3173
        %3276 = vadd.xlane.f32.xlu0 %v3275
        %v3277 = vpop.xlane.xlu0 %3276
        %v3278 = vadd.f32 %v3175, %v3177
        %3279 = vadd.xlane.f32.xlu0 %v3278
        %v3280 = vpop.xlane.xlu0 %3279
        %v3281 = vadd.f32 %v3179, %v3181
        %3282 = vadd.xlane.f32.xlu0 %v3281
        %v3283 = vpop.xlane.xlu0 %3282
        %v3284 = vadd.f32 %v3183, %v3185
        %3285 = vadd.xlane.f32.xlu0 %v3284
        %v3286 = vpop.xlane.xlu0 %3285
        %v3287 = vadd.f32 %v3187, %v3189
        %3288 = vadd.xlane.f32.xlu0 %v3287
        %v3289 = vpop.xlane.xlu0 %3288
        %v3290 = vadd.f32 %v3191, %v3193
        %3291 = vadd.xlane.f32.xlu0 %v3290
        %v3292 = vpop.xlane.xlu0 %3291
        %v3293 = vadd.f32 %v3195, %v3197
        %3294 = vadd.xlane.f32.xlu0 %v3293
        %v3295 = vpop.xlane.xlu0 %3294
        %v3296 = vadd.f32 %v3199, %v3201
        %3297 = vadd.xlane.f32.xlu0 %v3296
        %v3298 = vpop.xlane.xlu0 %3297
        %v3299 = vadd.f32 %v3203, %v3205
        %3300 = vadd.xlane.f32.xlu0 %v3299
        %v3301 = vpop.xlane.xlu0 %3300
        %3302 = vmatpush.xpose.msra.mxu0 0.0
        %3303 = vmatpush.xpose.msra.mxu0 0.0
        %3304 = vmatpush.xpose.msra.mxu0 0.0
        %3305 = vmatpush.xpose.msra.mxu0 0.0
        %3306 = vmatpush.xpose.msra.mxu0 0.0
        %3307 = vmatpush.xpose.msra.mxu0 0.0
        %3308 = vmatpush.xpose.msra.mxu0 0.0
        %3309 = vmatpush.xpose.msra.mxu0 0.0
        %3310 = vmatpush.xpose.msra.mxu0 %v2530
        %3311 = vmatpush.xpose.msra.mxu0 %v2528
        %3312 = vmatpush.xpose.msra.mxu0 %v2526
        %3313 = vmatpush.xpose.msra.mxu0 %v2524
        %3314 = vmatpush.xpose.msra.mxu0 %v2522
        %3315 = vmatpush.xpose.msra.mxu0 %v2520
        %3316 = vmatpush.xpose.msra.mxu0 %v2518
        %3317 = vmatpush.xpose.msra.mxu0 %v2516
        %3318 = vmatmul.f32.gmra.mxu0 %v3079
        %v3319 = vpop.f32.mrf.mxu0
        %v3320 = vadd.f32 0.0, %v3319
        %3321 = vmatmul.f32.gmra.mxu0 %v3083
        %v3322 = vpop.f32.mrf.mxu0
        %v3323 = vadd.f32 0.0, %v3322
        %3324 = vmatmul.f32.gmra.mxu0 %v3087
        %v3325 = vpop.f32.mrf.mxu0
        %v3326 = vadd.f32 0.0, %v3325
        %3327 = vmatmul.f32.gmra.mxu0 %v3091
        %v3328 = vpop.f32.mrf.mxu0
        %v3329 = vadd.f32 0.0, %v3328
        %3330 = vmatmul.f32.gmra.mxu0 %v3095
        %v3331 = vpop.f32.mrf.mxu0
        %v3332 = vadd.f32 0.0, %v3331
        %3333 = vmatmul.f32.gmra.mxu0 %v3099
        %v3334 = vpop.f32.mrf.mxu0
        %v3335 = vadd.f32 0.0, %v3334
        %3336 = vmatmul.f32.gmra.mxu0 %v3103
        %v3337 = vpop.f32.mrf.mxu0
        %v3338 = vadd.f32 0.0, %v3337
        %3339 = vmatmul.f32.gmra.mxu0 %v3107
        %v3340 = vpop.f32.mrf.mxu0
        %v3341 = vadd.f32 0.0, %v3340
        %3342 = vmatmul.f32.gmra.mxu0 %v3111
        %v3343 = vpop.f32.mrf.mxu0
        %v3344 = vadd.f32 0.0, %v3343
        %3345 = vmatmul.f32.gmra.mxu0 %v3115
        %v3346 = vpop.f32.mrf.mxu0
        %v3347 = vadd.f32 0.0, %v3346
        %3348 = vmatmul.f32.gmra.mxu0 %v3119
        %v3349 = vpop.f32.mrf.mxu0
        %v3350 = vadd.f32 0.0, %v3349
        %3351 = vmatmul.f32.gmra.mxu0 %v3123
        %v3352 = vpop.f32.mrf.mxu0
        %v3353 = vadd.f32 0.0, %v3352
        %3354 = vmatmul.f32.gmra.mxu0 %v3127
        %v3355 = vpop.f32.mrf.mxu0
        %v3356 = vadd.f32 0.0, %v3355
        %3357 = vmatmul.f32.gmra.mxu0 %v3131
        %v3358 = vpop.f32.mrf.mxu0
        %v3359 = vadd.f32 0.0, %v3358
        %3360 = vmatmul.f32.gmra.mxu0 %v3135
        %v3361 = vpop.f32.mrf.mxu0
        %v3362 = vadd.f32 0.0, %v3361
        %3363 = vmatmul.f32.gmra.mxu0 %v3139
        %v3364 = vpop.f32.mrf.mxu0
        %v3365 = vadd.f32 0.0, %v3364
        %3366 = vmatmul.f32.gmra.mxu0 %v3143
        %v3367 = vpop.f32.mrf.mxu0
        %v3368 = vadd.f32 0.0, %v3367
        %3369 = vmatmul.f32.gmra.mxu0 %v3147
        %v3370 = vpop.f32.mrf.mxu0
        %v3371 = vadd.f32 0.0, %v3370
        %3372 = vmatmul.f32.gmra.mxu0 %v3151
        %v3373 = vpop.f32.mrf.mxu0
        %v3374 = vadd.f32 0.0, %v3373
        %3375 = vmatmul.f32.gmra.mxu0 %v3155
        %v3376 = vpop.f32.mrf.mxu0
        %v3377 = vadd.f32 0.0, %v3376
        %3378 = vmatmul.f32.gmra.mxu0 %v3159
        %v3379 = vpop.f32.mrf.mxu0
        %v3380 = vadd.f32 0.0, %v3379
        %3381 = vmatmul.f32.gmra.mxu0 %v3163
        %v3382 = vpop.f32.mrf.mxu0
        %v3383 = vadd.f32 0.0, %v3382
        %3384 = vmatmul.f32.gmra.mxu0 %v3167
        %v3385 = vpop.f32.mrf.mxu0
        %v3386 = vadd.f32 0.0, %v3385
        %3387 = vmatmul.f32.gmra.mxu0 %v3171
        %v3388 = vpop.f32.mrf.mxu0
        %v3389 = vadd.f32 0.0, %v3388
        %3390 = vmatmul.f32.gmra.mxu0 %v3175
        %v3391 = vpop.f32.mrf.mxu0
        %v3392 = vadd.f32 0.0, %v3391
        %3393 = vmatmul.f32.gmra.mxu0 %v3179
        %v3394 = vpop.f32.mrf.mxu0
        %v3395 = vadd.f32 0.0, %v3394
        %3396 = vmatmul.f32.gmra.mxu0 %v3183
        %v3397 = vpop.f32.mrf.mxu0
        %v3398 = vadd.f32 0.0, %v3397
        %3399 = vmatmul.f32.gmra.mxu0 %v3187
        %v3400 = vpop.f32.mrf.mxu0
        %v3401 = vadd.f32 0.0, %v3400
        %3402 = vmatmul.f32.gmra.mxu0 %v3191
        %v3403 = vpop.f32.mrf.mxu0
        %v3404 = vadd.f32 0.0, %v3403
        %3405 = vmatmul.f32.gmra.mxu0 %v3195
        %v3406 = vpop.f32.mrf.mxu0
        %v3407 = vadd.f32 0.0, %v3406
        %3408 = vmatmul.f32.gmra.mxu0 %v3199
        %v3409 = vpop.f32.mrf.mxu0
        %v3410 = vadd.f32 0.0, %v3409
        %3411 = vmatmul.f32.gmra.mxu0 %v3203
        %v3412 = vpop.f32.mrf.mxu0
        %v3413 = vadd.f32 0.0, %v3412
        %3414 = vdwg.mxu0
        %3415 = vmatpush.xpose.msra.mxu0 0.0
        %3416 = vmatpush.xpose.msra.mxu0 0.0
        %3417 = vmatpush.xpose.msra.mxu0 0.0
        %3418 = vmatpush.xpose.msra.mxu0 0.0
        %3419 = vmatpush.xpose.msra.mxu0 0.0
        %3420 = vmatpush.xpose.msra.mxu0 0.0
        %3421 = vmatpush.xpose.msra.mxu0 0.0
        %3422 = vmatpush.xpose.msra.mxu0 0.0
        %3423 = vmatpush.xpose.msra.mxu0 %v2531
        %3424 = vmatpush.xpose.msra.mxu0 %v2529
        %3425 = vmatpush.xpose.msra.mxu0 %v2527
        %3426 = vmatpush.xpose.msra.mxu0 %v2525
        %3427 = vmatpush.xpose.msra.mxu0 %v2523
        %3428 = vmatpush.xpose.msra.mxu0 %v2521
        %3429 = vmatpush.xpose.msra.mxu0 %v2519
        %3430 = vmatpush.xpose.msra.mxu0 %v2517
        %3431 = vmatmul.f32.gmra.mxu0 %v3081
        %v3432 = vpop.f32.mrf.mxu0
        %v3433 = vadd.f32 %v3320, %v3432
        %3434 = vmatmul.f32.gmra.mxu0 %v3085
        %v3435 = vpop.f32.mrf.mxu0
        %v3436 = vadd.f32 %v3323, %v3435
        %3437 = vmatmul.f32.gmra.mxu0 %v3089
        %v3438 = vpop.f32.mrf.mxu0
        %v3439 = vadd.f32 %v3326, %v3438
        %3440 = vmatmul.f32.gmra.mxu0 %v3093
        %v3441 = vpop.f32.mrf.mxu0
        %v3442 = vadd.f32 %v3329, %v3441
        %3443 = vmatmul.f32.gmra.mxu0 %v3097
        %v3444 = vpop.f32.mrf.mxu0
        %v3445 = vadd.f32 %v3332, %v3444
        %3446 = vmatmul.f32.gmra.mxu0 %v3101
        %v3447 = vpop.f32.mrf.mxu0
        %v3448 = vadd.f32 %v3335, %v3447
        %3449 = vmatmul.f32.gmra.mxu0 %v3105
        %v3450 = vpop.f32.mrf.mxu0
        %v3451 = vadd.f32 %v3338, %v3450
        %3452 = vmatmul.f32.gmra.mxu0 %v3109
        %v3453 = vpop.f32.mrf.mxu0
        %v3454 = vadd.f32 %v3341, %v3453
        %3455 = vmatmul.f32.gmra.mxu0 %v3113
        %v3456 = vpop.f32.mrf.mxu0
        %v3457 = vadd.f32 %v3344, %v3456
        %3458 = vmatmul.f32.gmra.mxu0 %v3117
        %v3459 = vpop.f32.mrf.mxu0
        %v3460 = vadd.f32 %v3347, %v3459
        %3461 = vmatmul.f32.gmra.mxu0 %v3121
        %v3462 = vpop.f32.mrf.mxu0
        %v3463 = vadd.f32 %v3350, %v3462
        %3464 = vmatmul.f32.gmra.mxu0 %v3125
        %v3465 = vpop.f32.mrf.mxu0
        %v3466 = vadd.f32 %v3353, %v3465
        %3467 = vmatmul.f32.gmra.mxu0 %v3129
        %v3468 = vpop.f32.mrf.mxu0
        %v3469 = vadd.f32 %v3356, %v3468
        %3470 = vmatmul.f32.gmra.mxu0 %v3133
        %v3471 = vpop.f32.mrf.mxu0
        %v3472 = vadd.f32 %v3359, %v3471
        %3473 = vmatmul.f32.gmra.mxu0 %v3137
        %v3474 = vpop.f32.mrf.mxu0
        %v3475 = vadd.f32 %v3362, %v3474
        %3476 = vmatmul.f32.gmra.mxu0 %v3141
        %v3477 = vpop.f32.mrf.mxu0
        %v3478 = vadd.f32 %v3365, %v3477
        %3479 = vmatmul.f32.gmra.mxu0 %v3145
        %v3480 = vpop.f32.mrf.mxu0
        %v3481 = vadd.f32 %v3368, %v3480
        %3482 = vmatmul.f32.gmra.mxu0 %v3149
        %v3483 = vpop.f32.mrf.mxu0
        %v3484 = vadd.f32 %v3371, %v3483
        %3485 = vmatmul.f32.gmra.mxu0 %v3153
        %v3486 = vpop.f32.mrf.mxu0
        %v3487 = vadd.f32 %v3374, %v3486
        %3488 = vmatmul.f32.gmra.mxu0 %v3157
        %v3489 = vpop.f32.mrf.mxu0
        %v3490 = vadd.f32 %v3377, %v3489
        %3491 = vmatmul.f32.gmra.mxu0 %v3161
        %v3492 = vpop.f32.mrf.mxu0
        %v3493 = vadd.f32 %v3380, %v3492
        %3494 = vmatmul.f32.gmra.mxu0 %v3165
        %v3495 = vpop.f32.mrf.mxu0
        %v3496 = vadd.f32 %v3383, %v3495
        %3497 = vmatmul.f32.gmra.mxu0 %v3169
        %v3498 = vpop.f32.mrf.mxu0
        %v3499 = vadd.f32 %v3386, %v3498
        %3500 = vmatmul.f32.gmra.mxu0 %v3173
        %v3501 = vpop.f32.mrf.mxu0
        %v3502 = vadd.f32 %v3389, %v3501
        %3503 = vmatmul.f32.gmra.mxu0 %v3177
        %v3504 = vpop.f32.mrf.mxu0
        %v3505 = vadd.f32 %v3392, %v3504
        %3506 = vmatmul.f32.gmra.mxu0 %v3181
        %v3507 = vpop.f32.mrf.mxu0
        %v3508 = vadd.f32 %v3395, %v3507
        %3509 = vmatmul.f32.gmra.mxu0 %v3185
        %v3510 = vpop.f32.mrf.mxu0
        %v3511 = vadd.f32 %v3398, %v3510
        %3512 = vmatmul.f32.gmra.mxu0 %v3189
        %v3513 = vpop.f32.mrf.mxu0
        %v3514 = vadd.f32 %v3401, %v3513
        %3515 = vmatmul.f32.gmra.mxu0 %v3193
        %v3516 = vpop.f32.mrf.mxu0
        %v3517 = vadd.f32 %v3404, %v3516
        %3518 = vmatmul.f32.gmra.mxu0 %v3197
        %v3519 = vpop.f32.mrf.mxu0
        %v3520 = vadd.f32 %v3407, %v3519
        %3521 = vmatmul.f32.gmra.mxu0 %v3201
        %v3522 = vpop.f32.mrf.mxu0
        %v3523 = vadd.f32 %v3410, %v3522
        %3524 = vmatmul.f32.gmra.mxu0 %v3205
        %v3525 = vpop.f32.mrf.mxu0
        %v3526 = vadd.f32 %v3413, %v3525
        %3527 = vdwg.mxu0
        %v3528 = vrcp.pop %v3208
        %v3529 = vmul.f32 %v3208, %v3528
        %v3530 = vsub.f32 1.0, %v3529
        %v3531 = vmul.f32 %v3528, %v3530
        %v3532 = vadd.f32 %v3528, %v3531
        %vm3533 = vweird.f32 %v3208
        %vm3534 = vweird.f32 %v3528
        %vm3535 = vmor %vm3533, %vm3534
        %v3536 = vsel %vm3535, %v3528, %v3532
        %v3537 = vand.u32 2147483647, %v3208
        %vm3538 = vcmp.eq.f32.partialorder %v3537, 8.507059e+37
        %v3539 = vand.u32 %v3208, 2147483648
        %v3540 = vor.u32 1.1754944e-38, %v3539
        %v3541 = vsel %vm3538, %v3540, %v3536
        %v3542 = vmul.f32 1.0, %v3541
        %v3543 = vrcp.pop %v3211
        %v3544 = vmul.f32 %v3211, %v3543
        %v3545 = vsub.f32 1.0, %v3544
        %v3546 = vmul.f32 %v3543, %v3545
        %v3547 = vadd.f32 %v3543, %v3546
        %vm3548 = vweird.f32 %v3211
        %vm3549 = vweird.f32 %v3543
        %vm3550 = vmor %vm3548, %vm3549
        %v3551 = vsel %vm3550, %v3543, %v3547
        %v3552 = vand.u32 2147483647, %v3211
        %vm3553 = vcmp.eq.f32.partialorder %v3552, 8.507059e+37
        %v3554 = vand.u32 %v3211, 2147483648
        %v3555 = vor.u32 1.1754944e-38, %v3554
        %v3556 = vsel %vm3553, %v3555, %v3551
        %v3557 = vmul.f32 1.0, %v3556
        %v3558 = vrcp.pop %v3214
        %v3559 = vmul.f32 %v3214, %v3558
        %v3560 = vsub.f32 1.0, %v3559
        %v3561 = vmul.f32 %v3558, %v3560
        %v3562 = vadd.f32 %v3558, %v3561
        %vm3563 = vweird.f32 %v3214
        %vm3564 = vweird.f32 %v3558
        %vm3565 = vmor %vm3563, %vm3564
        %v3566 = vsel %vm3565, %v3558, %v3562
        %v3567 = vand.u32 2147483647, %v3214
        %vm3568 = vcmp.eq.f32.partialorder %v3567, 8.507059e+37
        %v3569 = vand.u32 %v3214, 2147483648
        %v3570 = vor.u32 1.1754944e-38, %v3569
        %v3571 = vsel %vm3568, %v3570, %v3566
        %v3572 = vmul.f32 1.0, %v3571
        %v3573 = vrcp.pop %v3217
        %v3574 = vmul.f32 %v3217, %v3573
        %v3575 = vsub.f32 1.0, %v3574
        %v3576 = vmul.f32 %v3573, %v3575
        %v3577 = vadd.f32 %v3573, %v3576
        %vm3578 = vweird.f32 %v3217
        %vm3579 = vweird.f32 %v3573
        %vm3580 = vmor %vm3578, %vm3579
        %v3581 = vsel %vm3580, %v3573, %v3577
        %v3582 = vand.u32 2147483647, %v3217
        %vm3583 = vcmp.eq.f32.partialorder %v3582, 8.507059e+37
        %v3584 = vand.u32 %v3217, 2147483648
        %v3585 = vor.u32 1.1754944e-38, %v3584
        %v3586 = vsel %vm3583, %v3585, %v3581
        %v3587 = vmul.f32 1.0, %v3586
        %v3588 = vrcp.pop %v3220
        %v3589 = vmul.f32 %v3220, %v3588
        %v3590 = vsub.f32 1.0, %v3589
        %v3591 = vmul.f32 %v3588, %v3590
        %v3592 = vadd.f32 %v3588, %v3591
        %vm3593 = vweird.f32 %v3220
        %vm3594 = vweird.f32 %v3588
        %vm3595 = vmor %vm3593, %vm3594
        %v3596 = vsel %vm3595, %v3588, %v3592
        %v3597 = vand.u32 2147483647, %v3220
        %vm3598 = vcmp.eq.f32.partialorder %v3597, 8.507059e+37
        %v3599 = vand.u32 %v3220, 2147483648
        %v3600 = vor.u32 1.1754944e-38, %v3599
        %v3601 = vsel %vm3598, %v3600, %v3596
        %v3602 = vmul.f32 1.0, %v3601
        %v3603 = vrcp.pop %v3223
        %v3604 = vmul.f32 %v3223, %v3603
        %v3605 = vsub.f32 1.0, %v3604
        %v3606 = vmul.f32 %v3603, %v3605
        %v3607 = vadd.f32 %v3603, %v3606
        %vm3608 = vweird.f32 %v3223
        %vm3609 = vweird.f32 %v3603
        %vm3610 = vmor %vm3608, %vm3609
        %v3611 = vsel %vm3610, %v3603, %v3607
        %v3612 = vand.u32 2147483647, %v3223
        %vm3613 = vcmp.eq.f32.partialorder %v3612, 8.507059e+37
        %v3614 = vand.u32 %v3223, 2147483648
        %v3615 = vor.u32 1.1754944e-38, %v3614
        %v3616 = vsel %vm3613, %v3615, %v3611
        %v3617 = vmul.f32 1.0, %v3616
        %v3618 = vrcp.pop %v3226
        %v3619 = vmul.f32 %v3226, %v3618
        %v3620 = vsub.f32 1.0, %v3619
        %v3621 = vmul.f32 %v3618, %v3620
        %v3622 = vadd.f32 %v3618, %v3621
        %vm3623 = vweird.f32 %v3226
        %vm3624 = vweird.f32 %v3618
        %vm3625 = vmor %vm3623, %vm3624
        %v3626 = vsel %vm3625, %v3618, %v3622
        %v3627 = vand.u32 2147483647, %v3226
        %vm3628 = vcmp.eq.f32.partialorder %v3627, 8.507059e+37
        %v3629 = vand.u32 %v3226, 2147483648
        %v3630 = vor.u32 1.1754944e-38, %v3629
        %v3631 = vsel %vm3628, %v3630, %v3626
        %v3632 = vmul.f32 1.0, %v3631
        %v3633 = vrcp.pop %v3229
        %v3634 = vmul.f32 %v3229, %v3633
        %v3635 = vsub.f32 1.0, %v3634
        %v3636 = vmul.f32 %v3633, %v3635
        %v3637 = vadd.f32 %v3633, %v3636
        %vm3638 = vweird.f32 %v3229
        %vm3639 = vweird.f32 %v3633
        %vm3640 = vmor %vm3638, %vm3639
        %v3641 = vsel %vm3640, %v3633, %v3637
        %v3642 = vand.u32 2147483647, %v3229
        %vm3643 = vcmp.eq.f32.partialorder %v3642, 8.507059e+37
        %v3644 = vand.u32 %v3229, 2147483648
        %v3645 = vor.u32 1.1754944e-38, %v3644
        %v3646 = vsel %vm3643, %v3645, %v3641
        %v3647 = vmul.f32 1.0, %v3646
        %v3648 = vrcp.pop %v3232
        %v3649 = vmul.f32 %v3232, %v3648
        %v3650 = vsub.f32 1.0, %v3649
        %v3651 = vmul.f32 %v3648, %v3650
        %v3652 = vadd.f32 %v3648, %v3651
        %vm3653 = vweird.f32 %v3232
        %vm3654 = vweird.f32 %v3648
        %vm3655 = vmor %vm3653, %vm3654
        %v3656 = vsel %vm3655, %v3648, %v3652
        %v3657 = vand.u32 2147483647, %v3232
        %vm3658 = vcmp.eq.f32.partialorder %v3657, 8.507059e+37
        %v3659 = vand.u32 %v3232, 2147483648
        %v3660 = vor.u32 1.1754944e-38, %v3659
        %v3661 = vsel %vm3658, %v3660, %v3656
        %v3662 = vmul.f32 1.0, %v3661
        %v3663 = vrcp.pop %v3235
        %v3664 = vmul.f32 %v3235, %v3663
        %v3665 = vsub.f32 1.0, %v3664
        %v3666 = vmul.f32 %v3663, %v3665
        %v3667 = vadd.f32 %v3663, %v3666
        %vm3668 = vweird.f32 %v3235
        %vm3669 = vweird.f32 %v3663
        %vm3670 = vmor %vm3668, %vm3669
        %v3671 = vsel %vm3670, %v3663, %v3667
        %v3672 = vand.u32 2147483647, %v3235
        %vm3673 = vcmp.eq.f32.partialorder %v3672, 8.507059e+37
        %v3674 = vand.u32 %v3235, 2147483648
        %v3675 = vor.u32 1.1754944e-38, %v3674
        %v3676 = vsel %vm3673, %v3675, %v3671
        %v3677 = vmul.f32 1.0, %v3676
        %v3678 = vrcp.pop %v3238
        %v3679 = vmul.f32 %v3238, %v3678
        %v3680 = vsub.f32 1.0, %v3679
        %v3681 = vmul.f32 %v3678, %v3680
        %v3682 = vadd.f32 %v3678, %v3681
        %vm3683 = vweird.f32 %v3238
        %vm3684 = vweird.f32 %v3678
        %vm3685 = vmor %vm3683, %vm3684
        %v3686 = vsel %vm3685, %v3678, %v3682
        %v3687 = vand.u32 2147483647, %v3238
        %vm3688 = vcmp.eq.f32.partialorder %v3687, 8.507059e+37
        %v3689 = vand.u32 %v3238, 2147483648
        %v3690 = vor.u32 1.1754944e-38, %v3689
        %v3691 = vsel %vm3688, %v3690, %v3686
        %v3692 = vmul.f32 1.0, %v3691
        %v3693 = vrcp.pop %v3241
        %v3694 = vmul.f32 %v3241, %v3693
        %v3695 = vsub.f32 1.0, %v3694
        %v3696 = vmul.f32 %v3693, %v3695
        %v3697 = vadd.f32 %v3693, %v3696
        %vm3698 = vweird.f32 %v3241
        %vm3699 = vweird.f32 %v3693
        %vm3700 = vmor %vm3698, %vm3699
        %v3701 = vsel %vm3700, %v3693, %v3697
        %v3702 = vand.u32 2147483647, %v3241
        %vm3703 = vcmp.eq.f32.partialorder %v3702, 8.507059e+37
        %v3704 = vand.u32 %v3241, 2147483648
        %v3705 = vor.u32 1.1754944e-38, %v3704
        %v3706 = vsel %vm3703, %v3705, %v3701
        %v3707 = vmul.f32 1.0, %v3706
        %v3708 = vrcp.pop %v3244
        %v3709 = vmul.f32 %v3244, %v3708
        %v3710 = vsub.f32 1.0, %v3709
        %v3711 = vmul.f32 %v3708, %v3710
        %v3712 = vadd.f32 %v3708, %v3711
        %vm3713 = vweird.f32 %v3244
        %vm3714 = vweird.f32 %v3708
        %vm3715 = vmor %vm3713, %vm3714
        %v3716 = vsel %vm3715, %v3708, %v3712
        %v3717 = vand.u32 2147483647, %v3244
        %vm3718 = vcmp.eq.f32.partialorder %v3717, 8.507059e+37
        %v3719 = vand.u32 %v3244, 2147483648
        %v3720 = vor.u32 1.1754944e-38, %v3719
        %v3721 = vsel %vm3718, %v3720, %v3716
        %v3722 = vmul.f32 1.0, %v3721
        %v3723 = vrcp.pop %v3247
        %v3724 = vmul.f32 %v3247, %v3723
        %v3725 = vsub.f32 1.0, %v3724
        %v3726 = vmul.f32 %v3723, %v3725
        %v3727 = vadd.f32 %v3723, %v3726
        %vm3728 = vweird.f32 %v3247
        %vm3729 = vweird.f32 %v3723
        %vm3730 = vmor %vm3728, %vm3729
        %v3731 = vsel %vm3730, %v3723, %v3727
        %v3732 = vand.u32 2147483647, %v3247
        %vm3733 = vcmp.eq.f32.partialorder %v3732, 8.507059e+37
        %v3734 = vand.u32 %v3247, 2147483648
        %v3735 = vor.u32 1.1754944e-38, %v3734
        %v3736 = vsel %vm3733, %v3735, %v3731
        %v3737 = vmul.f32 1.0, %v3736
        %v3738 = vrcp.pop %v3250
        %v3739 = vmul.f32 %v3250, %v3738
        %v3740 = vsub.f32 1.0, %v3739
        %v3741 = vmul.f32 %v3738, %v3740
        %v3742 = vadd.f32 %v3738, %v3741
        %vm3743 = vweird.f32 %v3250
        %vm3744 = vweird.f32 %v3738
        %vm3745 = vmor %vm3743, %vm3744
        %v3746 = vsel %vm3745, %v3738, %v3742
        %v3747 = vand.u32 2147483647, %v3250
        %vm3748 = vcmp.eq.f32.partialorder %v3747, 8.507059e+37
        %v3749 = vand.u32 %v3250, 2147483648
        %v3750 = vor.u32 1.1754944e-38, %v3749
        %v3751 = vsel %vm3748, %v3750, %v3746
        %v3752 = vmul.f32 1.0, %v3751
        %v3753 = vrcp.pop %v3253
        %v3754 = vmul.f32 %v3253, %v3753
        %v3755 = vsub.f32 1.0, %v3754
        %v3756 = vmul.f32 %v3753, %v3755
        %v3757 = vadd.f32 %v3753, %v3756
        %vm3758 = vweird.f32 %v3253
        %vm3759 = vweird.f32 %v3753
        %vm3760 = vmor %vm3758, %vm3759
        %v3761 = vsel %vm3760, %v3753, %v3757
        %v3762 = vand.u32 2147483647, %v3253
        %vm3763 = vcmp.eq.f32.partialorder %v3762, 8.507059e+37
        %v3764 = vand.u32 %v3253, 2147483648
        %v3765 = vor.u32 1.1754944e-38, %v3764
        %v3766 = vsel %vm3763, %v3765, %v3761
        %v3767 = vmul.f32 1.0, %v3766
        %v3768 = vrcp.pop %v3256
        %v3769 = vmul.f32 %v3256, %v3768
        %v3770 = vsub.f32 1.0, %v3769
        %v3771 = vmul.f32 %v3768, %v3770
        %v3772 = vadd.f32 %v3768, %v3771
        %vm3773 = vweird.f32 %v3256
        %vm3774 = vweird.f32 %v3768
        %vm3775 = vmor %vm3773, %vm3774
        %v3776 = vsel %vm3775, %v3768, %v3772
        %v3777 = vand.u32 2147483647, %v3256
        %vm3778 = vcmp.eq.f32.partialorder %v3777, 8.507059e+37
        %v3779 = vand.u32 %v3256, 2147483648
        %v3780 = vor.u32 1.1754944e-38, %v3779
        %v3781 = vsel %vm3778, %v3780, %v3776
        %v3782 = vmul.f32 1.0, %v3781
        %v3783 = vrcp.pop %v3259
        %v3784 = vmul.f32 %v3259, %v3783
        %v3785 = vsub.f32 1.0, %v3784
        %v3786 = vmul.f32 %v3783, %v3785
        %v3787 = vadd.f32 %v3783, %v3786
        %vm3788 = vweird.f32 %v3259
        %vm3789 = vweird.f32 %v3783
        %vm3790 = vmor %vm3788, %vm3789
        %v3791 = vsel %vm3790, %v3783, %v3787
        %v3792 = vand.u32 2147483647, %v3259
        %vm3793 = vcmp.eq.f32.partialorder %v3792, 8.507059e+37
        %v3794 = vand.u32 %v3259, 2147483648
        %v3795 = vor.u32 1.1754944e-38, %v3794
        %v3796 = vsel %vm3793, %v3795, %v3791
        %v3797 = vmul.f32 1.0, %v3796
        %v3798 = vrcp.pop %v3262
        %v3799 = vmul.f32 %v3262, %v3798
        %v3800 = vsub.f32 1.0, %v3799
        %v3801 = vmul.f32 %v3798, %v3800
        %v3802 = vadd.f32 %v3798, %v3801
        %vm3803 = vweird.f32 %v3262
        %vm3804 = vweird.f32 %v3798
        %vm3805 = vmor %vm3803, %vm3804
        %v3806 = vsel %vm3805, %v3798, %v3802
        %v3807 = vand.u32 2147483647, %v3262
        %vm3808 = vcmp.eq.f32.partialorder %v3807, 8.507059e+37
        %v3809 = vand.u32 %v3262, 2147483648
        %v3810 = vor.u32 1.1754944e-38, %v3809
        %v3811 = vsel %vm3808, %v3810, %v3806
        %v3812 = vmul.f32 1.0, %v3811
        %v3813 = vrcp.pop %v3265
        %v3814 = vmul.f32 %v3265, %v3813
        %v3815 = vsub.f32 1.0, %v3814
        %v3816 = vmul.f32 %v3813, %v3815
        %v3817 = vadd.f32 %v3813, %v3816
        %vm3818 = vweird.f32 %v3265
        %vm3819 = vweird.f32 %v3813
        %vm3820 = vmor %vm3818, %vm3819
        %v3821 = vsel %vm3820, %v3813, %v3817
        %v3822 = vand.u32 2147483647, %v3265
        %vm3823 = vcmp.eq.f32.partialorder %v3822, 8.507059e+37
        %v3824 = vand.u32 %v3265, 2147483648
        %v3825 = vor.u32 1.1754944e-38, %v3824
        %v3826 = vsel %vm3823, %v3825, %v3821
        %v3827 = vmul.f32 1.0, %v3826
        %v3828 = vrcp.pop %v3268
        %v3829 = vmul.f32 %v3268, %v3828
        %v3830 = vsub.f32 1.0, %v3829
        %v3831 = vmul.f32 %v3828, %v3830
        %v3832 = vadd.f32 %v3828, %v3831
        %vm3833 = vweird.f32 %v3268
        %vm3834 = vweird.f32 %v3828
        %vm3835 = vmor %vm3833, %vm3834
        %v3836 = vsel %vm3835, %v3828, %v3832
        %v3837 = vand.u32 2147483647, %v3268
        %vm3838 = vcmp.eq.f32.partialorder %v3837, 8.507059e+37
        %v3839 = vand.u32 %v3268, 2147483648
        %v3840 = vor.u32 1.1754944e-38, %v3839
        %v3841 = vsel %vm3838, %v3840, %v3836
        %v3842 = vmul.f32 1.0, %v3841
        %v3843 = vrcp.pop %v3271
        %v3844 = vmul.f32 %v3271, %v3843
        %v3845 = vsub.f32 1.0, %v3844
        %v3846 = vmul.f32 %v3843, %v3845
        %v3847 = vadd.f32 %v3843, %v3846
        %vm3848 = vweird.f32 %v3271
        %vm3849 = vweird.f32 %v3843
        %vm3850 = vmor %vm3848, %vm3849
        %v3851 = vsel %vm3850, %v3843, %v3847
        %v3852 = vand.u32 2147483647, %v3271
        %vm3853 = vcmp.eq.f32.partialorder %v3852, 8.507059e+37
        %v3854 = vand.u32 %v3271, 2147483648
        %v3855 = vor.u32 1.1754944e-38, %v3854
        %v3856 = vsel %vm3853, %v3855, %v3851
        %v3857 = vmul.f32 1.0, %v3856
        %v3858 = vrcp.pop %v3274
        %v3859 = vmul.f32 %v3274, %v3858
        %v3860 = vsub.f32 1.0, %v3859
        %v3861 = vmul.f32 %v3858, %v3860
        %v3862 = vadd.f32 %v3858, %v3861
        %vm3863 = vweird.f32 %v3274
        %vm3864 = vweird.f32 %v3858
        %vm3865 = vmor %vm3863, %vm3864
        %v3866 = vsel %vm3865, %v3858, %v3862
        %v3867 = vand.u32 2147483647, %v3274
        %vm3868 = vcmp.eq.f32.partialorder %v3867, 8.507059e+37
        %v3869 = vand.u32 %v3274, 2147483648
        %v3870 = vor.u32 1.1754944e-38, %v3869
        %v3871 = vsel %vm3868, %v3870, %v3866
        %v3872 = vmul.f32 1.0, %v3871
        %v3873 = vrcp.pop %v3277
        %v3874 = vmul.f32 %v3277, %v3873
        %v3875 = vsub.f32 1.0, %v3874
        %v3876 = vmul.f32 %v3873, %v3875
        %v3877 = vadd.f32 %v3873, %v3876
        %vm3878 = vweird.f32 %v3277
        %vm3879 = vweird.f32 %v3873
        %vm3880 = vmor %vm3878, %vm3879
        %v3881 = vsel %vm3880, %v3873, %v3877
        %v3882 = vand.u32 2147483647, %v3277
        %vm3883 = vcmp.eq.f32.partialorder %v3882, 8.507059e+37
        %v3884 = vand.u32 %v3277, 2147483648
        %v3885 = vor.u32 1.1754944e-38, %v3884
        %v3886 = vsel %vm3883, %v3885, %v3881
        %v3887 = vmul.f32 1.0, %v3886
        %v3888 = vrcp.pop %v3280
        %v3889 = vmul.f32 %v3280, %v3888
        %v3890 = vsub.f32 1.0, %v3889
        %v3891 = vmul.f32 %v3888, %v3890
        %v3892 = vadd.f32 %v3888, %v3891
        %vm3893 = vweird.f32 %v3280
        %vm3894 = vweird.f32 %v3888
        %vm3895 = vmor %vm3893, %vm3894
        %v3896 = vsel %vm3895, %v3888, %v3892
        %v3897 = vand.u32 2147483647, %v3280
        %vm3898 = vcmp.eq.f32.partialorder %v3897, 8.507059e+37
        %v3899 = vand.u32 %v3280, 2147483648
        %v3900 = vor.u32 1.1754944e-38, %v3899
        %v3901 = vsel %vm3898, %v3900, %v3896
        %v3902 = vmul.f32 1.0, %v3901
        %v3903 = vrcp.pop %v3283
        %v3904 = vmul.f32 %v3283, %v3903
        %v3905 = vsub.f32 1.0, %v3904
        %v3906 = vmul.f32 %v3903, %v3905
        %v3907 = vadd.f32 %v3903, %v3906
        %vm3908 = vweird.f32 %v3283
        %vm3909 = vweird.f32 %v3903
        %vm3910 = vmor %vm3908, %vm3909
        %v3911 = vsel %vm3910, %v3903, %v3907
        %v3912 = vand.u32 2147483647, %v3283
        %vm3913 = vcmp.eq.f32.partialorder %v3912, 8.507059e+37
        %v3914 = vand.u32 %v3283, 2147483648
        %v3915 = vor.u32 1.1754944e-38, %v3914
        %v3916 = vsel %vm3913, %v3915, %v3911
        %v3917 = vmul.f32 1.0, %v3916
        %v3918 = vrcp.pop %v3286
        %v3919 = vmul.f32 %v3286, %v3918
        %v3920 = vsub.f32 1.0, %v3919
        %v3921 = vmul.f32 %v3918, %v3920
        %v3922 = vadd.f32 %v3918, %v3921
        %vm3923 = vweird.f32 %v3286
        %vm3924 = vweird.f32 %v3918
        %vm3925 = vmor %vm3923, %vm3924
        %v3926 = vsel %vm3925, %v3918, %v3922
        %v3927 = vand.u32 2147483647, %v3286
        %vm3928 = vcmp.eq.f32.partialorder %v3927, 8.507059e+37
        %v3929 = vand.u32 %v3286, 2147483648
        %v3930 = vor.u32 1.1754944e-38, %v3929
        %v3931 = vsel %vm3928, %v3930, %v3926
        %v3932 = vmul.f32 1.0, %v3931
        %v3933 = vrcp.pop %v3289
        %v3934 = vmul.f32 %v3289, %v3933
        %v3935 = vsub.f32 1.0, %v3934
        %v3936 = vmul.f32 %v3933, %v3935
        %v3937 = vadd.f32 %v3933, %v3936
        %vm3938 = vweird.f32 %v3289
        %vm3939 = vweird.f32 %v3933
        %vm3940 = vmor %vm3938, %vm3939
        %v3941 = vsel %vm3940, %v3933, %v3937
        %v3942 = vand.u32 2147483647, %v3289
        %vm3943 = vcmp.eq.f32.partialorder %v3942, 8.507059e+37
        %v3944 = vand.u32 %v3289, 2147483648
        %v3945 = vor.u32 1.1754944e-38, %v3944
        %v3946 = vsel %vm3943, %v3945, %v3941
        %v3947 = vmul.f32 1.0, %v3946
        %v3948 = vrcp.pop %v3292
        %v3949 = vmul.f32 %v3292, %v3948
        %v3950 = vsub.f32 1.0, %v3949
        %v3951 = vmul.f32 %v3948, %v3950
        %v3952 = vadd.f32 %v3948, %v3951
        %vm3953 = vweird.f32 %v3292
        %vm3954 = vweird.f32 %v3948
        %vm3955 = vmor %vm3953, %vm3954
        %v3956 = vsel %vm3955, %v3948, %v3952
        %v3957 = vand.u32 2147483647, %v3292
        %vm3958 = vcmp.eq.f32.partialorder %v3957, 8.507059e+37
        %v3959 = vand.u32 %v3292, 2147483648
        %v3960 = vor.u32 1.1754944e-38, %v3959
        %v3961 = vsel %vm3958, %v3960, %v3956
        %v3962 = vmul.f32 1.0, %v3961
        %v3963 = vrcp.pop %v3295
        %v3964 = vmul.f32 %v3295, %v3963
        %v3965 = vsub.f32 1.0, %v3964
        %v3966 = vmul.f32 %v3963, %v3965
        %v3967 = vadd.f32 %v3963, %v3966
        %vm3968 = vweird.f32 %v3295
        %vm3969 = vweird.f32 %v3963
        %vm3970 = vmor %vm3968, %vm3969
        %v3971 = vsel %vm3970, %v3963, %v3967
        %v3972 = vand.u32 2147483647, %v3295
        %vm3973 = vcmp.eq.f32.partialorder %v3972, 8.507059e+37
        %v3974 = vand.u32 %v3295, 2147483648
        %v3975 = vor.u32 1.1754944e-38, %v3974
        %v3976 = vsel %vm3973, %v3975, %v3971
        %v3977 = vmul.f32 1.0, %v3976
        %v3978 = vrcp.pop %v3298
        %v3979 = vmul.f32 %v3298, %v3978
        %v3980 = vsub.f32 1.0, %v3979
        %v3981 = vmul.f32 %v3978, %v3980
        %v3982 = vadd.f32 %v3978, %v3981
        %vm3983 = vweird.f32 %v3298
        %vm3984 = vweird.f32 %v3978
        %vm3985 = vmor %vm3983, %vm3984
        %v3986 = vsel %vm3985, %v3978, %v3982
        %v3987 = vand.u32 2147483647, %v3298
        %vm3988 = vcmp.eq.f32.partialorder %v3987, 8.507059e+37
        %v3989 = vand.u32 %v3298, 2147483648
        %v3990 = vor.u32 1.1754944e-38, %v3989
        %v3991 = vsel %vm3988, %v3990, %v3986
        %v3992 = vmul.f32 1.0, %v3991
        %v3993 = vrcp.pop %v3301
        %v3994 = vmul.f32 %v3301, %v3993
        %v3995 = vsub.f32 1.0, %v3994
        %v3996 = vmul.f32 %v3993, %v3995
        %v3997 = vadd.f32 %v3993, %v3996
        %vm3998 = vweird.f32 %v3301
        %vm3999 = vweird.f32 %v3993
        %vm4000 = vmor %vm3998, %vm3999
        %v4001 = vsel %vm4000, %v3993, %v3997
        %v4002 = vand.u32 2147483647, %v3301
        %vm4003 = vcmp.eq.f32.partialorder %v4002, 8.507059e+37
        %v4004 = vand.u32 %v3301, 2147483648
        %v4005 = vor.u32 1.1754944e-38, %v4004
        %v4006 = vsel %vm4003, %v4005, %v4001
        %v4007 = vmul.f32 1.0, %v4006
        %v4008 = vmul.f32 %v3433, %v3542
        %v4009 = vmul.f32 %v3436, %v3557
        %v4010 = vmul.f32 %v3439, %v3572
        %v4011 = vmul.f32 %v3442, %v3587
        %v4012 = vmul.f32 %v3445, %v3602
        %v4013 = vmul.f32 %v3448, %v3617
        %v4014 = vmul.f32 %v3451, %v3632
        %v4015 = vmul.f32 %v3454, %v3647
        %v4016 = vmul.f32 %v3457, %v3662
        %v4017 = vmul.f32 %v3460, %v3677
        %v4018 = vmul.f32 %v3463, %v3692
        %v4019 = vmul.f32 %v3466, %v3707
        %v4020 = vmul.f32 %v3469, %v3722
        %v4021 = vmul.f32 %v3472, %v3737
        %v4022 = vmul.f32 %v3475, %v3752
        %v4023 = vmul.f32 %v3478, %v3767
        %v4024 = vmul.f32 %v3481, %v3782
        %v4025 = vmul.f32 %v3484, %v3797
        %v4026 = vmul.f32 %v3487, %v3812
        %v4027 = vmul.f32 %v3490, %v3827
        %v4028 = vmul.f32 %v3493, %v3842
        %v4029 = vmul.f32 %v3496, %v3857
        %v4030 = vmul.f32 %v3499, %v3872
        %v4031 = vmul.f32 %v3502, %v3887
        %v4032 = vmul.f32 %v3505, %v3902
        %v4033 = vmul.f32 %v3508, %v3917
        %v4034 = vmul.f32 %v3511, %v3932
        %v4035 = vmul.f32 %v3514, %v3947
        %v4036 = vmul.f32 %v3517, %v3962
        %v4037 = vmul.f32 %v3520, %v3977
        %v4038 = vmul.f32 %v3523, %v3992
        %v4039 = vmul.f32 %v3526, %v4007
        %4072 = vrot.lane.b32.xlu0 %v4008, 64
        %v4073 = vpop.permute.xlu0 %4072
        %4074 = vrot.lane.b32.xlu0 %v4009, 64
        %v4075 = vpop.permute.xlu0 %4074
        %4076 = vrot.lane.b32.xlu0 %v4010, 64
        %v4077 = vpop.permute.xlu0 %4076
        %4078 = vrot.lane.b32.xlu0 %v4011, 64
        %v4079 = vpop.permute.xlu0 %4078
        %4080 = vrot.lane.b32.xlu0 %v4012, 64
        %v4081 = vpop.permute.xlu0 %4080
        %4082 = vrot.lane.b32.xlu0 %v4013, 64
        %v4083 = vpop.permute.xlu0 %4082
        %4084 = vrot.lane.b32.xlu0 %v4014, 64
        %v4085 = vpop.permute.xlu0 %4084
        %4086 = vrot.lane.b32.xlu0 %v4015, 64
        %v4087 = vpop.permute.xlu0 %4086
        %4088 = vrot.lane.b32.xlu0 %v4016, 64
        %v4089 = vpop.permute.xlu0 %4088
        %4090 = vrot.lane.b32.xlu0 %v4017, 64
        %v4091 = vpop.permute.xlu0 %4090
        %4092 = vrot.lane.b32.xlu0 %v4018, 64
        %v4093 = vpop.permute.xlu0 %4092
        %4094 = vrot.lane.b32.xlu0 %v4019, 64
        %v4095 = vpop.permute.xlu0 %4094
        %4096 = vrot.lane.b32.xlu0 %v4020, 64
        %v4097 = vpop.permute.xlu0 %4096
        %4098 = vrot.lane.b32.xlu0 %v4021, 64
        %v4099 = vpop.permute.xlu0 %4098
        %4100 = vrot.lane.b32.xlu0 %v4022, 64
        %v4101 = vpop.permute.xlu0 %4100
        %4102 = vrot.lane.b32.xlu0 %v4023, 64
        %v4103 = vpop.permute.xlu0 %4102
        %4104 = vrot.lane.b32.xlu0 %v4024, 64
        %v4105 = vpop.permute.xlu0 %4104
        %4106 = vrot.lane.b32.xlu0 %v4025, 64
        %v4107 = vpop.permute.xlu0 %4106
        %4108 = vrot.lane.b32.xlu0 %v4026, 64
        %v4109 = vpop.permute.xlu0 %4108
        %4110 = vrot.lane.b32.xlu0 %v4027, 64
        %v4111 = vpop.permute.xlu0 %4110
        %4112 = vrot.lane.b32.xlu0 %v4028, 64
        %v4113 = vpop.permute.xlu0 %4112
        %4114 = vrot.lane.b32.xlu0 %v4029, 64
        %v4115 = vpop.permute.xlu0 %4114
        %4116 = vrot.lane.b32.xlu0 %v4030, 64
        %v4117 = vpop.permute.xlu0 %4116
        %4118 = vrot.lane.b32.xlu0 %v4031, 64
        %v4119 = vpop.permute.xlu0 %4118
        %4120 = vrot.lane.b32.xlu0 %v4032, 64
        %v4121 = vpop.permute.xlu0 %4120
        %4122 = vrot.lane.b32.xlu0 %v4033, 64
        %v4123 = vpop.permute.xlu0 %4122
        %4124 = vrot.lane.b32.xlu0 %v4034, 64
        %v4125 = vpop.permute.xlu0 %4124
        %4126 = vrot.lane.b32.xlu0 %v4035, 64
        %v4127 = vpop.permute.xlu0 %4126
        %4128 = vrot.lane.b32.xlu0 %v4036, 64
        %v4129 = vpop.permute.xlu0 %4128
        %4130 = vrot.lane.b32.xlu0 %v4037, 64
        %v4131 = vpop.permute.xlu0 %4130
        %4132 = vrot.lane.b32.xlu0 %v4038, 64
        %v4133 = vpop.permute.xlu0 %4132
        %4134 = vrot.lane.b32.xlu0 %v4039, 64
        %v4135 = vpop.permute.xlu0 %4134
        %v4168 = vsel %vm1055, %v2468, %v4073
        %v4169 = vsel %vm1055, %v2469, %v4075
        %v4170 = vsel %vm1055, %v2470, %v4077
        %v4171 = vsel %vm1055, %v2471, %v4079
        %v4172 = vsel %vm1055, %v2472, %v4081
        %v4173 = vsel %vm1055, %v2473, %v4083
        %v4174 = vsel %vm1055, %v2474, %v4085
        %v4175 = vsel %vm1055, %v2475, %v4087
        %v4176 = vsel %vm1055, %v2476, %v4089
        %v4177 = vsel %vm1055, %v2477, %v4091
        %v4178 = vsel %vm1055, %v2478, %v4093
        %v4179 = vsel %vm1055, %v2479, %v4095
        %v4180 = vsel %vm1055, %v2480, %v4097
        %v4181 = vsel %vm1055, %v2481, %v4099
        %v4182 = vsel %vm1055, %v2482, %v4101
        %v4183 = vsel %vm1055, %v2483, %v4103
        %v4184 = vsel %vm1055, %v2484, %v4105
        %v4185 = vsel %vm1055, %v2485, %v4107
        %v4186 = vsel %vm1055, %v2486, %v4109
        %v4187 = vsel %vm1055, %v2487, %v4111
        %v4188 = vsel %vm1055, %v2488, %v4113
        %v4189 = vsel %vm1055, %v2489, %v4115
        %v4190 = vsel %vm1055, %v2490, %v4117
        %v4191 = vsel %vm1055, %v2491, %v4119
        %v4192 = vsel %vm1055, %v2492, %v4121
        %v4193 = vsel %vm1055, %v2493, %v4123
        %v4194 = vsel %vm1055, %v2494, %v4125
        %v4195 = vsel %vm1055, %v2495, %v4127
        %v4196 = vsel %vm1055, %v2496, %v4129
        %v4197 = vsel %vm1055, %v2497, %v4131
        %v4198 = vsel %vm1055, %v2498, %v4133
        %v4199 = vsel %vm1055, %v2499, %v4135
        %v4200 = vld [vmem:[#allocation6] sm:$0xff]
        %v4201 = vld [vmem:[#allocation6 + $0x8] sm:$0xff]
        %v4202 = vld [vmem:[#allocation6 + $0x10] sm:$0xff]
        %v4203 = vld [vmem:[#allocation6 + $0x18] sm:$0xff]
        %v4204 = vld [vmem:[#allocation6 + $0x20] sm:$0xff]
        %v4205 = vld [vmem:[#allocation6 + $0x28] sm:$0xff]
        %v4206 = vld [vmem:[#allocation6 + $0x30] sm:$0xff]
        %v4207 = vld [vmem:[#allocation6 + $0x38] sm:$0xff]
        %v4208 = vld [vmem:[#allocation6 + $0x40] sm:$0xff]
        %v4209 = vld [vmem:[#allocation6 + $0x48] sm:$0xff]
        %v4210 = vld [vmem:[#allocation6 + $0x50] sm:$0xff]
        %v4211 = vld [vmem:[#allocation6 + $0x58] sm:$0xff]
        %v4212 = vld [vmem:[#allocation6 + $0x60] sm:$0xff]
        %v4213 = vld [vmem:[#allocation6 + $0x68] sm:$0xff]
        %v4214 = vld [vmem:[#allocation6 + $0x70] sm:$0xff]
        %v4215 = vld [vmem:[#allocation6 + $0x78] sm:$0xff]
        %v4216 = vld [vmem:[%s4] sm:$0xff]
        %v4217 = vld [vmem:[%s4 + $0x8] sm:$0xff]
        %v4218 = vld [vmem:[%s4 + $0x10] sm:$0xff]
        %v4219 = vld [vmem:[%s4 + $0x18] sm:$0xff]
        %v4220 = vld [vmem:[%s4 + $0x20] sm:$0xff]
        %v4221 = vld [vmem:[%s4 + $0x28] sm:$0xff]
        %v4222 = vld [vmem:[%s4 + $0x30] sm:$0xff]
        %v4223 = vld [vmem:[%s4 + $0x38] sm:$0xff]
        %v4224 = vld [vmem:[%s4 + $0x40] sm:$0xff]
        %v4225 = vld [vmem:[%s4 + $0x48] sm:$0xff]
        %v4226 = vld [vmem:[%s4 + $0x50] sm:$0xff]
        %v4227 = vld [vmem:[%s4 + $0x58] sm:$0xff]
        %v4228 = vld [vmem:[%s4 + $0x60] sm:$0xff]
        %v4229 = vld [vmem:[%s4 + $0x68] sm:$0xff]
        %v4230 = vld [vmem:[%s4 + $0x70] sm:$0xff]
        %v4231 = vld [vmem:[%s4 + $0x78] sm:$0xff]
        %4233 = vset.pattern.permute.xlu0 0
        %4234 = vperm.xlu0 %4233, %v4216
        %v4235 = vpop.permute.xlu0 %4234
        %4238 = vset.pattern.permute.xlu0 0
        %4239 = vperm.xlu0 %4238, %v4217
        %v4240 = vpop.permute.xlu0 %4239
        %4243 = vset.pattern.permute.xlu0 0
        %4244 = vperm.xlu0 %4243, %v4218
        %v4245 = vpop.permute.xlu0 %4244
        %4248 = vset.pattern.permute.xlu0 0
        %4249 = vperm.xlu0 %4248, %v4219
        %v4250 = vpop.permute.xlu0 %4249
        %4253 = vset.pattern.permute.xlu0 0
        %4254 = vperm.xlu0 %4253, %v4220
        %v4255 = vpop.permute.xlu0 %4254
        %4258 = vset.pattern.permute.xlu0 0
        %4259 = vperm.xlu0 %4258, %v4221
        %v4260 = vpop.permute.xlu0 %4259
        %4263 = vset.pattern.permute.xlu0 0
        %4264 = vperm.xlu0 %4263, %v4222
        %v4265 = vpop.permute.xlu0 %4264
        %4268 = vset.pattern.permute.xlu0 0
        %4269 = vperm.xlu0 %4268, %v4223
        %v4270 = vpop.permute.xlu0 %4269
        %4273 = vset.pattern.permute.xlu0 0
        %4274 = vperm.xlu0 %4273, %v4224
        %v4275 = vpop.permute.xlu0 %4274
        %4278 = vset.pattern.permute.xlu0 0
        %4279 = vperm.xlu0 %4278, %v4225
        %v4280 = vpop.permute.xlu0 %4279
        %4283 = vset.pattern.permute.xlu0 0
        %4284 = vperm.xlu0 %4283, %v4226
        %v4285 = vpop.permute.xlu0 %4284
        %4288 = vset.pattern.permute.xlu0 0
        %4289 = vperm.xlu0 %4288, %v4227
        %v4290 = vpop.permute.xlu0 %4289
        %4293 = vset.pattern.permute.xlu0 0
        %4294 = vperm.xlu0 %4293, %v4228
        %v4295 = vpop.permute.xlu0 %4294
        %4298 = vset.pattern.permute.xlu0 0
        %4299 = vperm.xlu0 %4298, %v4229
        %v4300 = vpop.permute.xlu0 %4299
        %4303 = vset.pattern.permute.xlu0 0
        %4304 = vperm.xlu0 %4303, %v4230
        %v4305 = vpop.permute.xlu0 %4304
        %4308 = vset.pattern.permute.xlu0 0
        %4309 = vperm.xlu0 %4308, %v4231
        %v4310 = vpop.permute.xlu0 %4309
        %4312 = vmatpush.xpose.msra.mxu0 %v4183
        %4313 = vmatpush.xpose.msra.mxu0 %v4182
        %4314 = vmatpush.xpose.msra.mxu0 %v4181
        %4315 = vmatpush.xpose.msra.mxu0 %v4180
        %4316 = vmatpush.xpose.msra.mxu0 %v4179
        %4317 = vmatpush.xpose.msra.mxu0 %v4178
        %4318 = vmatpush.xpose.msra.mxu0 %v4177
        %4319 = vmatpush.xpose.msra.mxu0 %v4176
        %4320 = vmatpush.xpose.msra.mxu0 %v4175
        %4321 = vmatpush.xpose.msra.mxu0 %v4174
        %4322 = vmatpush.xpose.msra.mxu0 %v4173
        %4323 = vmatpush.xpose.msra.mxu0 %v4172
        %4324 = vmatpush.xpose.msra.mxu0 %v4171
        %4325 = vmatpush.xpose.msra.mxu0 %v4170
        %4326 = vmatpush.xpose.msra.mxu0 %v4169
        %4327 = vmatpush.xpose.msra.mxu0 %v4168
        %4328 = vmatmul.f32.gmra.mxu0 %v4200
        %v4329 = vpop.f32.mrf.mxu0
        %v4330 = vadd.f32 %v4235, %v4329
        %4331 = vmatmul.f32.gmra.mxu0 %v4201
        %v4332 = vpop.f32.mrf.mxu0
        %v4333 = vadd.f32 %v4240, %v4332
        %4334 = vmatmul.f32.gmra.mxu0 %v4202
        %v4335 = vpop.f32.mrf.mxu0
        %v4336 = vadd.f32 %v4245, %v4335
        %4337 = vmatmul.f32.gmra.mxu0 %v4203
        %v4338 = vpop.f32.mrf.mxu0
        %v4339 = vadd.f32 %v4250, %v4338
        %4340 = vmatmul.f32.gmra.mxu0 %v4204
        %v4341 = vpop.f32.mrf.mxu0
        %v4342 = vadd.f32 %v4255, %v4341
        %4343 = vmatmul.f32.gmra.mxu0 %v4205
        %v4344 = vpop.f32.mrf.mxu0
        %v4345 = vadd.f32 %v4260, %v4344
        %4346 = vmatmul.f32.gmra.mxu0 %v4206
        %v4347 = vpop.f32.mrf.mxu0
        %v4348 = vadd.f32 %v4265, %v4347
        %4349 = vmatmul.f32.gmra.mxu0 %v4207
        %v4350 = vpop.f32.mrf.mxu0
        %v4351 = vadd.f32 %v4270, %v4350
        %4352 = vmatmul.f32.gmra.mxu0 %v4208
        %v4353 = vpop.f32.mrf.mxu0
        %v4354 = vadd.f32 %v4275, %v4353
        %4355 = vmatmul.f32.gmra.mxu0 %v4209
        %v4356 = vpop.f32.mrf.mxu0
        %v4357 = vadd.f32 %v4280, %v4356
        %4358 = vmatmul.f32.gmra.mxu0 %v4210
        %v4359 = vpop.f32.mrf.mxu0
        %v4360 = vadd.f32 %v4285, %v4359
        %4361 = vmatmul.f32.gmra.mxu0 %v4211
        %v4362 = vpop.f32.mrf.mxu0
        %v4363 = vadd.f32 %v4290, %v4362
        %4364 = vmatmul.f32.gmra.mxu0 %v4212
        %v4365 = vpop.f32.mrf.mxu0
        %v4366 = vadd.f32 %v4295, %v4365
        %4367 = vmatmul.f32.gmra.mxu0 %v4213
        %v4368 = vpop.f32.mrf.mxu0
        %v4369 = vadd.f32 %v4300, %v4368
        %4370 = vmatmul.f32.gmra.mxu0 %v4214
        %v4371 = vpop.f32.mrf.mxu0
        %v4372 = vadd.f32 %v4305, %v4371
        %4373 = vmatmul.f32.gmra.mxu0 %v4215
        %v4374 = vpop.f32.mrf.mxu0
        %v4375 = vadd.f32 %v4310, %v4374
        %4376 = vdwg.mxu0
        %4377 = vmatpush.xpose.msra.mxu0 %v4199
        %4378 = vmatpush.xpose.msra.mxu0 %v4198
        %4379 = vmatpush.xpose.msra.mxu0 %v4197
        %4380 = vmatpush.xpose.msra.mxu0 %v4196
        %4381 = vmatpush.xpose.msra.mxu0 %v4195
        %4382 = vmatpush.xpose.msra.mxu0 %v4194
        %4383 = vmatpush.xpose.msra.mxu0 %v4193
        %4384 = vmatpush.xpose.msra.mxu0 %v4192
        %4385 = vmatpush.xpose.msra.mxu0 %v4191
        %4386 = vmatpush.xpose.msra.mxu0 %v4190
        %4387 = vmatpush.xpose.msra.mxu0 %v4189
        %4388 = vmatpush.xpose.msra.mxu0 %v4188
        %4389 = vmatpush.xpose.msra.mxu0 %v4187
        %4390 = vmatpush.xpose.msra.mxu0 %v4186
        %4391 = vmatpush.xpose.msra.mxu0 %v4185
        %4392 = vmatpush.xpose.msra.mxu0 %v4184
        %4393 = vmatmul.f32.gmra.mxu0 %v4200
        %v4394 = vpop.f32.mrf.mxu0
        %v4395 = vadd.f32 %v4235, %v4394
        %4396 = vmatmul.f32.gmra.mxu0 %v4201
        %v4397 = vpop.f32.mrf.mxu0
        %v4398 = vadd.f32 %v4240, %v4397
        %4399 = vmatmul.f32.gmra.mxu0 %v4202
        %v4400 = vpop.f32.mrf.mxu0
        %v4401 = vadd.f32 %v4245, %v4400
        %4402 = vmatmul.f32.gmra.mxu0 %v4203
        %v4403 = vpop.f32.mrf.mxu0
        %v4404 = vadd.f32 %v4250, %v4403
        %4405 = vmatmul.f32.gmra.mxu0 %v4204
        %v4406 = vpop.f32.mrf.mxu0
        %v4407 = vadd.f32 %v4255, %v4406
        %4408 = vmatmul.f32.gmra.mxu0 %v4205
        %v4409 = vpop.f32.mrf.mxu0
        %v4410 = vadd.f32 %v4260, %v4409
        %4411 = vmatmul.f32.gmra.mxu0 %v4206
        %v4412 = vpop.f32.mrf.mxu0
        %v4413 = vadd.f32 %v4265, %v4412
        %4414 = vmatmul.f32.gmra.mxu0 %v4207
        %v4415 = vpop.f32.mrf.mxu0
        %v4416 = vadd.f32 %v4270, %v4415
        %4417 = vmatmul.f32.gmra.mxu0 %v4208
        %v4418 = vpop.f32.mrf.mxu0
        %v4419 = vadd.f32 %v4275, %v4418
        %4420 = vmatmul.f32.gmra.mxu0 %v4209
        %v4421 = vpop.f32.mrf.mxu0
        %v4422 = vadd.f32 %v4280, %v4421
        %4423 = vmatmul.f32.gmra.mxu0 %v4210
        %v4424 = vpop.f32.mrf.mxu0
        %v4425 = vadd.f32 %v4285, %v4424
        %4426 = vmatmul.f32.gmra.mxu0 %v4211
        %v4427 = vpop.f32.mrf.mxu0
        %v4428 = vadd.f32 %v4290, %v4427
        %4429 = vmatmul.f32.gmra.mxu0 %v4212
        %v4430 = vpop.f32.mrf.mxu0
        %v4431 = vadd.f32 %v4295, %v4430
        %4432 = vmatmul.f32.gmra.mxu0 %v4213
        %v4433 = vpop.f32.mrf.mxu0
        %v4434 = vadd.f32 %v4300, %v4433
        %4435 = vmatmul.f32.gmra.mxu0 %v4214
        %v4436 = vpop.f32.mrf.mxu0
        %v4437 = vadd.f32 %v4305, %v4436
        %4438 = vmatmul.f32.gmra.mxu0 %v4215
        %v4439 = vpop.f32.mrf.mxu0
        %v4440 = vadd.f32 %v4310, %v4439
        %4441 = vdwg.mxu0
        %v4442 = vld [vmem:[#allocation8] sm:$0xff]
        %v4443 = vld [vmem:[#allocation8 + $0x8] sm:$0xff]
        %v4444 = vld [vmem:[#allocation8 + $0x10] sm:$0xff]
        %v4445 = vld [vmem:[#allocation8 + $0x18] sm:$0xff]
        %v4446 = vld [vmem:[#allocation8 + $0x20] sm:$0xff]
        %v4447 = vld [vmem:[#allocation8 + $0x28] sm:$0xff]
        %v4448 = vld [vmem:[#allocation8 + $0x30] sm:$0xff]
        %v4449 = vld [vmem:[#allocation8 + $0x38] sm:$0xff]
        %v4450 = vld [vmem:[#allocation8 + $0x40] sm:$0xff]
        %v4451 = vld [vmem:[#allocation8 + $0x48] sm:$0xff]
        %v4452 = vld [vmem:[#allocation8 + $0x50] sm:$0xff]
        %v4453 = vld [vmem:[#allocation8 + $0x58] sm:$0xff]
        %v4454 = vld [vmem:[#allocation8 + $0x60] sm:$0xff]
        %v4455 = vld [vmem:[#allocation8 + $0x68] sm:$0xff]
        %v4456 = vld [vmem:[#allocation8 + $0x70] sm:$0xff]
        %v4457 = vld [vmem:[#allocation8 + $0x78] sm:$0xff]
        %v4458 = vld [vmem:[%s6] sm:$0xff]
        %v4459 = vld [vmem:[%s6 + $0x8] sm:$0xff]
        %v4460 = vld [vmem:[%s6 + $0x10] sm:$0xff]
        %v4461 = vld [vmem:[%s6 + $0x18] sm:$0xff]
        %v4462 = vld [vmem:[%s6 + $0x20] sm:$0xff]
        %v4463 = vld [vmem:[%s6 + $0x28] sm:$0xff]
        %v4464 = vld [vmem:[%s6 + $0x30] sm:$0xff]
        %v4465 = vld [vmem:[%s6 + $0x38] sm:$0xff]
        %v4466 = vld [vmem:[%s6 + $0x40] sm:$0xff]
        %v4467 = vld [vmem:[%s6 + $0x48] sm:$0xff]
        %v4468 = vld [vmem:[%s6 + $0x50] sm:$0xff]
        %v4469 = vld [vmem:[%s6 + $0x58] sm:$0xff]
        %v4470 = vld [vmem:[%s6 + $0x60] sm:$0xff]
        %v4471 = vld [vmem:[%s6 + $0x68] sm:$0xff]
        %v4472 = vld [vmem:[%s6 + $0x70] sm:$0xff]
        %v4473 = vld [vmem:[%s6 + $0x78] sm:$0xff]
        %4475 = vset.pattern.permute.xlu0 0
        %4476 = vperm.xlu0 %4475, %v4458
        %v4477 = vpop.permute.xlu0 %4476
        %4480 = vset.pattern.permute.xlu0 0
        %4481 = vperm.xlu0 %4480, %v4459
        %v4482 = vpop.permute.xlu0 %4481
        %4485 = vset.pattern.permute.xlu0 0
        %4486 = vperm.xlu0 %4485, %v4460
        %v4487 = vpop.permute.xlu0 %4486
        %4490 = vset.pattern.permute.xlu0 0
        %4491 = vperm.xlu0 %4490, %v4461
        %v4492 = vpop.permute.xlu0 %4491
        %4495 = vset.pattern.permute.xlu0 0
        %4496 = vperm.xlu0 %4495, %v4462
        %v4497 = vpop.permute.xlu0 %4496
        %4500 = vset.pattern.permute.xlu0 0
        %4501 = vperm.xlu0 %4500, %v4463
        %v4502 = vpop.permute.xlu0 %4501
        %4505 = vset.pattern.permute.xlu0 0
        %4506 = vperm.xlu0 %4505, %v4464
        %v4507 = vpop.permute.xlu0 %4506
        %4510 = vset.pattern.permute.xlu0 0
        %4511 = vperm.xlu0 %4510, %v4465
        %v4512 = vpop.permute.xlu0 %4511
        %4515 = vset.pattern.permute.xlu0 0
        %4516 = vperm.xlu0 %4515, %v4466
        %v4517 = vpop.permute.xlu0 %4516
        %4520 = vset.pattern.permute.xlu0 0
        %4521 = vperm.xlu0 %4520, %v4467
        %v4522 = vpop.permute.xlu0 %4521
        %4525 = vset.pattern.permute.xlu0 0
        %4526 = vperm.xlu0 %4525, %v4468
        %v4527 = vpop.permute.xlu0 %4526
        %4530 = vset.pattern.permute.xlu0 0
        %4531 = vperm.xlu0 %4530, %v4469
        %v4532 = vpop.permute.xlu0 %4531
        %4535 = vset.pattern.permute.xlu0 0
        %4536 = vperm.xlu0 %4535, %v4470
        %v4537 = vpop.permute.xlu0 %4536
        %4540 = vset.pattern.permute.xlu0 0
        %4541 = vperm.xlu0 %4540, %v4471
        %v4542 = vpop.permute.xlu0 %4541
        %4545 = vset.pattern.permute.xlu0 0
        %4546 = vperm.xlu0 %4545, %v4472
        %v4547 = vpop.permute.xlu0 %4546
        %4550 = vset.pattern.permute.xlu0 0
        %4551 = vperm.xlu0 %4550, %v4473
        %v4552 = vpop.permute.xlu0 %4551
        %4554 = vmatpush.msra.mxu0 %v4375
        %4555 = vmatpush.msra.mxu0 %v4372
        %4556 = vmatpush.msra.mxu0 %v4369
        %4557 = vmatpush.msra.mxu0 %v4366
        %4558 = vmatpush.msra.mxu0 %v4363
        %4559 = vmatpush.msra.mxu0 %v4360
        %4560 = vmatpush.msra.mxu0 %v4357
        %4561 = vmatpush.msra.mxu0 %v4354
        %4562 = vmatpush.msra.mxu0 %v4351
        %4563 = vmatpush.msra.mxu0 %v4348
        %4564 = vmatpush.msra.mxu0 %v4345
        %4565 = vmatpush.msra.mxu0 %v4342
        %4566 = vmatpush.msra.mxu0 %v4339
        %4567 = vmatpush.msra.mxu0 %v4336
        %4568 = vmatpush.msra.mxu0 %v4333
        %4569 = vmatpush.msra.mxu0 %v4330
        %4570 = vmatmul.f32.gmra.mxu0 %v4442
        %v4571 = vpop.f32.mrf.mxu0
        %v4572 = vadd.f32 %v4477, %v4571
        %4573 = vmatmul.f32.gmra.mxu0 %v4443
        %v4574 = vpop.f32.mrf.mxu0
        %v4575 = vadd.f32 %v4482, %v4574
        %4576 = vmatmul.f32.gmra.mxu0 %v4444
        %v4577 = vpop.f32.mrf.mxu0
        %v4578 = vadd.f32 %v4487, %v4577
        %4579 = vmatmul.f32.gmra.mxu0 %v4445
        %v4580 = vpop.f32.mrf.mxu0
        %v4581 = vadd.f32 %v4492, %v4580
        %4582 = vmatmul.f32.gmra.mxu0 %v4446
        %v4583 = vpop.f32.mrf.mxu0
        %v4584 = vadd.f32 %v4497, %v4583
        %4585 = vmatmul.f32.gmra.mxu0 %v4447
        %v4586 = vpop.f32.mrf.mxu0
        %v4587 = vadd.f32 %v4502, %v4586
        %4588 = vmatmul.f32.gmra.mxu0 %v4448
        %v4589 = vpop.f32.mrf.mxu0
        %v4590 = vadd.f32 %v4507, %v4589
        %4591 = vmatmul.f32.gmra.mxu0 %v4449
        %v4592 = vpop.f32.mrf.mxu0
        %v4593 = vadd.f32 %v4512, %v4592
        %4594 = vmatmul.f32.gmra.mxu0 %v4450
        %v4595 = vpop.f32.mrf.mxu0
        %v4596 = vadd.f32 %v4517, %v4595
        %4597 = vmatmul.f32.gmra.mxu0 %v4451
        %v4598 = vpop.f32.mrf.mxu0
        %v4599 = vadd.f32 %v4522, %v4598
        %4600 = vmatmul.f32.gmra.mxu0 %v4452
        %v4601 = vpop.f32.mrf.mxu0
        %v4602 = vadd.f32 %v4527, %v4601
        %4603 = vmatmul.f32.gmra.mxu0 %v4453
        %v4604 = vpop.f32.mrf.mxu0
        %v4605 = vadd.f32 %v4532, %v4604
        %4606 = vmatmul.f32.gmra.mxu0 %v4454
        %v4607 = vpop.f32.mrf.mxu0
        %v4608 = vadd.f32 %v4537, %v4607
        %4609 = vmatmul.f32.gmra.mxu0 %v4455
        %v4610 = vpop.f32.mrf.mxu0
        %v4611 = vadd.f32 %v4542, %v4610
        %4612 = vmatmul.f32.gmra.mxu0 %v4456
        %v4613 = vpop.f32.mrf.mxu0
        %v4614 = vadd.f32 %v4547, %v4613
        %4615 = vmatmul.f32.gmra.mxu0 %v4457
        %v4616 = vpop.f32.mrf.mxu0
        %v4617 = vadd.f32 %v4552, %v4616
        %4618 = vdwg.mxu0
        %4619 = vmatpush.msra.mxu0 %v4440
        %4620 = vmatpush.msra.mxu0 %v4437
        %4621 = vmatpush.msra.mxu0 %v4434
        %4622 = vmatpush.msra.mxu0 %v4431
        %4623 = vmatpush.msra.mxu0 %v4428
        %4624 = vmatpush.msra.mxu0 %v4425
        %4625 = vmatpush.msra.mxu0 %v4422
        %4626 = vmatpush.msra.mxu0 %v4419
        %4627 = vmatpush.msra.mxu0 %v4416
        %4628 = vmatpush.msra.mxu0 %v4413
        %4629 = vmatpush.msra.mxu0 %v4410
        %4630 = vmatpush.msra.mxu0 %v4407
        %4631 = vmatpush.msra.mxu0 %v4404
        %4632 = vmatpush.msra.mxu0 %v4401
        %4633 = vmatpush.msra.mxu0 %v4398
        %4634 = vmatpush.msra.mxu0 %v4395
        %4635 = vmatmul.f32.gmra.mxu0 %v4442
        %v4636 = vpop.f32.mrf.mxu0
        %v4637 = vadd.f32 %v4477, %v4636
        %4638 = vmatmul.f32.gmra.mxu0 %v4443
        %v4639 = vpop.f32.mrf.mxu0
        %v4640 = vadd.f32 %v4482, %v4639
        %4641 = vmatmul.f32.gmra.mxu0 %v4444
        %v4642 = vpop.f32.mrf.mxu0
        %v4643 = vadd.f32 %v4487, %v4642
        %4644 = vmatmul.f32.gmra.mxu0 %v4445
        %v4645 = vpop.f32.mrf.mxu0
        %v4646 = vadd.f32 %v4492, %v4645
        %4647 = vmatmul.f32.gmra.mxu0 %v4446
        %v4648 = vpop.f32.mrf.mxu0
        %v4649 = vadd.f32 %v4497, %v4648
        %4650 = vmatmul.f32.gmra.mxu0 %v4447
        %v4651 = vpop.f32.mrf.mxu0
        %v4652 = vadd.f32 %v4502, %v4651
        %4653 = vmatmul.f32.gmra.mxu0 %v4448
        %v4654 = vpop.f32.mrf.mxu0
        %v4655 = vadd.f32 %v4507, %v4654
        %4656 = vmatmul.f32.gmra.mxu0 %v4449
        %v4657 = vpop.f32.mrf.mxu0
        %v4658 = vadd.f32 %v4512, %v4657
        %4659 = vmatmul.f32.gmra.mxu0 %v4450
        %v4660 = vpop.f32.mrf.mxu0
        %v4661 = vadd.f32 %v4517, %v4660
        %4662 = vmatmul.f32.gmra.mxu0 %v4451
        %v4663 = vpop.f32.mrf.mxu0
        %v4664 = vadd.f32 %v4522, %v4663
        %4665 = vmatmul.f32.gmra.mxu0 %v4452
        %v4666 = vpop.f32.mrf.mxu0
        %v4667 = vadd.f32 %v4527, %v4666
        %4668 = vmatmul.f32.gmra.mxu0 %v4453
        %v4669 = vpop.f32.mrf.mxu0
        %v4670 = vadd.f32 %v4532, %v4669
        %4671 = vmatmul.f32.gmra.mxu0 %v4454
        %v4672 = vpop.f32.mrf.mxu0
        %v4673 = vadd.f32 %v4537, %v4672
        %4674 = vmatmul.f32.gmra.mxu0 %v4455
        %v4675 = vpop.f32.mrf.mxu0
        %v4676 = vadd.f32 %v4542, %v4675
        %4677 = vmatmul.f32.gmra.mxu0 %v4456
        %v4678 = vpop.f32.mrf.mxu0
        %v4679 = vadd.f32 %v4547, %v4678
        %4680 = vmatmul.f32.gmra.mxu0 %v4457
        %v4681 = vpop.f32.mrf.mxu0
        %v4682 = vadd.f32 %v4552, %v4681
        %4683 = vdwg.mxu0
        %v4684 = vand.u32 2147483647, %v4572
        %v4685 = vand.u32 2147483647, %v4637
        %v4686 = vand.u32 2147483647, %v4575
        %v4687 = vand.u32 2147483647, %v4640
        %v4688 = vand.u32 2147483647, %v4578
        %v4689 = vand.u32 2147483647, %v4643
        %v4690 = vand.u32 2147483647, %v4581
        %v4691 = vand.u32 2147483647, %v4646
        %v4692 = vand.u32 2147483647, %v4584
        %v4693 = vand.u32 2147483647, %v4649
        %v4694 = vand.u32 2147483647, %v4587
        %v4695 = vand.u32 2147483647, %v4652
        %v4696 = vand.u32 2147483647, %v4590
        %v4697 = vand.u32 2147483647, %v4655
        %v4698 = vand.u32 2147483647, %v4593
        %v4699 = vand.u32 2147483647, %v4658
        %v4700 = vand.u32 2147483647, %v4596
        %v4701 = vand.u32 2147483647, %v4661
        %v4702 = vand.u32 2147483647, %v4599
        %v4703 = vand.u32 2147483647, %v4664
        %v4704 = vand.u32 2147483647, %v4602
        %v4705 = vand.u32 2147483647, %v4667
        %v4706 = vand.u32 2147483647, %v4605
        %v4707 = vand.u32 2147483647, %v4670
        %v4708 = vand.u32 2147483647, %v4608
        %v4709 = vand.u32 2147483647, %v4673
        %v4710 = vand.u32 2147483647, %v4611
        %v4711 = vand.u32 2147483647, %v4676
        %v4712 = vand.u32 2147483647, %v4614
        %v4713 = vand.u32 2147483647, %v4679
        %v4714 = vand.u32 2147483647, %v4617
        %v4715 = vand.u32 2147483647, %v4682
        %v4716 = vmul.f32 %v4684, 0.70710677
        %v4717 = vmul.f32 %v4685, 0.70710677
        %v4718 = vmul.f32 %v4686, 0.70710677
        %v4719 = vmul.f32 %v4687, 0.70710677
        %v4720 = vmul.f32 %v4688, 0.70710677
        %v4721 = vmul.f32 %v4689, 0.70710677
        %v4722 = vmul.f32 %v4690, 0.70710677
        %v4723 = vmul.f32 %v4691, 0.70710677
        %v4724 = vmul.f32 %v4692, 0.70710677
        %v4725 = vmul.f32 %v4693, 0.70710677
        %v4726 = vmul.f32 %v4694, 0.70710677
        %v4727 = vmul.f32 %v4695, 0.70710677
        %v4728 = vmul.f32 %v4696, 0.70710677
        %v4729 = vmul.f32 %v4697, 0.70710677
        %v4730 = vmul.f32 %v4698, 0.70710677
        %v4731 = vmul.f32 %v4699, 0.70710677
        %v4732 = vmul.f32 %v4700, 0.70710677
        %v4733 = vmul.f32 %v4701, 0.70710677
        %v4734 = vmul.f32 %v4702, 0.70710677
        %v4735 = vmul.f32 %v4703, 0.70710677
        %v4736 = vmul.f32 %v4704, 0.70710677
        %v4737 = vmul.f32 %v4705, 0.70710677
        %v4738 = vmul.f32 %v4706, 0.70710677
        %v4739 = vmul.f32 %v4707, 0.70710677
        %v4740 = vmul.f32 %v4708, 0.70710677
        %v4741 = vmul.f32 %v4709, 0.70710677
        %v4742 = vmul.f32 %v4710, 0.70710677
        %v4743 = vmul.f32 %v4711, 0.70710677
        %v4744 = vmul.f32 %v4712, 0.70710677
        %v4745 = vmul.f32 %v4713, 0.70710677
        %v4746 = vmul.f32 %v4714, 0.70710677
        %v4747 = vmul.f32 %v4715, 0.70710677
        %v4748 = vmul.f32 %v4716, 0.3275911
        %v4749 = vmul.f32 %v4717, 0.3275911
        %v4750 = vmul.f32 %v4718, 0.3275911
        %v4751 = vmul.f32 %v4719, 0.3275911
        %v4752 = vmul.f32 %v4720, 0.3275911
        %v4753 = vmul.f32 %v4721, 0.3275911
        %v4754 = vmul.f32 %v4722, 0.3275911
        %v4755 = vmul.f32 %v4723, 0.3275911
        %v4756 = vmul.f32 %v4724, 0.3275911
        %v4757 = vmul.f32 %v4725, 0.3275911
        %v4758 = vmul.f32 %v4726, 0.3275911
        %v4759 = vmul.f32 %v4727, 0.3275911
        %v4760 = vmul.f32 %v4728, 0.3275911
        %v4761 = vmul.f32 %v4729, 0.3275911
        %v4762 = vmul.f32 %v4730, 0.3275911
        %v4763 = vmul.f32 %v4731, 0.3275911
        %v4764 = vmul.f32 %v4732, 0.3275911
        %v4765 = vmul.f32 %v4733, 0.3275911
        %v4766 = vmul.f32 %v4734, 0.3275911
        %v4767 = vmul.f32 %v4735, 0.3275911
        %v4768 = vmul.f32 %v4736, 0.3275911
        %v4769 = vmul.f32 %v4737, 0.3275911
        %v4770 = vmul.f32 %v4738, 0.3275911
        %v4771 = vmul.f32 %v4739, 0.3275911
        %v4772 = vmul.f32 %v4740, 0.3275911
        %v4773 = vmul.f32 %v4741, 0.3275911
        %v4774 = vmul.f32 %v4742, 0.3275911
        %v4775 = vmul.f32 %v4743, 0.3275911
        %v4776 = vmul.f32 %v4744, 0.3275911
        %v4777 = vmul.f32 %v4745, 0.3275911
        %v4778 = vmul.f32 %v4746, 0.3275911
        %v4779 = vmul.f32 %v4747, 0.3275911
        %v4780 = vadd.f32 %v4748, 1.0
        %v4781 = vadd.f32 %v4749, 1.0
        %v4782 = vadd.f32 %v4750, 1.0
        %v4783 = vadd.f32 %v4751, 1.0
        %v4784 = vadd.f32 %v4752, 1.0
        %v4785 = vadd.f32 %v4753, 1.0
        %v4786 = vadd.f32 %v4754, 1.0
        %v4787 = vadd.f32 %v4755, 1.0
        %v4788 = vadd.f32 %v4756, 1.0
        %v4789 = vadd.f32 %v4757, 1.0
        %v4790 = vadd.f32 %v4758, 1.0
        %v4791 = vadd.f32 %v4759, 1.0
        %v4792 = vadd.f32 %v4760, 1.0
        %v4793 = vadd.f32 %v4761, 1.0
        %v4794 = vadd.f32 %v4762, 1.0
        %v4795 = vadd.f32 %v4763, 1.0
        %v4796 = vadd.f32 %v4764, 1.0
        %v4797 = vadd.f32 %v4765, 1.0
        %v4798 = vadd.f32 %v4766, 1.0
        %v4799 = vadd.f32 %v4767, 1.0
        %v4800 = vadd.f32 %v4768, 1.0
        %v4801 = vadd.f32 %v4769, 1.0
        %v4802 = vadd.f32 %v4770, 1.0
        %v4803 = vadd.f32 %v4771, 1.0
        %v4804 = vadd.f32 %v4772, 1.0
        %v4805 = vadd.f32 %v4773, 1.0
        %v4806 = vadd.f32 %v4774, 1.0
        %v4807 = vadd.f32 %v4775, 1.0
        %v4808 = vadd.f32 %v4776, 1.0
        %v4809 = vadd.f32 %v4777, 1.0
        %v4810 = vadd.f32 %v4778, 1.0
        %v4811 = vadd.f32 %v4779, 1.0
        %v4812 = vrcp.pop %v4780
        %v4813 = vmul.f32 %v4780, %v4812
        %v4814 = vsub.f32 1.0, %v4813
        %v4815 = vmul.f32 %v4812, %v4814
        %v4816 = vadd.f32 %v4812, %v4815
        %vm4817 = vweird.f32 %v4780
        %vm4818 = vweird.f32 %v4812
        %vm4819 = vmor %vm4817, %vm4818
        %v4820 = vsel %vm4819, %v4812, %v4816
        %v4821 = vand.u32 2147483647, %v4780
        %vm4822 = vcmp.eq.f32.partialorder %v4821, 8.507059e+37
        %v4823 = vand.u32 %v4780, 2147483648
        %v4824 = vor.u32 1.1754944e-38, %v4823
        %v4825 = vsel %vm4822, %v4824, %v4820
        %v4826 = vmul.f32 1.0, %v4825
        %v4827 = vrcp.pop %v4781
        %v4828 = vmul.f32 %v4781, %v4827
        %v4829 = vsub.f32 1.0, %v4828
        %v4830 = vmul.f32 %v4827, %v4829
        %v4831 = vadd.f32 %v4827, %v4830
        %vm4832 = vweird.f32 %v4781
        %vm4833 = vweird.f32 %v4827
        %vm4834 = vmor %vm4832, %vm4833
        %v4835 = vsel %vm4834, %v4827, %v4831
        %v4836 = vand.u32 2147483647, %v4781
        %vm4837 = vcmp.eq.f32.partialorder %v4836, 8.507059e+37
        %v4838 = vand.u32 %v4781, 2147483648
        %v4839 = vor.u32 1.1754944e-38, %v4838
        %v4840 = vsel %vm4837, %v4839, %v4835
        %v4841 = vmul.f32 1.0, %v4840
        %v4842 = vrcp.pop %v4782
        %v4843 = vmul.f32 %v4782, %v4842
        %v4844 = vsub.f32 1.0, %v4843
        %v4845 = vmul.f32 %v4842, %v4844
        %v4846 = vadd.f32 %v4842, %v4845
        %vm4847 = vweird.f32 %v4782
        %vm4848 = vweird.f32 %v4842
        %vm4849 = vmor %vm4847, %vm4848
        %v4850 = vsel %vm4849, %v4842, %v4846
        %v4851 = vand.u32 2147483647, %v4782
        %vm4852 = vcmp.eq.f32.partialorder %v4851, 8.507059e+37
        %v4853 = vand.u32 %v4782, 2147483648
        %v4854 = vor.u32 1.1754944e-38, %v4853
        %v4855 = vsel %vm4852, %v4854, %v4850
        %v4856 = vmul.f32 1.0, %v4855
        %v4857 = vrcp.pop %v4783
        %v4858 = vmul.f32 %v4783, %v4857
        %v4859 = vsub.f32 1.0, %v4858
        %v4860 = vmul.f32 %v4857, %v4859
        %v4861 = vadd.f32 %v4857, %v4860
        %vm4862 = vweird.f32 %v4783
        %vm4863 = vweird.f32 %v4857
        %vm4864 = vmor %vm4862, %vm4863
        %v4865 = vsel %vm4864, %v4857, %v4861
        %v4866 = vand.u32 2147483647, %v4783
        %vm4867 = vcmp.eq.f32.partialorder %v4866, 8.507059e+37
        %v4868 = vand.u32 %v4783, 2147483648
        %v4869 = vor.u32 1.1754944e-38, %v4868
        %v4870 = vsel %vm4867, %v4869, %v4865
        %v4871 = vmul.f32 1.0, %v4870
        %v4872 = vrcp.pop %v4784
        %v4873 = vmul.f32 %v4784, %v4872
        %v4874 = vsub.f32 1.0, %v4873
        %v4875 = vmul.f32 %v4872, %v4874
        %v4876 = vadd.f32 %v4872, %v4875
        %vm4877 = vweird.f32 %v4784
        %vm4878 = vweird.f32 %v4872
        %vm4879 = vmor %vm4877, %vm4878
        %v4880 = vsel %vm4879, %v4872, %v4876
        %v4881 = vand.u32 2147483647, %v4784
        %vm4882 = vcmp.eq.f32.partialorder %v4881, 8.507059e+37
        %v4883 = vand.u32 %v4784, 2147483648
        %v4884 = vor.u32 1.1754944e-38, %v4883
        %v4885 = vsel %vm4882, %v4884, %v4880
        %v4886 = vmul.f32 1.0, %v4885
        %v4887 = vrcp.pop %v4785
        %v4888 = vmul.f32 %v4785, %v4887
        %v4889 = vsub.f32 1.0, %v4888
        %v4890 = vmul.f32 %v4887, %v4889
        %v4891 = vadd.f32 %v4887, %v4890
        %vm4892 = vweird.f32 %v4785
        %vm4893 = vweird.f32 %v4887
        %vm4894 = vmor %vm4892, %vm4893
        %v4895 = vsel %vm4894, %v4887, %v4891
        %v4896 = vand.u32 2147483647, %v4785
        %vm4897 = vcmp.eq.f32.partialorder %v4896, 8.507059e+37
        %v4898 = vand.u32 %v4785, 2147483648
        %v4899 = vor.u32 1.1754944e-38, %v4898
        %v4900 = vsel %vm4897, %v4899, %v4895
        %v4901 = vmul.f32 1.0, %v4900
        %v4902 = vrcp.pop %v4786
        %v4903 = vmul.f32 %v4786, %v4902
        %v4904 = vsub.f32 1.0, %v4903
        %v4905 = vmul.f32 %v4902, %v4904
        %v4906 = vadd.f32 %v4902, %v4905
        %vm4907 = vweird.f32 %v4786
        %vm4908 = vweird.f32 %v4902
        %vm4909 = vmor %vm4907, %vm4908
        %v4910 = vsel %vm4909, %v4902, %v4906
        %v4911 = vand.u32 2147483647, %v4786
        %vm4912 = vcmp.eq.f32.partialorder %v4911, 8.507059e+37
        %v4913 = vand.u32 %v4786, 2147483648
        %v4914 = vor.u32 1.1754944e-38, %v4913
        %v4915 = vsel %vm4912, %v4914, %v4910
        %v4916 = vmul.f32 1.0, %v4915
        %v4917 = vrcp.pop %v4787
        %v4918 = vmul.f32 %v4787, %v4917
        %v4919 = vsub.f32 1.0, %v4918
        %v4920 = vmul.f32 %v4917, %v4919
        %v4921 = vadd.f32 %v4917, %v4920
        %vm4922 = vweird.f32 %v4787
        %vm4923 = vweird.f32 %v4917
        %vm4924 = vmor %vm4922, %vm4923
        %v4925 = vsel %vm4924, %v4917, %v4921
        %v4926 = vand.u32 2147483647, %v4787
        %vm4927 = vcmp.eq.f32.partialorder %v4926, 8.507059e+37
        %v4928 = vand.u32 %v4787, 2147483648
        %v4929 = vor.u32 1.1754944e-38, %v4928
        %v4930 = vsel %vm4927, %v4929, %v4925
        %v4931 = vmul.f32 1.0, %v4930
        %v4932 = vrcp.pop %v4788
        %v4933 = vmul.f32 %v4788, %v4932
        %v4934 = vsub.f32 1.0, %v4933
        %v4935 = vmul.f32 %v4932, %v4934
        %v4936 = vadd.f32 %v4932, %v4935
        %vm4937 = vweird.f32 %v4788
        %vm4938 = vweird.f32 %v4932
        %vm4939 = vmor %vm4937, %vm4938
        %v4940 = vsel %vm4939, %v4932, %v4936
        %v4941 = vand.u32 2147483647, %v4788
        %vm4942 = vcmp.eq.f32.partialorder %v4941, 8.507059e+37
        %v4943 = vand.u32 %v4788, 2147483648
        %v4944 = vor.u32 1.1754944e-38, %v4943
        %v4945 = vsel %vm4942, %v4944, %v4940
        %v4946 = vmul.f32 1.0, %v4945
        %v4947 = vrcp.pop %v4789
        %v4948 = vmul.f32 %v4789, %v4947
        %v4949 = vsub.f32 1.0, %v4948
        %v4950 = vmul.f32 %v4947, %v4949
        %v4951 = vadd.f32 %v4947, %v4950
        %vm4952 = vweird.f32 %v4789
        %vm4953 = vweird.f32 %v4947
        %vm4954 = vmor %vm4952, %vm4953
        %v4955 = vsel %vm4954, %v4947, %v4951
        %v4956 = vand.u32 2147483647, %v4789
        %vm4957 = vcmp.eq.f32.partialorder %v4956, 8.507059e+37
        %v4958 = vand.u32 %v4789, 2147483648
        %v4959 = vor.u32 1.1754944e-38, %v4958
        %v4960 = vsel %vm4957, %v4959, %v4955
        %v4961 = vmul.f32 1.0, %v4960
        %v4962 = vrcp.pop %v4790
        %v4963 = vmul.f32 %v4790, %v4962
        %v4964 = vsub.f32 1.0, %v4963
        %v4965 = vmul.f32 %v4962, %v4964
        %v4966 = vadd.f32 %v4962, %v4965
        %vm4967 = vweird.f32 %v4790
        %vm4968 = vweird.f32 %v4962
        %vm4969 = vmor %vm4967, %vm4968
        %v4970 = vsel %vm4969, %v4962, %v4966
        %v4971 = vand.u32 2147483647, %v4790
        %vm4972 = vcmp.eq.f32.partialorder %v4971, 8.507059e+37
        %v4973 = vand.u32 %v4790, 2147483648
        %v4974 = vor.u32 1.1754944e-38, %v4973
        %v4975 = vsel %vm4972, %v4974, %v4970
        %v4976 = vmul.f32 1.0, %v4975
        %v4977 = vrcp.pop %v4791
        %v4978 = vmul.f32 %v4791, %v4977
        %v4979 = vsub.f32 1.0, %v4978
        %v4980 = vmul.f32 %v4977, %v4979
        %v4981 = vadd.f32 %v4977, %v4980
        %vm4982 = vweird.f32 %v4791
        %vm4983 = vweird.f32 %v4977
        %vm4984 = vmor %vm4982, %vm4983
        %v4985 = vsel %vm4984, %v4977, %v4981
        %v4986 = vand.u32 2147483647, %v4791
        %vm4987 = vcmp.eq.f32.partialorder %v4986, 8.507059e+37
        %v4988 = vand.u32 %v4791, 2147483648
        %v4989 = vor.u32 1.1754944e-38, %v4988
        %v4990 = vsel %vm4987, %v4989, %v4985
        %v4991 = vmul.f32 1.0, %v4990
        %v4992 = vrcp.pop %v4792
        %v4993 = vmul.f32 %v4792, %v4992
        %v4994 = vsub.f32 1.0, %v4993
        %v4995 = vmul.f32 %v4992, %v4994
        %v4996 = vadd.f32 %v4992, %v4995
        %vm4997 = vweird.f32 %v4792
        %vm4998 = vweird.f32 %v4992
        %vm4999 = vmor %vm4997, %vm4998
        %v5000 = vsel %vm4999, %v4992, %v4996
        %v5001 = vand.u32 2147483647, %v4792
        %vm5002 = vcmp.eq.f32.partialorder %v5001, 8.507059e+37
        %v5003 = vand.u32 %v4792, 2147483648
        %v5004 = vor.u32 1.1754944e-38, %v5003
        %v5005 = vsel %vm5002, %v5004, %v5000
        %v5006 = vmul.f32 1.0, %v5005
        %v5007 = vrcp.pop %v4793
        %v5008 = vmul.f32 %v4793, %v5007
        %v5009 = vsub.f32 1.0, %v5008
        %v5010 = vmul.f32 %v5007, %v5009
        %v5011 = vadd.f32 %v5007, %v5010
        %vm5012 = vweird.f32 %v4793
        %vm5013 = vweird.f32 %v5007
        %vm5014 = vmor %vm5012, %vm5013
        %v5015 = vsel %vm5014, %v5007, %v5011
        %v5016 = vand.u32 2147483647, %v4793
        %vm5017 = vcmp.eq.f32.partialorder %v5016, 8.507059e+37
        %v5018 = vand.u32 %v4793, 2147483648
        %v5019 = vor.u32 1.1754944e-38, %v5018
        %v5020 = vsel %vm5017, %v5019, %v5015
        %v5021 = vmul.f32 1.0, %v5020
        %v5022 = vrcp.pop %v4794
        %v5023 = vmul.f32 %v4794, %v5022
        %v5024 = vsub.f32 1.0, %v5023
        %v5025 = vmul.f32 %v5022, %v5024
        %v5026 = vadd.f32 %v5022, %v5025
        %vm5027 = vweird.f32 %v4794
        %vm5028 = vweird.f32 %v5022
        %vm5029 = vmor %vm5027, %vm5028
        %v5030 = vsel %vm5029, %v5022, %v5026
        %v5031 = vand.u32 2147483647, %v4794
        %vm5032 = vcmp.eq.f32.partialorder %v5031, 8.507059e+37
        %v5033 = vand.u32 %v4794, 2147483648
        %v5034 = vor.u32 1.1754944e-38, %v5033
        %v5035 = vsel %vm5032, %v5034, %v5030
        %v5036 = vmul.f32 1.0, %v5035
        %v5037 = vrcp.pop %v4795
        %v5038 = vmul.f32 %v4795, %v5037
        %v5039 = vsub.f32 1.0, %v5038
        %v5040 = vmul.f32 %v5037, %v5039
        %v5041 = vadd.f32 %v5037, %v5040
        %vm5042 = vweird.f32 %v4795
        %vm5043 = vweird.f32 %v5037
        %vm5044 = vmor %vm5042, %vm5043
        %v5045 = vsel %vm5044, %v5037, %v5041
        %v5046 = vand.u32 2147483647, %v4795
        %vm5047 = vcmp.eq.f32.partialorder %v5046, 8.507059e+37
        %v5048 = vand.u32 %v4795, 2147483648
        %v5049 = vor.u32 1.1754944e-38, %v5048
        %v5050 = vsel %vm5047, %v5049, %v5045
        %v5051 = vmul.f32 1.0, %v5050
        %v5052 = vrcp.pop %v4796
        %v5053 = vmul.f32 %v4796, %v5052
        %v5054 = vsub.f32 1.0, %v5053
        %v5055 = vmul.f32 %v5052, %v5054
        %v5056 = vadd.f32 %v5052, %v5055
        %vm5057 = vweird.f32 %v4796
        %vm5058 = vweird.f32 %v5052
        %vm5059 = vmor %vm5057, %vm5058
        %v5060 = vsel %vm5059, %v5052, %v5056
        %v5061 = vand.u32 2147483647, %v4796
        %vm5062 = vcmp.eq.f32.partialorder %v5061, 8.507059e+37
        %v5063 = vand.u32 %v4796, 2147483648
        %v5064 = vor.u32 1.1754944e-38, %v5063
        %v5065 = vsel %vm5062, %v5064, %v5060
        %v5066 = vmul.f32 1.0, %v5065
        %v5067 = vrcp.pop %v4797
        %v5068 = vmul.f32 %v4797, %v5067
        %v5069 = vsub.f32 1.0, %v5068
        %v5070 = vmul.f32 %v5067, %v5069
        %v5071 = vadd.f32 %v5067, %v5070
        %vm5072 = vweird.f32 %v4797
        %vm5073 = vweird.f32 %v5067
        %vm5074 = vmor %vm5072, %vm5073
        %v5075 = vsel %vm5074, %v5067, %v5071
        %v5076 = vand.u32 2147483647, %v4797
        %vm5077 = vcmp.eq.f32.partialorder %v5076, 8.507059e+37
        %v5078 = vand.u32 %v4797, 2147483648
        %v5079 = vor.u32 1.1754944e-38, %v5078
        %v5080 = vsel %vm5077, %v5079, %v5075
        %v5081 = vmul.f32 1.0, %v5080
        %v5082 = vrcp.pop %v4798
        %v5083 = vmul.f32 %v4798, %v5082
        %v5084 = vsub.f32 1.0, %v5083
        %v5085 = vmul.f32 %v5082, %v5084
        %v5086 = vadd.f32 %v5082, %v5085
        %vm5087 = vweird.f32 %v4798
        %vm5088 = vweird.f32 %v5082
        %vm5089 = vmor %vm5087, %vm5088
        %v5090 = vsel %vm5089, %v5082, %v5086
        %v5091 = vand.u32 2147483647, %v4798
        %vm5092 = vcmp.eq.f32.partialorder %v5091, 8.507059e+37
        %v5093 = vand.u32 %v4798, 2147483648
        %v5094 = vor.u32 1.1754944e-38, %v5093
        %v5095 = vsel %vm5092, %v5094, %v5090
        %v5096 = vmul.f32 1.0, %v5095
        %v5097 = vrcp.pop %v4799
        %v5098 = vmul.f32 %v4799, %v5097
        %v5099 = vsub.f32 1.0, %v5098
        %v5100 = vmul.f32 %v5097, %v5099
        %v5101 = vadd.f32 %v5097, %v5100
        %vm5102 = vweird.f32 %v4799
        %vm5103 = vweird.f32 %v5097
        %vm5104 = vmor %vm5102, %vm5103
        %v5105 = vsel %vm5104, %v5097, %v5101
        %v5106 = vand.u32 2147483647, %v4799
        %vm5107 = vcmp.eq.f32.partialorder %v5106, 8.507059e+37
        %v5108 = vand.u32 %v4799, 2147483648
        %v5109 = vor.u32 1.1754944e-38, %v5108
        %v5110 = vsel %vm5107, %v5109, %v5105
        %v5111 = vmul.f32 1.0, %v5110
        %v5112 = vrcp.pop %v4800
        %v5113 = vmul.f32 %v4800, %v5112
        %v5114 = vsub.f32 1.0, %v5113
        %v5115 = vmul.f32 %v5112, %v5114
        %v5116 = vadd.f32 %v5112, %v5115
        %vm5117 = vweird.f32 %v4800
        %vm5118 = vweird.f32 %v5112
        %vm5119 = vmor %vm5117, %vm5118
        %v5120 = vsel %vm5119, %v5112, %v5116
        %v5121 = vand.u32 2147483647, %v4800
        %vm5122 = vcmp.eq.f32.partialorder %v5121, 8.507059e+37
        %v5123 = vand.u32 %v4800, 2147483648
        %v5124 = vor.u32 1.1754944e-38, %v5123
        %v5125 = vsel %vm5122, %v5124, %v5120
        %v5126 = vmul.f32 1.0, %v5125
        %v5127 = vrcp.pop %v4801
        %v5128 = vmul.f32 %v4801, %v5127
        %v5129 = vsub.f32 1.0, %v5128
        %v5130 = vmul.f32 %v5127, %v5129
        %v5131 = vadd.f32 %v5127, %v5130
        %vm5132 = vweird.f32 %v4801
        %vm5133 = vweird.f32 %v5127
        %vm5134 = vmor %vm5132, %vm5133
        %v5135 = vsel %vm5134, %v5127, %v5131
        %v5136 = vand.u32 2147483647, %v4801
        %vm5137 = vcmp.eq.f32.partialorder %v5136, 8.507059e+37
        %v5138 = vand.u32 %v4801, 2147483648
        %v5139 = vor.u32 1.1754944e-38, %v5138
        %v5140 = vsel %vm5137, %v5139, %v5135
        %v5141 = vmul.f32 1.0, %v5140
        %v5142 = vrcp.pop %v4802
        %v5143 = vmul.f32 %v4802, %v5142
        %v5144 = vsub.f32 1.0, %v5143
        %v5145 = vmul.f32 %v5142, %v5144
        %v5146 = vadd.f32 %v5142, %v5145
        %vm5147 = vweird.f32 %v4802
        %vm5148 = vweird.f32 %v5142
        %vm5149 = vmor %vm5147, %vm5148
        %v5150 = vsel %vm5149, %v5142, %v5146
        %v5151 = vand.u32 2147483647, %v4802
        %vm5152 = vcmp.eq.f32.partialorder %v5151, 8.507059e+37
        %v5153 = vand.u32 %v4802, 2147483648
        %v5154 = vor.u32 1.1754944e-38, %v5153
        %v5155 = vsel %vm5152, %v5154, %v5150
        %v5156 = vmul.f32 1.0, %v5155
        %v5157 = vrcp.pop %v4803
        %v5158 = vmul.f32 %v4803, %v5157
        %v5159 = vsub.f32 1.0, %v5158
        %v5160 = vmul.f32 %v5157, %v5159
        %v5161 = vadd.f32 %v5157, %v5160
        %vm5162 = vweird.f32 %v4803
        %vm5163 = vweird.f32 %v5157
        %vm5164 = vmor %vm5162, %vm5163
        %v5165 = vsel %vm5164, %v5157, %v5161
        %v5166 = vand.u32 2147483647, %v4803
        %vm5167 = vcmp.eq.f32.partialorder %v5166, 8.507059e+37
        %v5168 = vand.u32 %v4803, 2147483648
        %v5169 = vor.u32 1.1754944e-38, %v5168
        %v5170 = vsel %vm5167, %v5169, %v5165
        %v5171 = vmul.f32 1.0, %v5170
        %v5172 = vrcp.pop %v4804
        %v5173 = vmul.f32 %v4804, %v5172
        %v5174 = vsub.f32 1.0, %v5173
        %v5175 = vmul.f32 %v5172, %v5174
        %v5176 = vadd.f32 %v5172, %v5175
        %vm5177 = vweird.f32 %v4804
        %vm5178 = vweird.f32 %v5172
        %vm5179 = vmor %vm5177, %vm5178
        %v5180 = vsel %vm5179, %v5172, %v5176
        %v5181 = vand.u32 2147483647, %v4804
        %vm5182 = vcmp.eq.f32.partialorder %v5181, 8.507059e+37
        %v5183 = vand.u32 %v4804, 2147483648
        %v5184 = vor.u32 1.1754944e-38, %v5183
        %v5185 = vsel %vm5182, %v5184, %v5180
        %v5186 = vmul.f32 1.0, %v5185
        %v5187 = vrcp.pop %v4805
        %v5188 = vmul.f32 %v4805, %v5187
        %v5189 = vsub.f32 1.0, %v5188
        %v5190 = vmul.f32 %v5187, %v5189
        %v5191 = vadd.f32 %v5187, %v5190
        %vm5192 = vweird.f32 %v4805
        %vm5193 = vweird.f32 %v5187
        %vm5194 = vmor %vm5192, %vm5193
        %v5195 = vsel %vm5194, %v5187, %v5191
        %v5196 = vand.u32 2147483647, %v4805
        %vm5197 = vcmp.eq.f32.partialorder %v5196, 8.507059e+37
        %v5198 = vand.u32 %v4805, 2147483648
        %v5199 = vor.u32 1.1754944e-38, %v5198
        %v5200 = vsel %vm5197, %v5199, %v5195
        %v5201 = vmul.f32 1.0, %v5200
        %v5202 = vrcp.pop %v4806
        %v5203 = vmul.f32 %v4806, %v5202
        %v5204 = vsub.f32 1.0, %v5203
        %v5205 = vmul.f32 %v5202, %v5204
        %v5206 = vadd.f32 %v5202, %v5205
        %vm5207 = vweird.f32 %v4806
        %vm5208 = vweird.f32 %v5202
        %vm5209 = vmor %vm5207, %vm5208
        %v5210 = vsel %vm5209, %v5202, %v5206
        %v5211 = vand.u32 2147483647, %v4806
        %vm5212 = vcmp.eq.f32.partialorder %v5211, 8.507059e+37
        %v5213 = vand.u32 %v4806, 2147483648
        %v5214 = vor.u32 1.1754944e-38, %v5213
        %v5215 = vsel %vm5212, %v5214, %v5210
        %v5216 = vmul.f32 1.0, %v5215
        %v5217 = vrcp.pop %v4807
        %v5218 = vmul.f32 %v4807, %v5217
        %v5219 = vsub.f32 1.0, %v5218
        %v5220 = vmul.f32 %v5217, %v5219
        %v5221 = vadd.f32 %v5217, %v5220
        %vm5222 = vweird.f32 %v4807
        %vm5223 = vweird.f32 %v5217
        %vm5224 = vmor %vm5222, %vm5223
        %v5225 = vsel %vm5224, %v5217, %v5221
        %v5226 = vand.u32 2147483647, %v4807
        %vm5227 = vcmp.eq.f32.partialorder %v5226, 8.507059e+37
        %v5228 = vand.u32 %v4807, 2147483648
        %v5229 = vor.u32 1.1754944e-38, %v5228
        %v5230 = vsel %vm5227, %v5229, %v5225
        %v5231 = vmul.f32 1.0, %v5230
        %v5232 = vrcp.pop %v4808
        %v5233 = vmul.f32 %v4808, %v5232
        %v5234 = vsub.f32 1.0, %v5233
        %v5235 = vmul.f32 %v5232, %v5234
        %v5236 = vadd.f32 %v5232, %v5235
        %vm5237 = vweird.f32 %v4808
        %vm5238 = vweird.f32 %v5232
        %vm5239 = vmor %vm5237, %vm5238
        %v5240 = vsel %vm5239, %v5232, %v5236
        %v5241 = vand.u32 2147483647, %v4808
        %vm5242 = vcmp.eq.f32.partialorder %v5241, 8.507059e+37
        %v5243 = vand.u32 %v4808, 2147483648
        %v5244 = vor.u32 1.1754944e-38, %v5243
        %v5245 = vsel %vm5242, %v5244, %v5240
        %v5246 = vmul.f32 1.0, %v5245
        %v5247 = vrcp.pop %v4809
        %v5248 = vmul.f32 %v4809, %v5247
        %v5249 = vsub.f32 1.0, %v5248
        %v5250 = vmul.f32 %v5247, %v5249
        %v5251 = vadd.f32 %v5247, %v5250
        %vm5252 = vweird.f32 %v4809
        %vm5253 = vweird.f32 %v5247
        %vm5254 = vmor %vm5252, %vm5253
        %v5255 = vsel %vm5254, %v5247, %v5251
        %v5256 = vand.u32 2147483647, %v4809
        %vm5257 = vcmp.eq.f32.partialorder %v5256, 8.507059e+37
        %v5258 = vand.u32 %v4809, 2147483648
        %v5259 = vor.u32 1.1754944e-38, %v5258
        %v5260 = vsel %vm5257, %v5259, %v5255
        %v5261 = vmul.f32 1.0, %v5260
        %v5262 = vrcp.pop %v4810
        %v5263 = vmul.f32 %v4810, %v5262
        %v5264 = vsub.f32 1.0, %v5263
        %v5265 = vmul.f32 %v5262, %v5264
        %v5266 = vadd.f32 %v5262, %v5265
        %vm5267 = vweird.f32 %v4810
        %vm5268 = vweird.f32 %v5262
        %vm5269 = vmor %vm5267, %vm5268
        %v5270 = vsel %vm5269, %v5262, %v5266
        %v5271 = vand.u32 2147483647, %v4810
        %vm5272 = vcmp.eq.f32.partialorder %v5271, 8.507059e+37
        %v5273 = vand.u32 %v4810, 2147483648
        %v5274 = vor.u32 1.1754944e-38, %v5273
        %v5275 = vsel %vm5272, %v5274, %v5270
        %v5276 = vmul.f32 1.0, %v5275
        %v5277 = vrcp.pop %v4811
        %v5278 = vmul.f32 %v4811, %v5277
        %v5279 = vsub.f32 1.0, %v5278
        %v5280 = vmul.f32 %v5277, %v5279
        %v5281 = vadd.f32 %v5277, %v5280
        %vm5282 = vweird.f32 %v4811
        %vm5283 = vweird.f32 %v5277
        %vm5284 = vmor %vm5282, %vm5283
        %v5285 = vsel %vm5284, %v5277, %v5281
        %v5286 = vand.u32 2147483647, %v4811
        %vm5287 = vcmp.eq.f32.partialorder %v5286, 8.507059e+37
        %v5288 = vand.u32 %v4811, 2147483648
        %v5289 = vor.u32 1.1754944e-38, %v5288
        %v5290 = vsel %vm5287, %v5289, %v5285
        %v5291 = vmul.f32 1.0, %v5290
        %v5292 = vmul.f32 %v4826, 1.0614054
        %v5293 = vmul.f32 %v4841, 1.0614054
        %v5294 = vmul.f32 %v4856, 1.0614054
        %v5295 = vmul.f32 %v4871, 1.0614054
        %v5296 = vmul.f32 %v4886, 1.0614054
        %v5297 = vmul.f32 %v4901, 1.0614054
        %v5298 = vmul.f32 %v4916, 1.0614054
        %v5299 = vmul.f32 %v4931, 1.0614054
        %v5300 = vmul.f32 %v4946, 1.0614054
        %v5301 = vmul.f32 %v4961, 1.0614054
        %v5302 = vmul.f32 %v4976, 1.0614054
        %v5303 = vmul.f32 %v4991, 1.0614054
        %v5304 = vmul.f32 %v5006, 1.0614054
        %v5305 = vmul.f32 %v5021, 1.0614054
        %v5306 = vmul.f32 %v5036, 1.0614054
        %v5307 = vmul.f32 %v5051, 1.0614054
        %v5308 = vmul.f32 %v5066, 1.0614054
        %v5309 = vmul.f32 %v5081, 1.0614054
        %v5310 = vmul.f32 %v5096, 1.0614054
        %v5311 = vmul.f32 %v5111, 1.0614054
        %v5312 = vmul.f32 %v5126, 1.0614054
        %v5313 = vmul.f32 %v5141, 1.0614054
        %v5314 = vmul.f32 %v5156, 1.0614054
        %v5315 = vmul.f32 %v5171, 1.0614054
        %v5316 = vmul.f32 %v5186, 1.0614054
        %v5317 = vmul.f32 %v5201, 1.0614054
        %v5318 = vmul.f32 %v5216, 1.0614054
        %v5319 = vmul.f32 %v5231, 1.0614054
        %v5320 = vmul.f32 %v5246, 1.0614054
        %v5321 = vmul.f32 %v5261, 1.0614054
        %v5322 = vmul.f32 %v5276, 1.0614054
        %v5323 = vmul.f32 %v5291, 1.0614054
        %v5324 = vsub.f32 %v5292, 1.4531521
        %v5325 = vsub.f32 %v5293, 1.4531521
        %v5326 = vsub.f32 %v5294, 1.4531521
        %v5327 = vsub.f32 %v5295, 1.4531521
        %v5328 = vsub.f32 %v5296, 1.4531521
        %v5329 = vsub.f32 %v5297, 1.4531521
        %v5330 = vsub.f32 %v5298, 1.4531521
        %v5331 = vsub.f32 %v5299, 1.4531521
        %v5332 = vsub.f32 %v5300, 1.4531521
        %v5333 = vsub.f32 %v5301, 1.4531521
        %v5334 = vsub.f32 %v5302, 1.4531521
        %v5335 = vsub.f32 %v5303, 1.4531521
        %v5336 = vsub.f32 %v5304, 1.4531521
        %v5337 = vsub.f32 %v5305, 1.4531521
        %v5338 = vsub.f32 %v5306, 1.4531521
        %v5339 = vsub.f32 %v5307, 1.4531521
        %v5340 = vsub.f32 %v5308, 1.4531521
        %v5341 = vsub.f32 %v5309, 1.4531521
        %v5342 = vsub.f32 %v5310, 1.4531521
        %v5343 = vsub.f32 %v5311, 1.4531521
        %v5344 = vsub.f32 %v5312, 1.4531521
        %v5345 = vsub.f32 %v5313, 1.4531521
        %v5346 = vsub.f32 %v5314, 1.4531521
        %v5347 = vsub.f32 %v5315, 1.4531521
        %v5348 = vsub.f32 %v5316, 1.4531521
        %v5349 = vsub.f32 %v5317, 1.4531521
        %v5350 = vsub.f32 %v5318, 1.4531521
        %v5351 = vsub.f32 %v5319, 1.4531521
        %v5352 = vsub.f32 %v5320, 1.4531521
        %v5353 = vsub.f32 %v5321, 1.4531521
        %v5354 = vsub.f32 %v5322, 1.4531521
        %v5355 = vsub.f32 %v5323, 1.4531521
        %v5356 = vmul.f32 %v5324, %v4826
        %v5357 = vmul.f32 %v5325, %v4841
        %v5358 = vmul.f32 %v5326, %v4856
        %v5359 = vmul.f32 %v5327, %v4871
        %v5360 = vmul.f32 %v5328, %v4886
        %v5361 = vmul.f32 %v5329, %v4901
        %v5362 = vmul.f32 %v5330, %v4916
        %v5363 = vmul.f32 %v5331, %v4931
        %v5364 = vmul.f32 %v5332, %v4946
        %v5365 = vmul.f32 %v5333, %v4961
        %v5366 = vmul.f32 %v5334, %v4976
        %v5367 = vmul.f32 %v5335, %v4991
        %v5368 = vmul.f32 %v5336, %v5006
        %v5369 = vmul.f32 %v5337, %v5021
        %v5370 = vmul.f32 %v5338, %v5036
        %v5371 = vmul.f32 %v5339, %v5051
        %v5372 = vmul.f32 %v5340, %v5066
        %v5373 = vmul.f32 %v5341, %v5081
        %v5374 = vmul.f32 %v5342, %v5096
        %v5375 = vmul.f32 %v5343, %v5111
        %v5376 = vmul.f32 %v5344, %v5126
        %v5377 = vmul.f32 %v5345, %v5141
        %v5378 = vmul.f32 %v5346, %v5156
        %v5379 = vmul.f32 %v5347, %v5171
        %v5380 = vmul.f32 %v5348, %v5186
        %v5381 = vmul.f32 %v5349, %v5201
        %v5382 = vmul.f32 %v5350, %v5216
        %v5383 = vmul.f32 %v5351, %v5231
        %v5384 = vmul.f32 %v5352, %v5246
        %v5385 = vmul.f32 %v5353, %v5261
        %v5386 = vmul.f32 %v5354, %v5276
        %v5387 = vmul.f32 %v5355, %v5291
        %v5388 = vadd.f32 %v5356, 1.4214138
        %v5389 = vadd.f32 %v5357, 1.4214138
        %v5390 = vadd.f32 %v5358, 1.4214138
        %v5391 = vadd.f32 %v5359, 1.4214138
        %v5392 = vadd.f32 %v5360, 1.4214138
        %v5393 = vadd.f32 %v5361, 1.4214138
        %v5394 = vadd.f32 %v5362, 1.4214138
        %v5395 = vadd.f32 %v5363, 1.4214138
        %v5396 = vadd.f32 %v5364, 1.4214138
        %v5397 = vadd.f32 %v5365, 1.4214138
        %v5398 = vadd.f32 %v5366, 1.4214138
        %v5399 = vadd.f32 %v5367, 1.4214138
        %v5400 = vadd.f32 %v5368, 1.4214138
        %v5401 = vadd.f32 %v5369, 1.4214138
        %v5402 = vadd.f32 %v5370, 1.4214138
        %v5403 = vadd.f32 %v5371, 1.4214138
        %v5404 = vadd.f32 %v5372, 1.4214138
        %v5405 = vadd.f32 %v5373, 1.4214138
        %v5406 = vadd.f32 %v5374, 1.4214138
        %v5407 = vadd.f32 %v5375, 1.4214138
        %v5408 = vadd.f32 %v5376, 1.4214138
        %v5409 = vadd.f32 %v5377, 1.4214138
        %v5410 = vadd.f32 %v5378, 1.4214138
        %v5411 = vadd.f32 %v5379, 1.4214138
        %v5412 = vadd.f32 %v5380, 1.4214138
        %v5413 = vadd.f32 %v5381, 1.4214138
        %v5414 = vadd.f32 %v5382, 1.4214138
        %v5415 = vadd.f32 %v5383, 1.4214138
        %v5416 = vadd.f32 %v5384, 1.4214138
        %v5417 = vadd.f32 %v5385, 1.4214138
        %v5418 = vadd.f32 %v5386, 1.4214138
        %v5419 = vadd.f32 %v5387, 1.4214138
        %v5420 = vmul.f32 %v5388, %v4826
        %v5421 = vmul.f32 %v5389, %v4841
        %v5422 = vmul.f32 %v5390, %v4856
        %v5423 = vmul.f32 %v5391, %v4871
        %v5424 = vmul.f32 %v5392, %v4886
        %v5425 = vmul.f32 %v5393, %v4901
        %v5426 = vmul.f32 %v5394, %v4916
        %v5427 = vmul.f32 %v5395, %v4931
        %v5428 = vmul.f32 %v5396, %v4946
        %v5429 = vmul.f32 %v5397, %v4961
        %v5430 = vmul.f32 %v5398, %v4976
        %v5431 = vmul.f32 %v5399, %v4991
        %v5432 = vmul.f32 %v5400, %v5006
        %v5433 = vmul.f32 %v5401, %v5021
        %v5434 = vmul.f32 %v5402, %v5036
        %v5435 = vmul.f32 %v5403, %v5051
        %v5436 = vmul.f32 %v5404, %v5066
        %v5437 = vmul.f32 %v5405, %v5081
        %v5438 = vmul.f32 %v5406, %v5096
        %v5439 = vmul.f32 %v5407, %v5111
        %v5440 = vmul.f32 %v5408, %v5126
        %v5441 = vmul.f32 %v5409, %v5141
        %v5442 = vmul.f32 %v5410, %v5156
        %v5443 = vmul.f32 %v5411, %v5171
        %v5444 = vmul.f32 %v5412, %v5186
        %v5445 = vmul.f32 %v5413, %v5201
        %v5446 = vmul.f32 %v5414, %v5216
        %v5447 = vmul.f32 %v5415, %v5231
        %v5448 = vmul.f32 %v5416, %v5246
        %v5449 = vmul.f32 %v5417, %v5261
        %v5450 = vmul.f32 %v5418, %v5276
        %v5451 = vmul.f32 %v5419, %v5291
        %v5452 = vsub.f32 %v5420, 0.28449672
        %v5453 = vsub.f32 %v5421, 0.28449672
        %v5454 = vsub.f32 %v5422, 0.28449672
        %v5455 = vsub.f32 %v5423, 0.28449672
        %v5456 = vsub.f32 %v5424, 0.28449672
        %v5457 = vsub.f32 %v5425, 0.28449672
        %v5458 = vsub.f32 %v5426, 0.28449672
        %v5459 = vsub.f32 %v5427, 0.28449672
        %v5460 = vsub.f32 %v5428, 0.28449672
        %v5461 = vsub.f32 %v5429, 0.28449672
        %v5462 = vsub.f32 %v5430, 0.28449672
        %v5463 = vsub.f32 %v5431, 0.28449672
        %v5464 = vsub.f32 %v5432, 0.28449672
        %v5465 = vsub.f32 %v5433, 0.28449672
        %v5466 = vsub.f32 %v5434, 0.28449672
        %v5467 = vsub.f32 %v5435, 0.28449672
        %v5468 = vsub.f32 %v5436, 0.28449672
        %v5469 = vsub.f32 %v5437, 0.28449672
        %v5470 = vsub.f32 %v5438, 0.28449672
        %v5471 = vsub.f32 %v5439, 0.28449672
        %v5472 = vsub.f32 %v5440, 0.28449672
        %v5473 = vsub.f32 %v5441, 0.28449672
        %v5474 = vsub.f32 %v5442, 0.28449672
        %v5475 = vsub.f32 %v5443, 0.28449672
        %v5476 = vsub.f32 %v5444, 0.28449672
        %v5477 = vsub.f32 %v5445, 0.28449672
        %v5478 = vsub.f32 %v5446, 0.28449672
        %v5479 = vsub.f32 %v5447, 0.28449672
        %v5480 = vsub.f32 %v5448, 0.28449672
        %v5481 = vsub.f32 %v5449, 0.28449672
        %v5482 = vsub.f32 %v5450, 0.28449672
        %v5483 = vsub.f32 %v5451, 0.28449672
        %v5484 = vmul.f32 %v5452, %v4826
        %v5485 = vmul.f32 %v5453, %v4841
        %v5486 = vmul.f32 %v5454, %v4856
        %v5487 = vmul.f32 %v5455, %v4871
        %v5488 = vmul.f32 %v5456, %v4886
        %v5489 = vmul.f32 %v5457, %v4901
        %v5490 = vmul.f32 %v5458, %v4916
        %v5491 = vmul.f32 %v5459, %v4931
        %v5492 = vmul.f32 %v5460, %v4946
        %v5493 = vmul.f32 %v5461, %v4961
        %v5494 = vmul.f32 %v5462, %v4976
        %v5495 = vmul.f32 %v5463, %v4991
        %v5496 = vmul.f32 %v5464, %v5006
        %v5497 = vmul.f32 %v5465, %v5021
        %v5498 = vmul.f32 %v5466, %v5036
        %v5499 = vmul.f32 %v5467, %v5051
        %v5500 = vmul.f32 %v5468, %v5066
        %v5501 = vmul.f32 %v5469, %v5081
        %v5502 = vmul.f32 %v5470, %v5096
        %v5503 = vmul.f32 %v5471, %v5111
        %v5504 = vmul.f32 %v5472, %v5126
        %v5505 = vmul.f32 %v5473, %v5141
        %v5506 = vmul.f32 %v5474, %v5156
        %v5507 = vmul.f32 %v5475, %v5171
        %v5508 = vmul.f32 %v5476, %v5186
        %v5509 = vmul.f32 %v5477, %v5201
        %v5510 = vmul.f32 %v5478, %v5216
        %v5511 = vmul.f32 %v5479, %v5231
        %v5512 = vmul.f32 %v5480, %v5246
        %v5513 = vmul.f32 %v5481, %v5261
        %v5514 = vmul.f32 %v5482, %v5276
        %v5515 = vmul.f32 %v5483, %v5291
        %v5516 = vadd.f32 %v5484, 0.2548296
        %v5517 = vadd.f32 %v5485, 0.2548296
        %v5518 = vadd.f32 %v5486, 0.2548296
        %v5519 = vadd.f32 %v5487, 0.2548296
        %v5520 = vadd.f32 %v5488, 0.2548296
        %v5521 = vadd.f32 %v5489, 0.2548296
        %v5522 = vadd.f32 %v5490, 0.2548296
        %v5523 = vadd.f32 %v5491, 0.2548296
        %v5524 = vadd.f32 %v5492, 0.2548296
        %v5525 = vadd.f32 %v5493, 0.2548296
        %v5526 = vadd.f32 %v5494, 0.2548296
        %v5527 = vadd.f32 %v5495, 0.2548296
        %v5528 = vadd.f32 %v5496, 0.2548296
        %v5529 = vadd.f32 %v5497, 0.2548296
        %v5530 = vadd.f32 %v5498, 0.2548296
        %v5531 = vadd.f32 %v5499, 0.2548296
        %v5532 = vadd.f32 %v5500, 0.2548296
        %v5533 = vadd.f32 %v5501, 0.2548296
        %v5534 = vadd.f32 %v5502, 0.2548296
        %v5535 = vadd.f32 %v5503, 0.2548296
        %v5536 = vadd.f32 %v5504, 0.2548296
        %v5537 = vadd.f32 %v5505, 0.2548296
        %v5538 = vadd.f32 %v5506, 0.2548296
        %v5539 = vadd.f32 %v5507, 0.2548296
        %v5540 = vadd.f32 %v5508, 0.2548296
        %v5541 = vadd.f32 %v5509, 0.2548296
        %v5542 = vadd.f32 %v5510, 0.2548296
        %v5543 = vadd.f32 %v5511, 0.2548296
        %v5544 = vadd.f32 %v5512, 0.2548296
        %v5545 = vadd.f32 %v5513, 0.2548296
        %v5546 = vadd.f32 %v5514, 0.2548296
        %v5547 = vadd.f32 %v5515, 0.2548296
        %v5548 = vmul.f32 %v5516, %v4826
        %v5549 = vmul.f32 %v5517, %v4841
        %v5550 = vmul.f32 %v5518, %v4856
        %v5551 = vmul.f32 %v5519, %v4871
        %v5552 = vmul.f32 %v5520, %v4886
        %v5553 = vmul.f32 %v5521, %v4901
        %v5554 = vmul.f32 %v5522, %v4916
        %v5555 = vmul.f32 %v5523, %v4931
        %v5556 = vmul.f32 %v5524, %v4946
        %v5557 = vmul.f32 %v5525, %v4961
        %v5558 = vmul.f32 %v5526, %v4976
        %v5559 = vmul.f32 %v5527, %v4991
        %v5560 = vmul.f32 %v5528, %v5006
        %v5561 = vmul.f32 %v5529, %v5021
        %v5562 = vmul.f32 %v5530, %v5036
        %v5563 = vmul.f32 %v5531, %v5051
        %v5564 = vmul.f32 %v5532, %v5066
        %v5565 = vmul.f32 %v5533, %v5081
        %v5566 = vmul.f32 %v5534, %v5096
        %v5567 = vmul.f32 %v5535, %v5111
        %v5568 = vmul.f32 %v5536, %v5126
        %v5569 = vmul.f32 %v5537, %v5141
        %v5570 = vmul.f32 %v5538, %v5156
        %v5571 = vmul.f32 %v5539, %v5171
        %v5572 = vmul.f32 %v5540, %v5186
        %v5573 = vmul.f32 %v5541, %v5201
        %v5574 = vmul.f32 %v5542, %v5216
        %v5575 = vmul.f32 %v5543, %v5231
        %v5576 = vmul.f32 %v5544, %v5246
        %v5577 = vmul.f32 %v5545, %v5261
        %v5578 = vmul.f32 %v5546, %v5276
        %v5579 = vmul.f32 %v5547, %v5291
        %v5580 = vsub.f32 0.0, %v4716
        %v5581 = vsub.f32 0.0, %v4717
        %v5582 = vsub.f32 0.0, %v4718
        %v5583 = vsub.f32 0.0, %v4719
        %v5584 = vsub.f32 0.0, %v4720
        %v5585 = vsub.f32 0.0, %v4721
        %v5586 = vsub.f32 0.0, %v4722
        %v5587 = vsub.f32 0.0, %v4723
        %v5588 = vsub.f32 0.0, %v4724
        %v5589 = vsub.f32 0.0, %v4725
        %v5590 = vsub.f32 0.0, %v4726
        %v5591 = vsub.f32 0.0, %v4727
        %v5592 = vsub.f32 0.0, %v4728
        %v5593 = vsub.f32 0.0, %v4729
        %v5594 = vsub.f32 0.0, %v4730
        %v5595 = vsub.f32 0.0, %v4731
        %v5596 = vsub.f32 0.0, %v4732
        %v5597 = vsub.f32 0.0, %v4733
        %v5598 = vsub.f32 0.0, %v4734
        %v5599 = vsub.f32 0.0, %v4735
        %v5600 = vsub.f32 0.0, %v4736
        %v5601 = vsub.f32 0.0, %v4737
        %v5602 = vsub.f32 0.0, %v4738
        %v5603 = vsub.f32 0.0, %v4739
        %v5604 = vsub.f32 0.0, %v4740
        %v5605 = vsub.f32 0.0, %v4741
        %v5606 = vsub.f32 0.0, %v4742
        %v5607 = vsub.f32 0.0, %v4743
        %v5608 = vsub.f32 0.0, %v4744
        %v5609 = vsub.f32 0.0, %v4745
        %v5610 = vsub.f32 0.0, %v4746
        %v5611 = vsub.f32 0.0, %v4747
        %v5612 = vmul.f32 %v5580, %v4716
        %v5613 = vmul.f32 %v5581, %v4717
        %v5614 = vmul.f32 %v5582, %v4718
        %v5615 = vmul.f32 %v5583, %v4719
        %v5616 = vmul.f32 %v5584, %v4720
        %v5617 = vmul.f32 %v5585, %v4721
        %v5618 = vmul.f32 %v5586, %v4722
        %v5619 = vmul.f32 %v5587, %v4723
        %v5620 = vmul.f32 %v5588, %v4724
        %v5621 = vmul.f32 %v5589, %v4725
        %v5622 = vmul.f32 %v5590, %v4726
        %v5623 = vmul.f32 %v5591, %v4727
        %v5624 = vmul.f32 %v5592, %v4728
        %v5625 = vmul.f32 %v5593, %v4729
        %v5626 = vmul.f32 %v5594, %v4730
        %v5627 = vmul.f32 %v5595, %v4731
        %v5628 = vmul.f32 %v5596, %v4732
        %v5629 = vmul.f32 %v5597, %v4733
        %v5630 = vmul.f32 %v5598, %v4734
        %v5631 = vmul.f32 %v5599, %v4735
        %v5632 = vmul.f32 %v5600, %v4736
        %v5633 = vmul.f32 %v5601, %v4737
        %v5634 = vmul.f32 %v5602, %v4738
        %v5635 = vmul.f32 %v5603, %v4739
        %v5636 = vmul.f32 %v5604, %v4740
        %v5637 = vmul.f32 %v5605, %v4741
        %v5638 = vmul.f32 %v5606, %v4742
        %v5639 = vmul.f32 %v5607, %v4743
        %v5640 = vmul.f32 %v5608, %v4744
        %v5641 = vmul.f32 %v5609, %v4745
        %v5642 = vmul.f32 %v5610, %v4746
        %v5643 = vmul.f32 %v5611, %v4747
        %v5644 = vmul.f32 %v5612, 1.442695
        %v5645 = vpow.pop %v5644
        %v5646 = vmul.f32 %v5613, 1.442695
        %v5647 = vpow.pop %v5646
        %v5648 = vmul.f32 %v5614, 1.442695
        %v5649 = vpow.pop %v5648
        %v5650 = vmul.f32 %v5615, 1.442695
        %v5651 = vpow.pop %v5650
        %v5652 = vmul.f32 %v5616, 1.442695
        %v5653 = vpow.pop %v5652
        %v5654 = vmul.f32 %v5617, 1.442695
        %v5655 = vpow.pop %v5654
        %v5656 = vmul.f32 %v5618, 1.442695
        %v5657 = vpow.pop %v5656
        %v5658 = vmul.f32 %v5619, 1.442695
        %v5659 = vpow.pop %v5658
        %v5660 = vmul.f32 %v5620, 1.442695
        %v5661 = vpow.pop %v5660
        %v5662 = vmul.f32 %v5621, 1.442695
        %v5663 = vpow.pop %v5662
        %v5664 = vmul.f32 %v5622, 1.442695
        %v5665 = vpow.pop %v5664
        %v5666 = vmul.f32 %v5623, 1.442695
        %v5667 = vpow.pop %v5666
        %v5668 = vmul.f32 %v5624, 1.442695
        %v5669 = vpow.pop %v5668
        %v5670 = vmul.f32 %v5625, 1.442695
        %v5671 = vpow.pop %v5670
        %v5672 = vmul.f32 %v5626, 1.442695
        %v5673 = vpow.pop %v5672
        %v5674 = vmul.f32 %v5627, 1.442695
        %v5675 = vpow.pop %v5674
        %v5676 = vmul.f32 %v5628, 1.442695
        %v5677 = vpow.pop %v5676
        %v5678 = vmul.f32 %v5629, 1.442695
        %v5679 = vpow.pop %v5678
        %v5680 = vmul.f32 %v5630, 1.442695
        %v5681 = vpow.pop %v5680
        %v5682 = vmul.f32 %v5631, 1.442695
        %v5683 = vpow.pop %v5682
        %v5684 = vmul.f32 %v5632, 1.442695
        %v5685 = vpow.pop %v5684
        %v5686 = vmul.f32 %v5633, 1.442695
        %v5687 = vpow.pop %v5686
        %v5688 = vmul.f32 %v5634, 1.442695
        %v5689 = vpow.pop %v5688
        %v5690 = vmul.f32 %v5635, 1.442695
        %v5691 = vpow.pop %v5690
        %v5692 = vmul.f32 %v5636, 1.442695
        %v5693 = vpow.pop %v5692
        %v5694 = vmul.f32 %v5637, 1.442695
        %v5695 = vpow.pop %v5694
        %v5696 = vmul.f32 %v5638, 1.442695
        %v5697 = vpow.pop %v5696
        %v5698 = vmul.f32 %v5639, 1.442695
        %v5699 = vpow.pop %v5698
        %v5700 = vmul.f32 %v5640, 1.442695
        %v5701 = vpow.pop %v5700
        %v5702 = vmul.f32 %v5641, 1.442695
        %v5703 = vpow.pop %v5702
        %v5704 = vmul.f32 %v5642, 1.442695
        %v5705 = vpow.pop %v5704
        %v5706 = vmul.f32 %v5643, 1.442695
        %v5707 = vpow.pop %v5706
        %v5708 = vmul.f32 %v5548, %v5645
        %v5709 = vmul.f32 %v5549, %v5647
        %v5710 = vmul.f32 %v5550, %v5649
        %v5711 = vmul.f32 %v5551, %v5651
        %v5712 = vmul.f32 %v5552, %v5653
        %v5713 = vmul.f32 %v5553, %v5655
        %v5714 = vmul.f32 %v5554, %v5657
        %v5715 = vmul.f32 %v5555, %v5659
        %v5716 = vmul.f32 %v5556, %v5661
        %v5717 = vmul.f32 %v5557, %v5663
        %v5718 = vmul.f32 %v5558, %v5665
        %v5719 = vmul.f32 %v5559, %v5667
        %v5720 = vmul.f32 %v5560, %v5669
        %v5721 = vmul.f32 %v5561, %v5671
        %v5722 = vmul.f32 %v5562, %v5673
        %v5723 = vmul.f32 %v5563, %v5675
        %v5724 = vmul.f32 %v5564, %v5677
        %v5725 = vmul.f32 %v5565, %v5679
        %v5726 = vmul.f32 %v5566, %v5681
        %v5727 = vmul.f32 %v5567, %v5683
        %v5728 = vmul.f32 %v5568, %v5685
        %v5729 = vmul.f32 %v5569, %v5687
        %v5730 = vmul.f32 %v5570, %v5689
        %v5731 = vmul.f32 %v5571, %v5691
        %v5732 = vmul.f32 %v5572, %v5693
        %v5733 = vmul.f32 %v5573, %v5695
        %v5734 = vmul.f32 %v5574, %v5697
        %v5735 = vmul.f32 %v5575, %v5699
        %v5736 = vmul.f32 %v5576, %v5701
        %v5737 = vmul.f32 %v5577, %v5703
        %v5738 = vmul.f32 %v5578, %v5705
        %v5739 = vmul.f32 %v5579, %v5707
        %v5740 = vsub.f32 1.0, %v5708
        %v5741 = vsub.f32 1.0, %v5709
        %v5742 = vsub.f32 1.0, %v5710
        %v5743 = vsub.f32 1.0, %v5711
        %v5744 = vsub.f32 1.0, %v5712
        %v5745 = vsub.f32 1.0, %v5713
        %v5746 = vsub.f32 1.0, %v5714
        %v5747 = vsub.f32 1.0, %v5715
        %v5748 = vsub.f32 1.0, %v5716
        %v5749 = vsub.f32 1.0, %v5717
        %v5750 = vsub.f32 1.0, %v5718
        %v5751 = vsub.f32 1.0, %v5719
        %v5752 = vsub.f32 1.0, %v5720
        %v5753 = vsub.f32 1.0, %v5721
        %v5754 = vsub.f32 1.0, %v5722
        %v5755 = vsub.f32 1.0, %v5723
        %v5756 = vsub.f32 1.0, %v5724
        %v5757 = vsub.f32 1.0, %v5725
        %v5758 = vsub.f32 1.0, %v5726
        %v5759 = vsub.f32 1.0, %v5727
        %v5760 = vsub.f32 1.0, %v5728
        %v5761 = vsub.f32 1.0, %v5729
        %v5762 = vsub.f32 1.0, %v5730
        %v5763 = vsub.f32 1.0, %v5731
        %v5764 = vsub.f32 1.0, %v5732
        %v5765 = vsub.f32 1.0, %v5733
        %v5766 = vsub.f32 1.0, %v5734
        %v5767 = vsub.f32 1.0, %v5735
        %v5768 = vsub.f32 1.0, %v5736
        %v5769 = vsub.f32 1.0, %v5737
        %v5770 = vsub.f32 1.0, %v5738
        %v5771 = vsub.f32 1.0, %v5739
        %v5772 = vmul.f32 %v4572, 0.5
        %v5773 = vmul.f32 %v4637, 0.5
        %v5774 = vmul.f32 %v4575, 0.5
        %v5775 = vmul.f32 %v4640, 0.5
        %v5776 = vmul.f32 %v4578, 0.5
        %v5777 = vmul.f32 %v4643, 0.5
        %v5778 = vmul.f32 %v4581, 0.5
        %v5779 = vmul.f32 %v4646, 0.5
        %v5780 = vmul.f32 %v4584, 0.5
        %v5781 = vmul.f32 %v4649, 0.5
        %v5782 = vmul.f32 %v4587, 0.5
        %v5783 = vmul.f32 %v4652, 0.5
        %v5784 = vmul.f32 %v4590, 0.5
        %v5785 = vmul.f32 %v4655, 0.5
        %v5786 = vmul.f32 %v4593, 0.5
        %v5787 = vmul.f32 %v4658, 0.5
        %v5788 = vmul.f32 %v4596, 0.5
        %v5789 = vmul.f32 %v4661, 0.5
        %v5790 = vmul.f32 %v4599, 0.5
        %v5791 = vmul.f32 %v4664, 0.5
        %v5792 = vmul.f32 %v4602, 0.5
        %v5793 = vmul.f32 %v4667, 0.5
        %v5794 = vmul.f32 %v4605, 0.5
        %v5795 = vmul.f32 %v4670, 0.5
        %v5796 = vmul.f32 %v4608, 0.5
        %v5797 = vmul.f32 %v4673, 0.5
        %v5798 = vmul.f32 %v4611, 0.5
        %v5799 = vmul.f32 %v4676, 0.5
        %v5800 = vmul.f32 %v4614, 0.5
        %v5801 = vmul.f32 %v4679, 0.5
        %v5802 = vmul.f32 %v4617, 0.5
        %v5803 = vmul.f32 %v4682, 0.5
        %vm5804 = vcmp.ge.f32.partialorder %v4572, 0.0
        %vm5805 = vcmp.ge.f32.partialorder %v4637, 0.0
        %vm5806 = vcmp.ge.f32.partialorder %v4575, 0.0
        %vm5807 = vcmp.ge.f32.partialorder %v4640, 0.0
        %vm5808 = vcmp.ge.f32.partialorder %v4578, 0.0
        %vm5809 = vcmp.ge.f32.partialorder %v4643, 0.0
        %vm5810 = vcmp.ge.f32.partialorder %v4581, 0.0
        %vm5811 = vcmp.ge.f32.partialorder %v4646, 0.0
        %vm5812 = vcmp.ge.f32.partialorder %v4584, 0.0
        %vm5813 = vcmp.ge.f32.partialorder %v4649, 0.0
        %vm5814 = vcmp.ge.f32.partialorder %v4587, 0.0
        %vm5815 = vcmp.ge.f32.partialorder %v4652, 0.0
        %vm5816 = vcmp.ge.f32.partialorder %v4590, 0.0
        %vm5817 = vcmp.ge.f32.partialorder %v4655, 0.0
        %vm5818 = vcmp.ge.f32.partialorder %v4593, 0.0
        %vm5819 = vcmp.ge.f32.partialorder %v4658, 0.0
        %vm5820 = vcmp.ge.f32.partialorder %v4596, 0.0
        %vm5821 = vcmp.ge.f32.partialorder %v4661, 0.0
        %vm5822 = vcmp.ge.f32.partialorder %v4599, 0.0
        %vm5823 = vcmp.ge.f32.partialorder %v4664, 0.0
        %vm5824 = vcmp.ge.f32.partialorder %v4602, 0.0
        %vm5825 = vcmp.ge.f32.partialorder %v4667, 0.0
        %vm5826 = vcmp.ge.f32.partialorder %v4605, 0.0
        %vm5827 = vcmp.ge.f32.partialorder %v4670, 0.0
        %vm5828 = vcmp.ge.f32.partialorder %v4608, 0.0
        %vm5829 = vcmp.ge.f32.partialorder %v4673, 0.0
        %vm5830 = vcmp.ge.f32.partialorder %v4611, 0.0
        %vm5831 = vcmp.ge.f32.partialorder %v4676, 0.0
        %vm5832 = vcmp.ge.f32.partialorder %v4614, 0.0
        %vm5833 = vcmp.ge.f32.partialorder %v4679, 0.0
        %vm5834 = vcmp.ge.f32.partialorder %v4617, 0.0
        %vm5835 = vcmp.ge.f32.partialorder %v4682, 0.0
        %v5836 = vsub.f32 0.0, %v5740
        %v5837 = vsub.f32 0.0, %v5741
        %v5838 = vsub.f32 0.0, %v5742
        %v5839 = vsub.f32 0.0, %v5743
        %v5840 = vsub.f32 0.0, %v5744
        %v5841 = vsub.f32 0.0, %v5745
        %v5842 = vsub.f32 0.0, %v5746
        %v5843 = vsub.f32 0.0, %v5747
        %v5844 = vsub.f32 0.0, %v5748
        %v5845 = vsub.f32 0.0, %v5749
        %v5846 = vsub.f32 0.0, %v5750
        %v5847 = vsub.f32 0.0, %v5751
        %v5848 = vsub.f32 0.0, %v5752
        %v5849 = vsub.f32 0.0, %v5753
        %v5850 = vsub.f32 0.0, %v5754
        %v5851 = vsub.f32 0.0, %v5755
        %v5852 = vsub.f32 0.0, %v5756
        %v5853 = vsub.f32 0.0, %v5757
        %v5854 = vsub.f32 0.0, %v5758
        %v5855 = vsub.f32 0.0, %v5759
        %v5856 = vsub.f32 0.0, %v5760
        %v5857 = vsub.f32 0.0, %v5761
        %v5858 = vsub.f32 0.0, %v5762
        %v5859 = vsub.f32 0.0, %v5763
        %v5860 = vsub.f32 0.0, %v5764
        %v5861 = vsub.f32 0.0, %v5765
        %v5862 = vsub.f32 0.0, %v5766
        %v5863 = vsub.f32 0.0, %v5767
        %v5864 = vsub.f32 0.0, %v5768
        %v5865 = vsub.f32 0.0, %v5769
        %v5866 = vsub.f32 0.0, %v5770
        %v5867 = vsub.f32 0.0, %v5771
        %v5868 = vsel %vm5804, %v5740, %v5836
        %v5869 = vsel %vm5805, %v5741, %v5837
        %v5870 = vsel %vm5806, %v5742, %v5838
        %v5871 = vsel %vm5807, %v5743, %v5839
        %v5872 = vsel %vm5808, %v5744, %v5840
        %v5873 = vsel %vm5809, %v5745, %v5841
        %v5874 = vsel %vm5810, %v5746, %v5842
        %v5875 = vsel %vm5811, %v5747, %v5843
        %v5876 = vsel %vm5812, %v5748, %v5844
        %v5877 = vsel %vm5813, %v5749, %v5845
        %v5878 = vsel %vm5814, %v5750, %v5846
        %v5879 = vsel %vm5815, %v5751, %v5847
        %v5880 = vsel %vm5816, %v5752, %v5848
        %v5881 = vsel %vm5817, %v5753, %v5849
        %v5882 = vsel %vm5818, %v5754, %v5850
        %v5883 = vsel %vm5819, %v5755, %v5851
        %v5884 = vsel %vm5820, %v5756, %v5852
        %v5885 = vsel %vm5821, %v5757, %v5853
        %v5886 = vsel %vm5822, %v5758, %v5854
        %v5887 = vsel %vm5823, %v5759, %v5855
        %v5888 = vsel %vm5824, %v5760, %v5856
        %v5889 = vsel %vm5825, %v5761, %v5857
        %v5890 = vsel %vm5826, %v5762, %v5858
        %v5891 = vsel %vm5827, %v5763, %v5859
        %v5892 = vsel %vm5828, %v5764, %v5860
        %v5893 = vsel %vm5829, %v5765, %v5861
        %v5894 = vsel %vm5830, %v5766, %v5862
        %v5895 = vsel %vm5831, %v5767, %v5863
        %v5896 = vsel %vm5832, %v5768, %v5864
        %v5897 = vsel %vm5833, %v5769, %v5865
        %v5898 = vsel %vm5834, %v5770, %v5866
        %v5899 = vsel %vm5835, %v5771, %v5867
        %v5900 = vadd.f32 %v5868, 1.0
        %v5901 = vadd.f32 %v5869, 1.0
        %v5902 = vadd.f32 %v5870, 1.0
        %v5903 = vadd.f32 %v5871, 1.0
        %v5904 = vadd.f32 %v5872, 1.0
        %v5905 = vadd.f32 %v5873, 1.0
        %v5906 = vadd.f32 %v5874, 1.0
        %v5907 = vadd.f32 %v5875, 1.0
        %v5908 = vadd.f32 %v5876, 1.0
        %v5909 = vadd.f32 %v5877, 1.0
        %v5910 = vadd.f32 %v5878, 1.0
        %v5911 = vadd.f32 %v5879, 1.0
        %v5912 = vadd.f32 %v5880, 1.0
        %v5913 = vadd.f32 %v5881, 1.0
        %v5914 = vadd.f32 %v5882, 1.0
        %v5915 = vadd.f32 %v5883, 1.0
        %v5916 = vadd.f32 %v5884, 1.0
        %v5917 = vadd.f32 %v5885, 1.0
        %v5918 = vadd.f32 %v5886, 1.0
        %v5919 = vadd.f32 %v5887, 1.0
        %v5920 = vadd.f32 %v5888, 1.0
        %v5921 = vadd.f32 %v5889, 1.0
        %v5922 = vadd.f32 %v5890, 1.0
        %v5923 = vadd.f32 %v5891, 1.0
        %v5924 = vadd.f32 %v5892, 1.0
        %v5925 = vadd.f32 %v5893, 1.0
        %v5926 = vadd.f32 %v5894, 1.0
        %v5927 = vadd.f32 %v5895, 1.0
        %v5928 = vadd.f32 %v5896, 1.0
        %v5929 = vadd.f32 %v5897, 1.0
        %v5930 = vadd.f32 %v5898, 1.0
        %v5931 = vadd.f32 %v5899, 1.0
        %v5932 = vmul.f32 %v5772, %v5900
        %v5933 = vmul.f32 %v5773, %v5901
        %v5934 = vmul.f32 %v5774, %v5902
        %v5935 = vmul.f32 %v5775, %v5903
        %v5936 = vmul.f32 %v5776, %v5904
        %v5937 = vmul.f32 %v5777, %v5905
        %v5938 = vmul.f32 %v5778, %v5906
        %v5939 = vmul.f32 %v5779, %v5907
        %v5940 = vmul.f32 %v5780, %v5908
        %v5941 = vmul.f32 %v5781, %v5909
        %v5942 = vmul.f32 %v5782, %v5910
        %v5943 = vmul.f32 %v5783, %v5911
        %v5944 = vmul.f32 %v5784, %v5912
        %v5945 = vmul.f32 %v5785, %v5913
        %v5946 = vmul.f32 %v5786, %v5914
        %v5947 = vmul.f32 %v5787, %v5915
        %v5948 = vmul.f32 %v5788, %v5916
        %v5949 = vmul.f32 %v5789, %v5917
        %v5950 = vmul.f32 %v5790, %v5918
        %v5951 = vmul.f32 %v5791, %v5919
        %v5952 = vmul.f32 %v5792, %v5920
        %v5953 = vmul.f32 %v5793, %v5921
        %v5954 = vmul.f32 %v5794, %v5922
        %v5955 = vmul.f32 %v5795, %v5923
        %v5956 = vmul.f32 %v5796, %v5924
        %v5957 = vmul.f32 %v5797, %v5925
        %v5958 = vmul.f32 %v5798, %v5926
        %v5959 = vmul.f32 %v5799, %v5927
        %v5960 = vmul.f32 %v5800, %v5928
        %v5961 = vmul.f32 %v5801, %v5929
        %v5962 = vmul.f32 %v5802, %v5930
        %v5963 = vmul.f32 %v5803, %v5931
        %v5964 = vld [vmem:[#allocation9] sm:$0xff]
        %v5965 = vld [vmem:[#allocation9 + $0x8] sm:$0xff]
        %v5966 = vld [vmem:[#allocation9 + $0x10] sm:$0xff]
        %v5967 = vld [vmem:[#allocation9 + $0x18] sm:$0xff]
        %v5968 = vld [vmem:[#allocation9 + $0x20] sm:$0xff]
        %v5969 = vld [vmem:[#allocation9 + $0x28] sm:$0xff]
        %v5970 = vld [vmem:[#allocation9 + $0x30] sm:$0xff]
        %v5971 = vld [vmem:[#allocation9 + $0x38] sm:$0xff]
        %v5972 = vld [vmem:[#allocation9 + $0x40] sm:$0xff]
        %v5973 = vld [vmem:[#allocation9 + $0x48] sm:$0xff]
        %v5974 = vld [vmem:[#allocation9 + $0x50] sm:$0xff]
        %v5975 = vld [vmem:[#allocation9 + $0x58] sm:$0xff]
        %v5976 = vld [vmem:[#allocation9 + $0x60] sm:$0xff]
        %v5977 = vld [vmem:[#allocation9 + $0x68] sm:$0xff]
        %v5978 = vld [vmem:[#allocation9 + $0x70] sm:$0xff]
        %v5979 = vld [vmem:[#allocation9 + $0x78] sm:$0xff]
        %v5980 = vld [vmem:[%s8] sm:$0xff]
        %v5981 = vld [vmem:[%s8 + $0x8] sm:$0xff]
        %v5982 = vld [vmem:[%s8 + $0x10] sm:$0xff]
        %v5983 = vld [vmem:[%s8 + $0x18] sm:$0xff]
        %v5984 = vld [vmem:[%s8 + $0x20] sm:$0xff]
        %v5985 = vld [vmem:[%s8 + $0x28] sm:$0xff]
        %v5986 = vld [vmem:[%s8 + $0x30] sm:$0xff]
        %v5987 = vld [vmem:[%s8 + $0x38] sm:$0xff]
        %v5988 = vld [vmem:[%s8 + $0x40] sm:$0xff]
        %v5989 = vld [vmem:[%s8 + $0x48] sm:$0xff]
        %v5990 = vld [vmem:[%s8 + $0x50] sm:$0xff]
        %v5991 = vld [vmem:[%s8 + $0x58] sm:$0xff]
        %v5992 = vld [vmem:[%s8 + $0x60] sm:$0xff]
        %v5993 = vld [vmem:[%s8 + $0x68] sm:$0xff]
        %v5994 = vld [vmem:[%s8 + $0x70] sm:$0xff]
        %v5995 = vld [vmem:[%s8 + $0x78] sm:$0xff]
        %5997 = vset.pattern.permute.xlu0 0
        %5998 = vperm.xlu0 %5997, %v5980
        %v5999 = vpop.permute.xlu0 %5998
        %6002 = vset.pattern.permute.xlu0 0
        %6003 = vperm.xlu0 %6002, %v5981
        %v6004 = vpop.permute.xlu0 %6003
        %6007 = vset.pattern.permute.xlu0 0
        %6008 = vperm.xlu0 %6007, %v5982
        %v6009 = vpop.permute.xlu0 %6008
        %6012 = vset.pattern.permute.xlu0 0
        %6013 = vperm.xlu0 %6012, %v5983
        %v6014 = vpop.permute.xlu0 %6013
        %6017 = vset.pattern.permute.xlu0 0
        %6018 = vperm.xlu0 %6017, %v5984
        %v6019 = vpop.permute.xlu0 %6018
        %6022 = vset.pattern.permute.xlu0 0
        %6023 = vperm.xlu0 %6022, %v5985
        %v6024 = vpop.permute.xlu0 %6023
        %6027 = vset.pattern.permute.xlu0 0
        %6028 = vperm.xlu0 %6027, %v5986
        %v6029 = vpop.permute.xlu0 %6028
        %6032 = vset.pattern.permute.xlu0 0
        %6033 = vperm.xlu0 %6032, %v5987
        %v6034 = vpop.permute.xlu0 %6033
        %6037 = vset.pattern.permute.xlu0 0
        %6038 = vperm.xlu0 %6037, %v5988
        %v6039 = vpop.permute.xlu0 %6038
        %6042 = vset.pattern.permute.xlu0 0
        %6043 = vperm.xlu0 %6042, %v5989
        %v6044 = vpop.permute.xlu0 %6043
        %6047 = vset.pattern.permute.xlu0 0
        %6048 = vperm.xlu0 %6047, %v5990
        %v6049 = vpop.permute.xlu0 %6048
        %6052 = vset.pattern.permute.xlu0 0
        %6053 = vperm.xlu0 %6052, %v5991
        %v6054 = vpop.permute.xlu0 %6053
        %6057 = vset.pattern.permute.xlu0 0
        %6058 = vperm.xlu0 %6057, %v5992
        %v6059 = vpop.permute.xlu0 %6058
        %6062 = vset.pattern.permute.xlu0 0
        %6063 = vperm.xlu0 %6062, %v5993
        %v6064 = vpop.permute.xlu0 %6063
        %6067 = vset.pattern.permute.xlu0 0
        %6068 = vperm.xlu0 %6067, %v5994
        %v6069 = vpop.permute.xlu0 %6068
        %6072 = vset.pattern.permute.xlu0 0
        %6073 = vperm.xlu0 %6072, %v5995
        %v6074 = vpop.permute.xlu0 %6073
        %6076 = vmatpush.msra.mxu0 %v5962
        %6077 = vmatpush.msra.mxu0 %v5960
        %6078 = vmatpush.msra.mxu0 %v5958
        %6079 = vmatpush.msra.mxu0 %v5956
        %6080 = vmatpush.msra.mxu0 %v5954
        %6081 = vmatpush.msra.mxu0 %v5952
        %6082 = vmatpush.msra.mxu0 %v5950
        %6083 = vmatpush.msra.mxu0 %v5948
        %6084 = vmatpush.msra.mxu0 %v5946
        %6085 = vmatpush.msra.mxu0 %v5944
        %6086 = vmatpush.msra.mxu0 %v5942
        %6087 = vmatpush.msra.mxu0 %v5940
        %6088 = vmatpush.msra.mxu0 %v5938
        %6089 = vmatpush.msra.mxu0 %v5936
        %6090 = vmatpush.msra.mxu0 %v5934
        %6091 = vmatpush.msra.mxu0 %v5932
        %6092 = vmatmul.f32.gmra.mxu0 %v5964
        %v6093 = vpop.f32.mrf.mxu0
        %v6094 = vadd.f32 %v5999, %v6093
        %6095 = vmatmul.f32.gmra.mxu0 %v5965
        %v6096 = vpop.f32.mrf.mxu0
        %v6097 = vadd.f32 %v6004, %v6096
        %6098 = vmatmul.f32.gmra.mxu0 %v5966
        %v6099 = vpop.f32.mrf.mxu0
        %v6100 = vadd.f32 %v6009, %v6099
        %6101 = vmatmul.f32.gmra.mxu0 %v5967
        %v6102 = vpop.f32.mrf.mxu0
        %v6103 = vadd.f32 %v6014, %v6102
        %6104 = vmatmul.f32.gmra.mxu0 %v5968
        %v6105 = vpop.f32.mrf.mxu0
        %v6106 = vadd.f32 %v6019, %v6105
        %6107 = vmatmul.f32.gmra.mxu0 %v5969
        %v6108 = vpop.f32.mrf.mxu0
        %v6109 = vadd.f32 %v6024, %v6108
        %6110 = vmatmul.f32.gmra.mxu0 %v5970
        %v6111 = vpop.f32.mrf.mxu0
        %v6112 = vadd.f32 %v6029, %v6111
        %6113 = vmatmul.f32.gmra.mxu0 %v5971
        %v6114 = vpop.f32.mrf.mxu0
        %v6115 = vadd.f32 %v6034, %v6114
        %6116 = vmatmul.f32.gmra.mxu0 %v5972
        %v6117 = vpop.f32.mrf.mxu0
        %v6118 = vadd.f32 %v6039, %v6117
        %6119 = vmatmul.f32.gmra.mxu0 %v5973
        %v6120 = vpop.f32.mrf.mxu0
        %v6121 = vadd.f32 %v6044, %v6120
        %6122 = vmatmul.f32.gmra.mxu0 %v5974
        %v6123 = vpop.f32.mrf.mxu0
        %v6124 = vadd.f32 %v6049, %v6123
        %6125 = vmatmul.f32.gmra.mxu0 %v5975
        %v6126 = vpop.f32.mrf.mxu0
        %v6127 = vadd.f32 %v6054, %v6126
        %6128 = vmatmul.f32.gmra.mxu0 %v5976
        %v6129 = vpop.f32.mrf.mxu0
        %v6130 = vadd.f32 %v6059, %v6129
        %6131 = vmatmul.f32.gmra.mxu0 %v5977
        %v6132 = vpop.f32.mrf.mxu0
        %v6133 = vadd.f32 %v6064, %v6132
        %6134 = vmatmul.f32.gmra.mxu0 %v5978
        %v6135 = vpop.f32.mrf.mxu0
        %v6136 = vadd.f32 %v6069, %v6135
        %6137 = vmatmul.f32.gmra.mxu0 %v5979
        %v6138 = vpop.f32.mrf.mxu0
        %v6139 = vadd.f32 %v6074, %v6138
        %6140 = vdwg.mxu0
        %6141 = vmatpush.msra.mxu0 %v5963
        %6142 = vmatpush.msra.mxu0 %v5961
        %6143 = vmatpush.msra.mxu0 %v5959
        %6144 = vmatpush.msra.mxu0 %v5957
        %6145 = vmatpush.msra.mxu0 %v5955
        %6146 = vmatpush.msra.mxu0 %v5953
        %6147 = vmatpush.msra.mxu0 %v5951
        %6148 = vmatpush.msra.mxu0 %v5949
        %6149 = vmatpush.msra.mxu0 %v5947
        %6150 = vmatpush.msra.mxu0 %v5945
        %6151 = vmatpush.msra.mxu0 %v5943
        %6152 = vmatpush.msra.mxu0 %v5941
        %6153 = vmatpush.msra.mxu0 %v5939
        %6154 = vmatpush.msra.mxu0 %v5937
        %6155 = vmatpush.msra.mxu0 %v5935
        %6156 = vmatpush.msra.mxu0 %v5933
        %6157 = vmatmul.f32.gmra.mxu0 %v5964
        %v6158 = vpop.f32.mrf.mxu0
        %v6159 = vadd.f32 %v5999, %v6158
        %6160 = vmatmul.f32.gmra.mxu0 %v5965
        %v6161 = vpop.f32.mrf.mxu0
        %v6162 = vadd.f32 %v6004, %v6161
        %6163 = vmatmul.f32.gmra.mxu0 %v5966
        %v6164 = vpop.f32.mrf.mxu0
        %v6165 = vadd.f32 %v6009, %v6164
        %6166 = vmatmul.f32.gmra.mxu0 %v5967
        %v6167 = vpop.f32.mrf.mxu0
        %v6168 = vadd.f32 %v6014, %v6167
        %6169 = vmatmul.f32.gmra.mxu0 %v5968
        %v6170 = vpop.f32.mrf.mxu0
        %v6171 = vadd.f32 %v6019, %v6170
        %6172 = vmatmul.f32.gmra.mxu0 %v5969
        %v6173 = vpop.f32.mrf.mxu0
        %v6174 = vadd.f32 %v6024, %v6173
        %6175 = vmatmul.f32.gmra.mxu0 %v5970
        %v6176 = vpop.f32.mrf.mxu0
        %v6177 = vadd.f32 %v6029, %v6176
        %6178 = vmatmul.f32.gmra.mxu0 %v5971
        %v6179 = vpop.f32.mrf.mxu0
        %v6180 = vadd.f32 %v6034, %v6179
        %6181 = vmatmul.f32.gmra.mxu0 %v5972
        %v6182 = vpop.f32.mrf.mxu0
        %v6183 = vadd.f32 %v6039, %v6182
        %6184 = vmatmul.f32.gmra.mxu0 %v5973
        %v6185 = vpop.f32.mrf.mxu0
        %v6186 = vadd.f32 %v6044, %v6185
        %6187 = vmatmul.f32.gmra.mxu0 %v5974
        %v6188 = vpop.f32.mrf.mxu0
        %v6189 = vadd.f32 %v6049, %v6188
        %6190 = vmatmul.f32.gmra.mxu0 %v5975
        %v6191 = vpop.f32.mrf.mxu0
        %v6192 = vadd.f32 %v6054, %v6191
        %6193 = vmatmul.f32.gmra.mxu0 %v5976
        %v6194 = vpop.f32.mrf.mxu0
        %v6195 = vadd.f32 %v6059, %v6194
        %6196 = vmatmul.f32.gmra.mxu0 %v5977
        %v6197 = vpop.f32.mrf.mxu0
        %v6198 = vadd.f32 %v6064, %v6197
        %6199 = vmatmul.f32.gmra.mxu0 %v5978
        %v6200 = vpop.f32.mrf.mxu0
        %v6201 = vadd.f32 %v6069, %v6200
        %6202 = vmatmul.f32.gmra.mxu0 %v5979
        %v6203 = vpop.f32.mrf.mxu0
        %v6204 = vadd.f32 %v6074, %v6203
        %6205 = vdwg.mxu0
        %6206 = vst [vmem:[%s416] sm:$0xff] %v6094
        %6207 = vst [vmem:[%s416 + $0x8] sm:$0xff] %v6159
        %6208 = vst [vmem:[%s416 + $0x10] sm:$0xff] %v6097
        %6209 = vst [vmem:[%s416 + $0x18] sm:$0xff] %v6162
        %6210 = vst [vmem:[%s416 + $0x20] sm:$0xff] %v6100
        %6211 = vst [vmem:[%s416 + $0x28] sm:$0xff] %v6165
        %6212 = vst [vmem:[%s416 + $0x30] sm:$0xff] %v6103
        %6213 = vst [vmem:[%s416 + $0x38] sm:$0xff] %v6168
        %6214 = vst [vmem:[%s416 + $0x40] sm:$0xff] %v6106
        %6215 = vst [vmem:[%s416 + $0x48] sm:$0xff] %v6171
        %6216 = vst [vmem:[%s416 + $0x50] sm:$0xff] %v6109
        %6217 = vst [vmem:[%s416 + $0x58] sm:$0xff] %v6174
        %6218 = vst [vmem:[%s416 + $0x60] sm:$0xff] %v6112
        %6219 = vst [vmem:[%s416 + $0x68] sm:$0xff] %v6177
        %6220 = vst [vmem:[%s416 + $0x70] sm:$0xff] %v6115
        %6221 = vst [vmem:[%s416 + $0x78] sm:$0xff] %v6180
        %6222 = vst [vmem:[%s416 + $0x80] sm:$0xff] %v6118
        %6223 = vst [vmem:[%s416 + $0x88] sm:$0xff] %v6183
        %6224 = vst [vmem:[%s416 + $0x90] sm:$0xff] %v6121
        %6225 = vst [vmem:[%s416 + $0x98] sm:$0xff] %v6186
        %6226 = vst [vmem:[%s416 + $0xa0] sm:$0xff] %v6124
        %6227 = vst [vmem:[%s416 + $0xa8] sm:$0xff] %v6189
        %6228 = vst [vmem:[%s416 + $0xb0] sm:$0xff] %v6127
        %6229 = vst [vmem:[%s416 + $0xb8] sm:$0xff] %v6192
        %6230 = vst [vmem:[%s416 + $0xc0] sm:$0xff] %v6130
        %6231 = vst [vmem:[%s416 + $0xc8] sm:$0xff] %v6195
        %6232 = vst [vmem:[%s416 + $0xd0] sm:$0xff] %v6133
        %6233 = vst [vmem:[%s416 + $0xd8] sm:$0xff] %v6198
        %6234 = vst [vmem:[%s416 + $0xe0] sm:$0xff] %v6136
        %6235 = vst [vmem:[%s416 + $0xe8] sm:$0xff] %v6201
        %6236 = vst [vmem:[%s416 + $0xf0] sm:$0xff] %v6139
        %6237 = vst [vmem:[%s416 + $0xf8] sm:$0xff] %v6204
        %s6238 = sand.u32 %s244, 1
        %s6239 = scalar_lea.sflag [#allocation5], %s6238
        %s6240 = sand.u32 %s244, 1
        %s6241 = smul.addr %s6240, 256
        %s6242 = scalar_lea.vmem [#allocation11], %s6241
        // Predicated region
        $region77: #{tpu_custom_call.1} parent=55 // pred_check
          %p6243 = pneg %p254
        $region78: #{tpu_custom_call.1} parent=55 // pred_check_branch
          %6245 = sbr.rel (%p6243) target = $region80
        $region79: #{tpu_custom_call.1} parent=55 // pred_region
          %s6246 = smul.u32 2, %s33
          %6248 = vsyncadd %s6239, 0
          %s6249 = smul.addr %s32, 32
          %s6250 = sadd.s32 %s6246, %s6249
          %s6251 = smul.addr %s6250, 8
          %s6252 = scalar_lea.hbm %s9, %s6251
          %s6253 = sshll.u32 %s6242, 4
          %s6254 = int_to_ptr.vmem [resolvable:$true] %s6253
          %s6255 = sshll.u32 %s6252, 4
          %s6256 = int_to_ptr.hbm [resolvable:$true] %s6255
          %6261 = dma.vmem_to_hbm [thread:$0]  %s6254, 4096, %s6256, %s6239, 256, 256, 16
        $region80: #{tpu_custom_call.1} parent=55 // pred_fallthru
          _
      $region56: #{tpu_custom_call.1} parent=5 // pred_fallthru
        _
      %p6262 = scmp.le.s32.totalorder 2, %s23
      // Predicated region
      $region81: #{tpu_custom_call.1} parent=5 // pred_check
        %p6263 = pneg %p6262
      $region82: #{tpu_custom_call.1} parent=5 // pred_check_branch
        %6265 = sbr.rel (%p6263) target = $region84
      $region83: #{tpu_custom_call.1} parent=5 // pred_region
        %s6266 = ssub.s32 %s23, 2
        // Predicated region
        $region85: #{tpu_custom_call.1} parent=83 // pred_check
          %p6267 = pneg %p260
        $region86: #{tpu_custom_call.1} parent=83 // pred_check_branch
          %6269 = sbr.rel (%p6267) target = $region88
        $region87: #{tpu_custom_call.1} parent=83 // pred_region
          %s6270 = sand.u32 %s245, 1
          %s6271 = scalar_lea.sflag [#allocation5], %s6270
          %s6272 = sand.u32 %s245, 1
          %s6273 = smul.addr %s6272, 256
          %s6274 = scalar_lea.vmem [#allocation11], %s6273
          %6276 = dma.done %s6271, 4096
        $region88: #{tpu_custom_call.1} parent=83 // pred_fallthru
          _
      $region84: #{tpu_custom_call.1} parent=5 // pred_fallthru
        _
    $region6: #{tpu_custom_call.1} parent=1 // loop_footer
      %s27 = sadd.s32 1, %s23
    $region7: #{tpu_custom_call.1} parent=1 // loop_footer_branch
      %22 = sbr.rel target = $region3
    $region8: #{tpu_custom_call.1} parent=1 // loop_exit
      _
    %6277 = vsyncpa [#allocation4], 1
    %s6278 = scalar_lea.sflag [#allocation4], 1
    %6279 = vsyncpa %s6278, 1
    %6280 = vsyncpa [#allocation7], 1
    %6281 = vsyncpa [#allocation10], 1
    %6282 = vsyncpa [#allocation5], 1
    %s6283 = scalar_lea.sflag [#allocation5], 1
    %6284 = vsyncpa %s6283, 1

</llo_original>
